<compile_context>
chip_gen: v5e
topology: v5e:2x2
jax: 0.10.0
libtpu: 0.0.40
codegen_flags: <defaults>
</compile_context>

<pallas_src>
import functools

import numpy as np

import jax
import jax.numpy as jnp
from jax import lax
from jax.experimental import pallas as pl
from jax.experimental.pallas import tpu as pltpu


def _round_up(x, m):
    return ((x + m - 1) // m) * m


def _forward_kernel(x_ref, w1_ref, b1_ref, w2_ref, b2_ref, wf1_ref, bf1_ref,
                    wf2_ref, bf2_ref, out_ref, pad1_ref,
                    *, Bt, H, H1, H2, C1, C2, W1, W2, kin1p):
    """Bt images per grid step. Rows of every 2-D matmul operand are (y, batch);
    the x/channel axes live on the lane dimension."""
    f32 = jnp.float32
    bf16 = jnp.bfloat16
    half1 = W1 * C1       # lane width of the x-pooled conv1 map (128 for W=16)
    half2 = W2 * C2       # lane width of the x-pooled conv2 map (128 for W=16)

    # ---- conv1: 3 banded bf16 matmuls (one per ky shift) + bias + ReLU -----
    # output columns = [x-even half | x-odd half], each ordered (x1, c_out).
    acc1 = jnp.dot(x_ref[0:H, :, :].reshape(H * Bt, kin1p), w1_ref[0],
                   preferred_element_type=f32)
    for ky in range(1, 3):
        acc1 = acc1 + jnp.dot(x_ref[ky:ky + H, :, :].reshape(H * Bt, kin1p),
                              w1_ref[ky], preferred_element_type=f32)
    c1 = jnp.maximum(acc1 + b1_ref[...], 0.0)             # (H*Bt, 2*half1) f32

    # ---- maxpool1 2x2: x via the even/odd lane halves, y via two adjacent
    # (Bt, half1) row slabs (pure slab maxes, no strided loads).
    s1 = jnp.maximum(c1[:, :half1], c1[:, half1:])        # (H*Bt, half1)
    s1 = s1.reshape(H1, 2, Bt, half1)
    p1 = jnp.maximum(s1[:, 0], s1[:, 1])                  # (H1, Bt, half1)

    # ---- conv2 input: y-padded bf16 scratch (x padding lives in the band) --
    zrow = jnp.zeros((1, Bt, half1), bf16)
    pad1_ref[0:1, :, :] = zrow
    pad1_ref[H1 + 1:H1 + 2, :, :] = zrow
    pad1_ref[1:H1 + 1, :, :] = p1.astype(bf16)

    # ---- conv2: 3 banded bf16 matmuls + bias + ReLU -------------------------
    acc2 = jnp.dot(pad1_ref[0:H1, :, :].reshape(H1 * Bt, half1), w2_ref[0],
                   preferred_element_type=f32)
    for ky in range(1, 3):
        acc2 = acc2 + jnp.dot(
            pad1_ref[ky:ky + H1, :, :].reshape(H1 * Bt, half1),
            w2_ref[ky], preferred_element_type=f32)
    c2 = jnp.maximum(acc2 + b2_ref[...], 0.0)             # (H1*Bt, 2*half2) f32

    # ---- maxpool2 + fc1 (both heads): x via halves, y via adjacent slabs,
    # then ONE (Bt, H2*half2) x (H2*half2, 256) matmul.
    s2 = jnp.maximum(c2[:, :half2], c2[:, half2:])        # (H1*Bt, half2)
    s2 = s2.reshape(H2, 2, Bt, half2)
    p2 = jnp.maximum(s2[:, 0], s2[:, 1])                  # (H2, Bt, half2)
    f1in = jnp.concatenate([p2[y2] for y2 in range(H2)], axis=-1)  # (Bt, H2*half2)
    hid = jnp.dot(f1in.astype(bf16), wf1_ref[...], preferred_element_type=f32)
    h = jnp.maximum(hid + bf1_ref[...], 0.0)              # (Bt, 256) f32

    # ---- fused fc2 heads: block-diagonal weight, lane-dense padded output --
    out_ref[...] = jnp.dot(h.astype(bf16), wf2_ref[...],
                           preferred_element_type=f32) + bf2_ref[...]


def init_params(key, Cin, H, W, num_classes):
    """Deterministic synthetic parameters with PyTorch-style shapes."""
    H2, W2 = H // 4, W // 4
    F = 32 * H2 * W2  # the module's dynamically computed _to_linear
    ks = jax.random.split(key, 12)

    def u(k, shape, fan_in):
        bound = 1.0 / jnp.sqrt(jnp.float32(fan_in))
        return jax.random.uniform(k, shape, jnp.float32, -bound, bound)

    return dict(
        Wc1=u(ks[0], (16, Cin, 3, 3), Cin * 9), bc1=u(ks[1], (16,), Cin * 9),
        Wc2=u(ks[2], (32, 16, 3, 3), 16 * 9),   bc2=u(ks[3], (32,), 16 * 9),
        W1p=u(ks[4], (128, F), F), b1p=u(ks[5], (128,), F),
        W2p=u(ks[6], (num_classes, 128), 128), b2p=u(ks[7], (num_classes,), 128),
        W1b=u(ks[8], (128, F), F), b1b=u(ks[9], (128,), F),
        W2b=u(ks[10], (1, 128), 128), b2b=u(ks[11], (1,), 128),
    )


def _pack_kernel_params(p, Cin, H, W, num_classes):
    """Repack torch-shaped weights into the banded / concatenated bf16 layouts
    the kernel consumes (biases stay f32)."""
    H1, W1, H2, W2 = H // 2, W // 2, H // 4, W // 4
    C1, C2 = 16, 32
    kin1 = (W + 2) * Cin
    kin1p = _round_up(kin1, 128)

    def conv_band(Wc, n_in_pos, w_half, offset):
        # Wc: (Cout, Cin, 3, 3).  Returns (3, n_in_pos*Cin, 2*w_half*Cout):
        #   band[ky, u*Cin+ci, p*w_half*Cout + x1*Cout + co]
        #     = Wc[co, ci, ky, kx]   where u = 2*x1 + p + kx + offset (else 0).
        cout, cin = Wc.shape[0], Wc.shape[1]
        wk = jnp.transpose(Wc, (2, 3, 1, 0))              # (ky, kx, ci, co)
        ind = np.zeros((3, 2, n_in_pos, w_half), np.float32)
        for kx in range(3):
            for par in range(2):
                for xh in range(w_half):
                    u = 2 * xh + par + kx + offset
                    if 0 <= u < n_in_pos:
                        ind[kx, par, u, xh] = 1.0
        band = jnp.einsum('ykic,kpuh->yuiphc', wk, jnp.asarray(ind))
        return band.reshape(3, n_in_pos * cin, 2 * w_half * cout)

    # conv1 reads the x-padded input (width W+2) with K zero-padded to 128;
    # conv2's x padding is clipped away inside the band (offset=-1).
    w1b = conv_band(p["Wc1"], W + 2, W1, 0)               # (3, kin1, 2*W1*C1)
    w1b = jnp.pad(w1b, ((0, 0), (0, kin1p - kin1), (0, 0)))
    w2b = conv_band(p["Wc2"], W1, W2, -1)                 # (3, W1*C1, 2*W2*C2)
    b1row = jnp.tile(p["bc1"], 2 * W1).reshape(1, 2 * W1 * C1)
    b2row = jnp.tile(p["bc2"], 2 * W2).reshape(1, 2 * W2 * C2)

    # fc1 weights: torch flatten order f = c*H2*W2 + y2*W2 + x2  ->  kernel
    # lane order y2*half2 + x2*C2 + c; both heads concatenated on the out axis
    # and the y2 axis folded into K for a single fused matmul.
    def fc1_block(wfc):
        w = wfc.reshape(128, C2, H2, W2)                  # (n, c, y2, x2)
        w = jnp.transpose(w, (2, 3, 1, 0))                # (y2, x2, c, n)
        return w.reshape(H2, W2 * C2, 128)

    wf1 = jnp.concatenate([fc1_block(p["W1p"]), fc1_block(p["W1b"])], axis=-1)
    wf1 = wf1.reshape(H2 * W2 * C2, 256)                  # (512, 256)
    bf1 = jnp.concatenate([p["b1p"], p["b1b"]]).reshape(1, 256)

    # fc2 heads fused block-diagonally, output lane-padded to a multiple of 128.
    npad = max(128, _round_up(num_classes + 1, 128))
    wf2 = jnp.zeros((256, npad), jnp.float32)
    wf2 = wf2.at[:128, :num_classes].set(p["W2p"].T)
    wf2 = wf2.at[128:, num_classes:num_classes + 1].set(p["W2b"].T)
    bf2 = jnp.zeros((1, npad), jnp.float32)
    bf2 = bf2.at[0, :num_classes].set(p["b2p"])
    bf2 = bf2.at[0, num_classes].set(p["b2b"][0])

    bf16 = jnp.bfloat16
    return (w1b.astype(bf16), b1row.astype(jnp.float32),
            w2b.astype(bf16), b2row.astype(jnp.float32),
            wf1.astype(bf16), bf1.astype(jnp.float32),
            wf2.astype(bf16), bf2.astype(jnp.float32), kin1p, npad)


def forward_pallas(x_nchw, params, num_classes, block_batch=128):
    B, Cin, H, W = x_nchw.shape
    assert H % 4 == 0 and W % 4 == 0, "two 2x2 pools require H, W % 4 == 0"
    H1, W1, H2, W2 = H // 2, W // 2, H // 4, W // 4
    C1, C2 = 16, 32
    kin1 = (W + 2) * Cin
    half1 = W1 * C1

    (w1b, b1row, w2b, b2row, wf1, bf1, wf2, bf2,
     kin1p, npad) = _pack_kernel_params(params, Cin, H, W, num_classes)

    # Batch tile: multiple of 16 so every (y, batch) slab is tile-aligned for
    # both bf16 and f32 layouts.  Raise block_batch (tuning knob) so matmul M
    # fills the MXU; the grid shards the batch across cores ("parallel").
    Bt = max(16, min(_round_up(block_batch, 16), _round_up(B, 16)))
    G = -(-B // Bt)
    Bp = G * Bt

    # NCHW -> (G, H+2, Bt, kin1p): y-pad rows, merge (x, channel) on lanes,
    # zero-pad the conv1 contraction to 128 lanes, rows ordered (y, batch).
    x_nhwc = jnp.transpose(x_nchw, (0, 2, 3, 1)).astype(jnp.float32)
    x_pad = jnp.pad(x_nhwc, ((0, 0), (1, 1), (1, 1), (0, 0)))
    x_in = x_pad.reshape(B, H + 2, kin1)
    x_in = jnp.pad(x_in, ((0, Bp - B), (0, 0), (0, kin1p - kin1)))
    x_in = x_in.reshape(G, Bt, H + 2, kin1p).transpose(0, 2, 1, 3)
    x_in = x_in.astype(jnp.bfloat16)

    kern = functools.partial(_forward_kernel, Bt=Bt, H=H, H1=H1, H2=H2,
                             C1=C1, C2=C2, W1=W1, W2=W2, kin1p=kin1p)

    def full(arr):
        n = arr.ndim
        return pl.BlockSpec(arr.shape, lambda g: (0,) * n)

    in_specs = [
        pl.BlockSpec((None, H + 2, Bt, kin1p), lambda g: (g, 0, 0, 0)),
        full(w1b), full(b1row),
        full(w2b), full(b2row),
        full(wf1), full(bf1),
        full(wf2), full(bf2),
    ]
    out_specs = pl.BlockSpec((None, Bt, npad), lambda g: (g, 0, 0))
    out_shape = jax.ShapeDtypeStruct((G, Bt, npad), jnp.float32)
    scratch_shapes = [
        pltpu.VMEM((H1 + 2, Bt, half1), jnp.bfloat16),   # y-padded conv2 input
    ]

    out = pl.pallas_call(
        kern,
        grid=(G,),
        in_specs=in_specs,
        out_specs=out_specs,
        out_shape=out_shape,
        scratch_shapes=scratch_shapes,
        compiler_params=pltpu.CompilerParams(
            dimension_semantics=("parallel",),
            vmem_limit_bytes=48 * 1024 * 1024),
    )(x_in, w1b, b1row, w2b, b2row, wf1, bf1, wf2, bf2)

    out = out.reshape(Bp, npad)[:B]
    return out[:, :num_classes], out[:, num_classes:num_classes + 1]


def forward_reference(x_nchw, p):
    """Plain-JAX f32 replica of the PyTorch forward (NCHW), for verification."""
    dn = ("NCHW", "OIHW", "NCHW")

    def pool(y):
        B, C, Hh, Ww = y.shape
        return y.reshape(B, C, Hh // 2, 2, Ww // 2, 2).max(axis=(3, 5))

    y = lax.conv_general_dilated(x_nchw, p["Wc1"], (1, 1), ((1, 1), (1, 1)),
                                 dimension_numbers=dn) + p["bc1"][None, :, None, None]
    y = pool(jnp.maximum(y, 0.0))
    y = lax.conv_general_dilated(y, p["Wc2"], (1, 1), ((1, 1), (1, 1)),
                                 dimension_numbers=dn) + p["bc2"][None, :, None, None]
    y = pool(jnp.maximum(y, 0.0))
    flat = y.reshape(y.shape[0], -1)                     # torch x.view(B,-1): CHW order
    hp = jnp.maximum(flat @ p["W1p"].T + p["b1p"], 0.0)
    outp = hp @ p["W2p"].T + p["b2p"]
    hb = jnp.maximum(flat @ p["W1b"].T + p["b1b"], 0.0)
    outb = hb @ p["W2b"].T + p["b2b"]
    return outp, outb


if __name__ == "__main__":
    B, Cin, H, W = 2, 4, 16, 16
    num_classes = 10

    key = jax.random.PRNGKey(0)
    kx, kp = jax.random.split(key)
    x = jax.random.normal(kx, (B, Cin, H, W), jnp.float32)
    params = init_params(kp, Cin, H, W, num_classes)

    fwd = jax.jit(functools.partial(forward_pallas, num_classes=num_classes))
    outp, outb = fwd(x, params)
    jax.block_until_ready((outp, outb))

    refp, refb = forward_reference(x, params)
    # bf16 MXU operands with f32 accumulation -> loose-ish tolerance.
    ok = (outp.shape == (B, num_classes) and outb.shape == (B, 1)
          and bool(jnp.allclose(outp, refp, atol=5e-2, rtol=5e-2))
          and bool(jnp.allclose(outb, refb, atol=5e-2, rtol=5e-2)))
    if ok:
        print("KERNEL_OK")
    else:
        print("MISMATCH placement_max_err=",
              float(jnp.max(jnp.abs(outp - refp))),
              " bonus_max_err=", float(jnp.max(jnp.abs(outb - refb))))
</pallas_src>

<mosaic_0001>
module attributes {stable_mosaic.version = 11 : i64} {
  func.func @_forward_kernel(%arg0: i32, %arg1: memref<1x18x16x128xbf16, #tpu.memory_space<vmem>>, %arg2: memref<3x128x256xbf16, #tpu.memory_space<vmem>>, %arg3: memref<1x256xf32, #tpu.memory_space<vmem>>, %arg4: memref<3x128x256xbf16, #tpu.memory_space<vmem>>, %arg5: memref<1x256xf32, #tpu.memory_space<vmem>>, %arg6: memref<512x256xbf16, #tpu.memory_space<vmem>>, %arg7: memref<1x256xf32, #tpu.memory_space<vmem>>, %arg8: memref<256x128xbf16, #tpu.memory_space<vmem>>, %arg9: memref<1x128xf32, #tpu.memory_space<vmem>>, %arg10: memref<1x16x128xf32, #tpu.memory_space<vmem>>, %arg11: memref<10x16x128xbf16, #tpu.memory_space<vmem>>) attributes {dimension_semantics = [#tpu.dimension_semantics<parallel>], iteration_bounds = array<i64: 1>, scalar_prefetch = 0 : i64, scratch_operands = 1 : i64, tpu.core_type = #tpu.core_type<tc>, window_params = [{transform_indices = @transform_0, window_bounds = array<i64: 1, 18, 16, 128>}, {pipeline_mode = #tpu.pipeline_mode<synchronous>, transform_indices = @transform_1, window_bounds = array<i64: 3, 128, 256>}, {pipeline_mode = #tpu.pipeline_mode<synchronous>, transform_indices = @transform_2, window_bounds = array<i64: 1, 256>}, {pipeline_mode = #tpu.pipeline_mode<synchronous>, transform_indices = @transform_3, window_bounds = array<i64: 3, 128, 256>}, {pipeline_mode = #tpu.pipeline_mode<synchronous>, transform_indices = @transform_4, window_bounds = array<i64: 1, 256>}, {pipeline_mode = #tpu.pipeline_mode<synchronous>, transform_indices = @transform_5, window_bounds = array<i64: 512, 256>}, {pipeline_mode = #tpu.pipeline_mode<synchronous>, transform_indices = @transform_6, window_bounds = array<i64: 1, 256>}, {pipeline_mode = #tpu.pipeline_mode<synchronous>, transform_indices = @transform_7, window_bounds = array<i64: 256, 128>}, {pipeline_mode = #tpu.pipeline_mode<synchronous>, transform_indices = @transform_8, window_bounds = array<i64: 1, 128>}, {transform_indices = @transform_9, window_bounds = array<i64: 1, 16, 128>}]} {
    %c0 = arith.constant 0 : index
    %c0_0 = arith.constant 0 : index
    %c0_1 = arith.constant 0 : index
    %c0_2 = arith.constant 0 : index
    %0 = vector.load %arg1[%c0, %c0_0, %c0_1, %c0_2] : memref<1x18x16x128xbf16, #tpu.memory_space<vmem>>, vector<1x16x16x128xbf16>
    %1 = vector.shape_cast %0 : vector<1x16x16x128xbf16> to vector<16x16x128xbf16>
    %2 = vector.shape_cast %1 : vector<16x16x128xbf16> to vector<256x128xbf16>
    %c0_3 = arith.constant 0 : index
    %c0_4 = arith.constant 0 : index
    %c0_5 = arith.constant 0 : index
    %3 = vector.load %arg2[%c0_3, %c0_4, %c0_5] : memref<3x128x256xbf16, #tpu.memory_space<vmem>>, vector<1x128x256xbf16>
    %4 = vector.shape_cast %3 : vector<1x128x256xbf16> to vector<128x256xbf16>
    %cst = arith.constant dense<0.000000e+00> : vector<256x256xf32>
    %5 = tpu.matmul %2, %4, %cst {dimension_numbers = #tpu.dot_dimension_numbers<[1], [0], [0], [1], [0, 0, 1, 1], [], []>} : vector<256x128xbf16>, vector<128x256xbf16>, vector<256x256xf32> -> vector<256x256xf32>
    %c0_6 = arith.constant 0 : index
    %c1 = arith.constant 1 : index
    %c0_7 = arith.constant 0 : index
    %c0_8 = arith.constant 0 : index
    %6 = vector.load %arg1[%c0_6, %c1, %c0_7, %c0_8] : memref<1x18x16x128xbf16, #tpu.memory_space<vmem>>, vector<1x16x16x128xbf16>
    %7 = vector.shape_cast %6 : vector<1x16x16x128xbf16> to vector<16x16x128xbf16>
    %8 = vector.shape_cast %7 : vector<16x16x128xbf16> to vector<256x128xbf16>
    %c1_9 = arith.constant 1 : index
    %c0_10 = arith.constant 0 : index
    %c0_11 = arith.constant 0 : index
    %9 = vector.load %arg2[%c1_9, %c0_10, %c0_11] : memref<3x128x256xbf16, #tpu.memory_space<vmem>>, vector<1x128x256xbf16>
    %10 = vector.shape_cast %9 : vector<1x128x256xbf16> to vector<128x256xbf16>
    %cst_12 = arith.constant dense<0.000000e+00> : vector<256x256xf32>
    %11 = tpu.matmul %8, %10, %cst_12 {dimension_numbers = #tpu.dot_dimension_numbers<[1], [0], [0], [1], [0, 0, 1, 1], [], []>} : vector<256x128xbf16>, vector<128x256xbf16>, vector<256x256xf32> -> vector<256x256xf32>
    %12 = arith.addf %5, %11 : vector<256x256xf32>
    %c0_13 = arith.constant 0 : index
    %c2 = arith.constant 2 : index
    %c0_14 = arith.constant 0 : index
    %c0_15 = arith.constant 0 : index
    %13 = vector.load %arg1[%c0_13, %c2, %c0_14, %c0_15] : memref<1x18x16x128xbf16, #tpu.memory_space<vmem>>, vector<1x16x16x128xbf16>
    %14 = vector.shape_cast %13 : vector<1x16x16x128xbf16> to vector<16x16x128xbf16>
    %15 = vector.shape_cast %14 : vector<16x16x128xbf16> to vector<256x128xbf16>
    %c2_16 = arith.constant 2 : index
    %c0_17 = arith.constant 0 : index
    %c0_18 = arith.constant 0 : index
    %16 = vector.load %arg2[%c2_16, %c0_17, %c0_18] : memref<3x128x256xbf16, #tpu.memory_space<vmem>>, vector<1x128x256xbf16>
    %17 = vector.shape_cast %16 : vector<1x128x256xbf16> to vector<128x256xbf16>
    %cst_19 = arith.constant dense<0.000000e+00> : vector<256x256xf32>
    %18 = tpu.matmul %15, %17, %cst_19 {dimension_numbers = #tpu.dot_dimension_numbers<[1], [0], [0], [1], [0, 0, 1, 1], [], []>} : vector<256x128xbf16>, vector<128x256xbf16>, vector<256x256xf32> -> vector<256x256xf32>
    %19 = arith.addf %12, %18 : vector<256x256xf32>
    %c0_20 = arith.constant 0 : index
    %c0_21 = arith.constant 0 : index
    %20 = vector.load %arg3[%c0_20, %c0_21] : memref<1x256xf32, #tpu.memory_space<vmem>>, vector<1x256xf32>
    %21 = vector.broadcast %20 : vector<1x256xf32> to vector<256x256xf32>
    %22 = arith.addf %19, %21 : vector<256x256xf32>
    %cst_22 = arith.constant 0.000000e+00 : f32
    %23 = vector.broadcast %cst_22 : f32 to vector<256x256xf32>
    %24 = arith.maximumf %22, %23 : vector<256x256xf32>
    %25 = vector.extract_strided_slice %24 {offsets = [0, 0], sizes = [256, 128], strides = [1, 1]} : vector<256x256xf32> to vector<256x128xf32>
    %26 = vector.extract_strided_slice %24 {offsets = [0, 128], sizes = [256, 128], strides = [1, 1]} : vector<256x256xf32> to vector<256x128xf32>
    %27 = arith.maximumf %25, %26 : vector<256x128xf32>
    %28 = vector.shape_cast %27 : vector<256x128xf32> to vector<8x2x16x128xf32>
    %29 = vector.extract_strided_slice %28 {offsets = [0, 0, 0, 0], sizes = [8, 1, 16, 128], strides = [1, 1, 1, 1]} : vector<8x2x16x128xf32> to vector<8x1x16x128xf32>
    %30 = vector.shape_cast %29 : vector<8x1x16x128xf32> to vector<8x16x128xf32>
    %31 = vector.extract_strided_slice %28 {offsets = [0, 1, 0, 0], sizes = [8, 1, 16, 128], strides = [1, 1, 1, 1]} : vector<8x2x16x128xf32> to vector<8x1x16x128xf32>
    %32 = vector.shape_cast %31 : vector<8x1x16x128xf32> to vector<8x16x128xf32>
    %33 = arith.maximumf %30, %32 : vector<8x16x128xf32>
    %cst_23 = arith.constant 0.000000e+00 : bf16
    %34 = vector.broadcast %cst_23 : bf16 to vector<1x16x128xbf16>
    %c0_24 = arith.constant 0 : index
    %c0_25 = arith.constant 0 : index
    %c0_26 = arith.constant 0 : index
    %35 = vector.load %arg11[%c0_24, %c0_25, %c0_26] : memref<10x16x128xbf16, #tpu.memory_space<vmem>>, vector<1x16x128xbf16>
    tpu.vector_store %arg11[%c0_24, %c0_25, %c0_26], %34 {strides = array<i32>} : memref<10x16x128xbf16, #tpu.memory_space<vmem>>, vector<1x16x128xbf16>,
    %c9 = arith.constant 9 : index
    %c0_27 = arith.constant 0 : index
    %c0_28 = arith.constant 0 : index
    %36 = vector.load %arg11[%c9, %c0_27, %c0_28] : memref<10x16x128xbf16, #tpu.memory_space<vmem>>, vector<1x16x128xbf16>
    tpu.vector_store %arg11[%c9, %c0_27, %c0_28], %34 {strides = array<i32>} : memref<10x16x128xbf16, #tpu.memory_space<vmem>>, vector<1x16x128xbf16>,
    %37 = arith.truncf %33 : vector<8x16x128xf32> to vector<8x16x128xbf16>
    %c1_29 = arith.constant 1 : index
    %c0_30 = arith.constant 0 : index
    %c0_31 = arith.constant 0 : index
    %38 = vector.load %arg11[%c1_29, %c0_30, %c0_31] : memref<10x16x128xbf16, #tpu.memory_space<vmem>>, vector<8x16x128xbf16>
    tpu.vector_store %arg11[%c1_29, %c0_30, %c0_31], %37 {strides = array<i32>} : memref<10x16x128xbf16, #tpu.memory_space<vmem>>, vector<8x16x128xbf16>,
    %c0_32 = arith.constant 0 : index
    %c0_33 = arith.constant 0 : index
    %c0_34 = arith.constant 0 : index
    %39 = vector.load %arg11[%c0_32, %c0_33, %c0_34] : memref<10x16x128xbf16, #tpu.memory_space<vmem>>, vector<8x16x128xbf16>
    %40 = vector.shape_cast %39 : vector<8x16x128xbf16> to vector<128x128xbf16>
    %c0_35 = arith.constant 0 : index
    %c0_36 = arith.constant 0 : index
    %c0_37 = arith.constant 0 : index
    %41 = vector.load %arg4[%c0_35, %c0_36, %c0_37] : memref<3x128x256xbf16, #tpu.memory_space<vmem>>, vector<1x128x256xbf16>
    %42 = vector.shape_cast %41 : vector<1x128x256xbf16> to vector<128x256xbf16>
    %cst_38 = arith.constant dense<0.000000e+00> : vector<128x256xf32>
    %43 = tpu.matmul %40, %42, %cst_38 {dimension_numbers = #tpu.dot_dimension_numbers<[1], [0], [0], [1], [0, 0, 1, 1], [], []>} : vector<128x128xbf16>, vector<128x256xbf16>, vector<128x256xf32> -> vector<128x256xf32>
    %c1_39 = arith.constant 1 : index
    %c0_40 = arith.constant 0 : index
    %c0_41 = arith.constant 0 : index
    %44 = vector.load %arg11[%c1_39, %c0_40, %c0_41] : memref<10x16x128xbf16, #tpu.memory_space<vmem>>, vector<8x16x128xbf16>
    %45 = vector.shape_cast %44 : vector<8x16x128xbf16> to vector<128x128xbf16>
    %c1_42 = arith.constant 1 : index
    %c0_43 = arith.constant 0 : index
    %c0_44 = arith.constant 0 : index
    %46 = vector.load %arg4[%c1_42, %c0_43, %c0_44] : memref<3x128x256xbf16, #tpu.memory_space<vmem>>, vector<1x128x256xbf16>
    %47 = vector.shape_cast %46 : vector<1x128x256xbf16> to vector<128x256xbf16>
    %cst_45 = arith.constant dense<0.000000e+00> : vector<128x256xf32>
    %48 = tpu.matmul %45, %47, %cst_45 {dimension_numbers = #tpu.dot_dimension_numbers<[1], [0], [0], [1], [0, 0, 1, 1], [], []>} : vector<128x128xbf16>, vector<128x256xbf16>, vector<128x256xf32> -> vector<128x256xf32>
    %49 = arith.addf %43, %48 : vector<128x256xf32>
    %c2_46 = arith.constant 2 : index
    %c0_47 = arith.constant 0 : index
    %c0_48 = arith.constant 0 : index
    %50 = vector.load %arg11[%c2_46, %c0_47, %c0_48] : memref<10x16x128xbf16, #tpu.memory_space<vmem>>, vector<8x16x128xbf16>
    %51 = vector.shape_cast %50 : vector<8x16x128xbf16> to vector<128x128xbf16>
    %c2_49 = arith.constant 2 : index
    %c0_50 = arith.constant 0 : index
    %c0_51 = arith.constant 0 : index
    %52 = vector.load %arg4[%c2_49, %c0_50, %c0_51] : memref<3x128x256xbf16, #tpu.memory_space<vmem>>, vector<1x128x256xbf16>
    %53 = vector.shape_cast %52 : vector<1x128x256xbf16> to vector<128x256xbf16>
    %cst_52 = arith.constant dense<0.000000e+00> : vector<128x256xf32>
    %54 = tpu.matmul %51, %53, %cst_52 {dimension_numbers = #tpu.dot_dimension_numbers<[1], [0], [0], [1], [0, 0, 1, 1], [], []>} : vector<128x128xbf16>, vector<128x256xbf16>, vector<128x256xf32> -> vector<128x256xf32>
    %55 = arith.addf %49, %54 : vector<128x256xf32>
    %c0_53 = arith.constant 0 : index
    %c0_54 = arith.constant 0 : index
    %56 = vector.load %arg5[%c0_53, %c0_54] : memref<1x256xf32, #tpu.memory_space<vmem>>, vector<1x256xf32>
    %57 = vector.broadcast %56 : vector<1x256xf32> to vector<128x256xf32>
    %58 = arith.addf %55, %57 : vector<128x256xf32>
    %cst_55 = arith.constant 0.000000e+00 : f32
    %59 = vector.broadcast %cst_55 : f32 to vector<128x256xf32>
    %60 = arith.maximumf %58, %59 : vector<128x256xf32>
    %61 = vector.extract_strided_slice %60 {offsets = [0, 0], sizes = [128, 128], strides = [1, 1]} : vector<128x256xf32> to vector<128x128xf32>
    %62 = vector.extract_strided_slice %60 {offsets = [0, 128], sizes = [128, 128], strides = [1, 1]} : vector<128x256xf32> to vector<128x128xf32>
    %63 = arith.maximumf %61, %62 : vector<128x128xf32>
    %64 = vector.shape_cast %63 : vector<128x128xf32> to vector<4x2x16x128xf32>
    %65 = vector.extract_strided_slice %64 {offsets = [0, 0, 0, 0], sizes = [4, 1, 16, 128], strides = [1, 1, 1, 1]} : vector<4x2x16x128xf32> to vector<4x1x16x128xf32>
    %66 = vector.shape_cast %65 : vector<4x1x16x128xf32> to vector<4x16x128xf32>
    %67 = vector.extract_strided_slice %64 {offsets = [0, 1, 0, 0], sizes = [4, 1, 16, 128], strides = [1, 1, 1, 1]} : vector<4x2x16x128xf32> to vector<4x1x16x128xf32>
    %68 = vector.shape_cast %67 : vector<4x1x16x128xf32> to vector<4x16x128xf32>
    %69 = arith.maximumf %66, %68 : vector<4x16x128xf32>
    %70 = vector.extract_strided_slice %69 {offsets = [0, 0, 0], sizes = [1, 16, 128], strides = [1, 1, 1]} : vector<4x16x128xf32> to vector<1x16x128xf32>
    %71 = vector.shape_cast %70 : vector<1x16x128xf32> to vector<16x128xf32>
    %72 = vector.extract_strided_slice %69 {offsets = [1, 0, 0], sizes = [1, 16, 128], strides = [1, 1, 1]} : vector<4x16x128xf32> to vector<1x16x128xf32>
    %73 = vector.shape_cast %72 : vector<1x16x128xf32> to vector<16x128xf32>
    %74 = vector.extract_strided_slice %69 {offsets = [2, 0, 0], sizes = [1, 16, 128], strides = [1, 1, 1]} : vector<4x16x128xf32> to vector<1x16x128xf32>
    %75 = vector.shape_cast %74 : vector<1x16x128xf32> to vector<16x128xf32>
    %76 = vector.extract_strided_slice %69 {offsets = [3, 0, 0], sizes = [1, 16, 128], strides = [1, 1, 1]} : vector<4x16x128xf32> to vector<1x16x128xf32>
    %77 = vector.shape_cast %76 : vector<1x16x128xf32> to vector<16x128xf32>
    %78 = tpu.concatenate %71, %73, %75, %77 in 1 : vector<16x128xf32>, vector<16x128xf32>, vector<16x128xf32>, vector<16x128xf32> -> vector<16x512xf32>
    %79 = arith.truncf %78 : vector<16x512xf32> to vector<16x512xbf16>
    %c0_56 = arith.constant 0 : index
    %c0_57 = arith.constant 0 : index
    %80 = vector.load %arg6[%c0_56, %c0_57] : memref<512x256xbf16, #tpu.memory_space<vmem>>, vector<512x256xbf16>
    %cst_58 = arith.constant dense<0.000000e+00> : vector<16x256xf32>
    %81 = tpu.matmul %79, %80, %cst_58 {dimension_numbers = #tpu.dot_dimension_numbers<[1], [0], [0], [1], [0, 0, 1, 1], [], []>} : vector<16x512xbf16>, vector<512x256xbf16>, vector<16x256xf32> -> vector<16x256xf32>
    %c0_59 = arith.constant 0 : index
    %c0_60 = arith.constant 0 : index
    %82 = vector.load %arg7[%c0_59, %c0_60] : memref<1x256xf32, #tpu.memory_space<vmem>>, vector<1x256xf32>
    %83 = vector.broadcast %82 : vector<1x256xf32> to vector<16x256xf32>
    %84 = arith.addf %81, %83 : vector<16x256xf32>
    %cst_61 = arith.constant 0.000000e+00 : f32
    %85 = vector.broadcast %cst_61 : f32 to vector<16x256xf32>
    %86 = arith.maximumf %84, %85 : vector<16x256xf32>
    %87 = arith.truncf %86 : vector<16x256xf32> to vector<16x256xbf16>
    %c0_62 = arith.constant 0 : index
    %c0_63 = arith.constant 0 : index
    %88 = vector.load %arg8[%c0_62, %c0_63] : memref<256x128xbf16, #tpu.memory_space<vmem>>, vector<256x128xbf16>
    %cst_64 = arith.constant dense<0.000000e+00> : vector<16x128xf32>
    %89 = tpu.matmul %87, %88, %cst_64 {dimension_numbers = #tpu.dot_dimension_numbers<[1], [0], [0], [1], [0, 0, 1, 1], [], []>} : vector<16x256xbf16>, vector<256x128xbf16>, vector<16x128xf32> -> vector<16x128xf32>
    %c0_65 = arith.constant 0 : index
    %c0_66 = arith.constant 0 : index
    %90 = vector.load %arg9[%c0_65, %c0_66] : memref<1x128xf32, #tpu.memory_space<vmem>>, vector<1x128xf32>
    %91 = vector.broadcast %90 : vector<1x128xf32> to vector<16x128xf32>
    %92 = arith.addf %89, %91 : vector<16x128xf32>
    %c0_67 = arith.constant 0 : index
    %c0_68 = arith.constant 0 : index
    %c0_69 = arith.constant 0 : index
    %93 = vector.load %arg10[%c0_67, %c0_68, %c0_69] : memref<1x16x128xf32, #tpu.memory_space<vmem>>, vector<1x16x128xf32>
    %94 = vector.shape_cast %93 : vector<1x16x128xf32> to vector<16x128xf32>
    %95 = vector.shape_cast %92 : vector<16x128xf32> to vector<1x16x128xf32>
    tpu.vector_store %arg10[%c0_67, %c0_68, %c0_69], %95 {strides = array<i32>} : memref<1x16x128xf32, #tpu.memory_space<vmem>>, vector<1x16x128xf32>,
    return
  }
  func.func @transform_0(%arg0: i32) -> (i32, i32, i32, i32) {
    %c0_i32 = arith.constant 0 : i32
    %c0_i32_0 = arith.constant 0 : i32
    %c0_i32_1 = arith.constant 0 : i32
    %c0_i32_2 = arith.constant 0 : i32
    return %arg0, %c0_i32, %c0_i32_0, %c0_i32_1 : i32, i32, i32, i32
  }
  func.func @transform_1(%arg0: i32) -> (i32, i32, i32) {
    %c0_i32 = arith.constant 0 : i32
    %c0_i32_0 = arith.constant 0 : i32
    %c0_i32_1 = arith.constant 0 : i32
    %c0_i32_2 = arith.constant 0 : i32
    return %c0_i32, %c0_i32_0, %c0_i32_1 : i32, i32, i32
  }
  func.func @transform_2(%arg0: i32) -> (i32, i32) {
    %c0_i32 = arith.constant 0 : i32
    %c0_i32_0 = arith.constant 0 : i32
    %c0_i32_1 = arith.constant 0 : i32
    return %c0_i32, %c0_i32_0 : i32, i32
  }
  func.func @transform_3(%arg0: i32) -> (i32, i32, i32) {
    %c0_i32 = arith.constant 0 : i32
    %c0_i32_0 = arith.constant 0 : i32
    %c0_i32_1 = arith.constant 0 : i32
    %c0_i32_2 = arith.constant 0 : i32
    return %c0_i32, %c0_i32_0, %c0_i32_1 : i32, i32, i32
  }
  func.func @transform_4(%arg0: i32) -> (i32, i32) {
    %c0_i32 = arith.constant 0 : i32
    %c0_i32_0 = arith.constant 0 : i32
    %c0_i32_1 = arith.constant 0 : i32
    return %c0_i32, %c0_i32_0 : i32, i32
  }
  func.func @transform_5(%arg0: i32) -> (i32, i32) {
    %c0_i32 = arith.constant 0 : i32
    %c0_i32_0 = arith.constant 0 : i32
    %c0_i32_1 = arith.constant 0 : i32
    return %c0_i32, %c0_i32_0 : i32, i32
  }
  func.func @transform_6(%arg0: i32) -> (i32, i32) {
    %c0_i32 = arith.constant 0 : i32
    %c0_i32_0 = arith.constant 0 : i32
    %c0_i32_1 = arith.constant 0 : i32
    return %c0_i32, %c0_i32_0 : i32, i32
  }
  func.func @transform_7(%arg0: i32) -> (i32, i32) {
    %c0_i32 = arith.constant 0 : i32
    %c0_i32_0 = arith.constant 0 : i32
    %c0_i32_1 = arith.constant 0 : i32
    return %c0_i32, %c0_i32_0 : i32, i32
  }
  func.func @transform_8(%arg0: i32) -> (i32, i32) {
    %c0_i32 = arith.constant 0 : i32
    %c0_i32_0 = arith.constant 0 : i32
    %c0_i32_1 = arith.constant 0 : i32
    return %c0_i32, %c0_i32_0 : i32, i32
  }
  func.func @transform_9(%arg0: i32) -> (i32, i32, i32) {
    %c0_i32 = arith.constant 0 : i32
    %c0_i32_0 = arith.constant 0 : i32
    %c0_i32_1 = arith.constant 0 : i32
    return %arg0, %c0_i32, %c0_i32_0 : i32, i32, i32
  }
}

</mosaic_0001>

<llo_original>
// kernel: tile.13
$region0: #{tile.13}
  #allocation0 [shape = 's32[1]{0}', space=sflag, size = 0x4, scoped, tag = 'scoped memory for tile.13']
  %s0 = inlined_call_operand.vmem [shape: f32[16], index: 0, kind: input, shape index: {}]
  %s1 = inlined_call_operand.vmem [shape: f32[16,16], index: 1, kind: output, shape index: {}]
  // Predicated region
  $region2: #{tile.13} parent=0 // pred_check
    _
  $region3: #{tile.13} parent=0 // pred_check_branch
    %3 = sbr.rel (0) target = $region5
  $region4: #{tile.13} parent=0 // pred_region
    _
  $region5: #{tile.13} parent=0 // pred_fallthru
    _
  %v4 = vld [vmem:[%s0] ss:$0 sm:$0xff]
  %5 = vst [vmem:[%s1] sm:$0xff] %v4
  %s6 = scalar_lea.vmem %s1, 8
  %7 = vst [vmem:[%s6] sm:$0xff] %v4

// kernel: tile.14
$region0: #{tile.14}
  %s0 = inlined_call_operand.vmem [shape: f32[16,16], index: 0, kind: input, shape index: {}]
  %s1 = inlined_call_operand.vmem [shape: f32[1,256], index: 1, kind: output, shape index: {}]
  $region1: #{tile.14} parent=0
    #allocation0 [shape = 'u8[8192]{0}', space=vmem, size = 0x2000, scoped, tag = 'scoped mem for output reshape']
    %s2 = smov 3
    %v3 = vld [vmem:[%s0] ss:$8 sm:%s2]
    %vm4 = vcmask 130048
    %5 = vst.msk [vmem:[#allocation0] ss:$8 sm:$0x3] %vm4, %v3
    %s6 = scalar_lea.vmem %s0, 7
    %s7 = smov 3
    %v8 = vld [vmem:[%s6] ss:$8 sm:%s7]
    %9 = vrot.lane.b32.xlu0 %v8, 112
    %v10 = vpop.permute.xlu0 %9
    %vm11 = vcmask 1048448
    %12 = vst.msk [vmem:[#allocation0] ss:$8 sm:$0x3] %vm11, %v10
    %s13 = scalar_lea.vmem %s0, 6
    %s14 = smov 3
    %v15 = vld [vmem:[%s13] ss:$8 sm:%s14]
    %16 = vrot.lane.b32.xlu0 %v15, 96
    %v17 = vpop.permute.xlu0 %16
    %vm18 = vcmask 917248
    %19 = vst.msk [vmem:[#allocation0] ss:$8 sm:$0x3] %vm18, %v17
    %s20 = scalar_lea.vmem %s0, 5
    %s21 = smov 3
    %v22 = vld [vmem:[%s20] ss:$8 sm:%s21]
    %23 = vrot.lane.b32.xlu0 %v22, 80
    %v24 = vpop.permute.xlu0 %23
    %vm25 = vcmask 786048
    %26 = vst.msk [vmem:[#allocation0] ss:$8 sm:$0x3] %vm25, %v24
    %s27 = scalar_lea.vmem %s0, 4
    %s28 = smov 3
    %v29 = vld [vmem:[%s27] ss:$8 sm:%s28]
    %30 = vrot.lane.b32.xlu0 %v29, 64
    %v31 = vpop.permute.xlu0 %30
    %vm32 = vcmask 654848
    %33 = vst.msk [vmem:[#allocation0] ss:$8 sm:$0x3] %vm32, %v31
    %s34 = scalar_lea.vmem %s0, 3
    %s35 = smov 3
    %v36 = vld [vmem:[%s34] ss:$8 sm:%s35]
    %37 = vrot.lane.b32.xlu0 %v36, 48
    %v38 = vpop.permute.xlu0 %37
    %vm39 = vcmask 523648
    %40 = vst.msk [vmem:[#allocation0] ss:$8 sm:$0x3] %vm39, %v38
    %s41 = scalar_lea.vmem %s0, 2
    %s42 = smov 3
    %v43 = vld [vmem:[%s41] ss:$8 sm:%s42]
    %44 = vrot.lane.b32.xlu0 %v43, 32
    %v45 = vpop.permute.xlu0 %44
    %vm46 = vcmask 392448
    %47 = vst.msk [vmem:[#allocation0] ss:$8 sm:$0x3] %vm46, %v45
    %s48 = scalar_lea.vmem %s0, 1
    %s49 = smov 3
    %v50 = vld [vmem:[%s48] ss:$8 sm:%s49]
    %51 = vrot.lane.b32.xlu0 %v50, 16
    %v52 = vpop.permute.xlu0 %51
    %vm53 = vcmask 261248
    %54 = vst.msk [vmem:[#allocation0] ss:$8 sm:$0x3] %vm53, %v52
    %s56 = ssub.s32 2, 1
    %v57 = vld [vmem:[#allocation0] sm:%s56]
    %s59 = ssub.s32 2, 1
    %60 = vst [vmem:[%s1] sm:%s59] %v57
    %s61 = scalar_lea.vmem [#allocation0], 8
    %v62 = vld [vmem:[%s61] sm:%s56]
    %s64 = ssub.s32 2, 1
    %s65 = scalar_lea.vmem %s1, 1
    %66 = vst [vmem:[%s65] sm:%s64] %v62

// kernel: tile.18
$region0: #{tile.18}
  #allocation0 [shape = 's32[1]{0}', space=sflag, size = 0x4, scoped, tag = 'scoped memory for tile.18']
  %s0 = inlined_call_operand.vmem [shape: f32[32], index: 0, kind: input, shape index: {}]
  %s1 = inlined_call_operand.vmem [shape: f32[8,32], index: 1, kind: output, shape index: {}]
  // Predicated region
  $region2: #{tile.18} parent=0 // pred_check
    _
  $region3: #{tile.18} parent=0 // pred_check_branch
    %3 = sbr.rel (0) target = $region5
  $region4: #{tile.18} parent=0 // pred_region
    _
  $region5: #{tile.18} parent=0 // pred_fallthru
    _
  %v4 = vld [vmem:[%s0] ss:$0 sm:$0xff]
  %5 = vst [vmem:[%s1] sm:$0xff] %v4

// kernel: tile.19
$region0: #{tile.19}
  %s0 = inlined_call_operand.vmem [shape: f32[8,32], index: 0, kind: input, shape index: {}]
  %s1 = inlined_call_operand.vmem [shape: f32[1,256], index: 1, kind: output, shape index: {}]
  $region1: #{tile.19} parent=0
    #allocation0 [shape = 'u8[8192]{0}', space=vmem, size = 0x2000, scoped, tag = 'scoped mem for output reshape']
    %s2 = smov 3
    %v3 = vld [vmem:[%s0] ss:$4 sm:%s2]
    %vm4 = vcmask 261120
    %5 = vst.msk [vmem:[#allocation0] ss:$8 sm:$0x3] %vm4, %v3
    %s6 = scalar_lea.vmem %s0, 3
    %s7 = smov 3
    %v8 = vld [vmem:[%s6] ss:$4 sm:%s7]
    %9 = vrot.lane.b32.xlu0 %v8, 96
    %v10 = vpop.permute.xlu0 %9
    %vm11 = vcmask 1048320
    %12 = vst.msk [vmem:[#allocation0] ss:$8 sm:$0x3] %vm11, %v10
    %s13 = scalar_lea.vmem %s0, 2
    %s14 = smov 3
    %v15 = vld [vmem:[%s13] ss:$4 sm:%s14]
    %16 = vrot.lane.b32.xlu0 %v15, 64
    %v17 = vpop.permute.xlu0 %16
    %vm18 = vcmask 785920
    %19 = vst.msk [vmem:[#allocation0] ss:$8 sm:$0x3] %vm18, %v17
    %s20 = scalar_lea.vmem %s0, 1
    %s21 = smov 3
    %v22 = vld [vmem:[%s20] ss:$4 sm:%s21]
    %23 = vrot.lane.b32.xlu0 %v22, 32
    %v24 = vpop.permute.xlu0 %23
    %vm25 = vcmask 523520
    %26 = vst.msk [vmem:[#allocation0] ss:$8 sm:$0x3] %vm25, %v24
    %s28 = ssub.s32 2, 1
    %v29 = vld [vmem:[#allocation0] sm:%s28]
    %s31 = ssub.s32 2, 1
    %32 = vst [vmem:[%s1] sm:%s31] %v29
    %s33 = scalar_lea.vmem [#allocation0], 8
    %v34 = vld [vmem:[%s33] sm:%s28]
    %s36 = ssub.s32 2, 1
    %s37 = scalar_lea.vmem %s1, 1
    %38 = vst [vmem:[%s37] sm:%s36] %v34

// kernel: forward_pallas.1
$region0: #{forward_pallas.1}
  #allocation0 [shape = 'u32[]', space=smem, size = 0x4, offset = 0x4, fixed_abs, tag = 'smem constant byte address 0x4 - core index']
  #allocation1 [shape = 'u32[72,128]{1,0:T(1,128)}', space=vmem, size = 0x9000, scoped, tag = 'internal scratch']
  #allocation2 [shape = 'bf16[10,16,128]{2,1,0:T(8,128)(2,1)}', space=vmem, size = 0xa000, scoped, tag = 'scratch operand']
  %s0 = inlined_call_operand.vmem [shape: bf16[1,18,16,128], index: 0, kind: input, shape index: {}]
  %s1 = inlined_call_operand.vmem [shape: bf16[3,128,256], index: 1, kind: input, shape index: {}]
  %s2 = inlined_call_operand.vmem [shape: f32[1,256], index: 2, kind: input, shape index: {}]
  %s3 = inlined_call_operand.vmem [shape: bf16[3,128,256], index: 3, kind: input, shape index: {}]
  %s4 = inlined_call_operand.vmem [shape: f32[1,256], index: 4, kind: input, shape index: {}]
  %s5 = inlined_call_operand.vmem [shape: bf16[512,256], index: 5, kind: input, shape index: {}]
  %s6 = inlined_call_operand.vmem [shape: f32[1,256], index: 6, kind: input, shape index: {}]
  %s7 = inlined_call_operand.vmem [shape: bf16[256,128], index: 7, kind: input, shape index: {}]
  %s8 = inlined_call_operand.vmem [shape: f32[1,128], index: 8, kind: input, shape index: {}]
  %s9 = inlined_call_operand.vmem [shape: f32[1,16,128], index: 9, kind: output, shape index: {}]
  %s10 = sld [smem:[#allocation0]]
  $region46: #{forward_pallas.1} parent=0
    _
  %s12 = ssub.s32 1, %s10
  %s13 = scalar_select 0, %s12, %s10
  // Predicated region
  $region2: #{forward_pallas.1} parent=0 // pred_check
    _
  $region3: #{forward_pallas.1} parent=0 // pred_check_branch
    %15 = sbr.rel (0) target = $region5
  $region4: #{forward_pallas.1} parent=0 // pred_region
    _
  $region5: #{forward_pallas.1} parent=0 // pred_fallthru
    _
  // Predicated region
  $region6: #{forward_pallas.1} parent=0 // pred_check
    _
  $region7: #{forward_pallas.1} parent=0 // pred_check_branch
    %17 = sbr.rel (0) target = $region9
  $region8: #{forward_pallas.1} parent=0 // pred_region
    _
  $region9: #{forward_pallas.1} parent=0 // pred_fallthru
    _
  // Predicated region
  $region10: #{forward_pallas.1} parent=0 // pred_check
    _
  $region11: #{forward_pallas.1} parent=0 // pred_check_branch
    %19 = sbr.rel (0) target = $region13
  $region12: #{forward_pallas.1} parent=0 // pred_region
    _
  $region13: #{forward_pallas.1} parent=0 // pred_fallthru
    _
  // Predicated region
  $region14: #{forward_pallas.1} parent=0 // pred_check
    _
  $region15: #{forward_pallas.1} parent=0 // pred_check_branch
    %21 = sbr.rel (0) target = $region17
  $region16: #{forward_pallas.1} parent=0 // pred_region
    _
  $region17: #{forward_pallas.1} parent=0 // pred_fallthru
    _
  // Predicated region
  $region18: #{forward_pallas.1} parent=0 // pred_check
    _
  $region19: #{forward_pallas.1} parent=0 // pred_check_branch
    %23 = sbr.rel (0) target = $region21
  $region20: #{forward_pallas.1} parent=0 // pred_region
    _
  $region21: #{forward_pallas.1} parent=0 // pred_fallthru
    _
  // Predicated region
  $region22: #{forward_pallas.1} parent=0 // pred_check
    _
  $region23: #{forward_pallas.1} parent=0 // pred_check_branch
    %25 = sbr.rel (0) target = $region25
  $region24: #{forward_pallas.1} parent=0 // pred_region
    _
  $region25: #{forward_pallas.1} parent=0 // pred_fallthru
    _
  // Predicated region
  $region26: #{forward_pallas.1} parent=0 // pred_check
    _
  $region27: #{forward_pallas.1} parent=0 // pred_check_branch
    %27 = sbr.rel (0) target = $region29
  $region28: #{forward_pallas.1} parent=0 // pred_region
    _
  $region29: #{forward_pallas.1} parent=0 // pred_fallthru
    _
  // Predicated region
  $region30: #{forward_pallas.1} parent=0 // pred_check
    _
  $region31: #{forward_pallas.1} parent=0 // pred_check_branch
    %29 = sbr.rel (0) target = $region33
  $region32: #{forward_pallas.1} parent=0 // pred_region
    _
  $region33: #{forward_pallas.1} parent=0 // pred_fallthru
    _
  // Predicated region
  $region34: #{forward_pallas.1} parent=0 // pred_check
    _
  $region35: #{forward_pallas.1} parent=0 // pred_check_branch
    %31 = sbr.rel (0) target = $region37
  $region36: #{forward_pallas.1} parent=0 // pred_region
    _
  $region37: #{forward_pallas.1} parent=0 // pred_fallthru
    _
  %v33 = vld [vmem:[%s0] sm:$0xf]
  %v34 = vld [vmem:[%s0 + $0x4] sm:$0xf]
  %v35 = vld [vmem:[%s0 + $0x8] sm:$0xf]
  %v36 = vld [vmem:[%s0 + $0xc] sm:$0xf]
  %v37 = vld [vmem:[%s0 + $0x10] sm:$0xf]
  %v38 = vld [vmem:[%s0 + $0x14] sm:$0xf]
  %v39 = vld [vmem:[%s0 + $0x18] sm:$0xf]
  %v40 = vld [vmem:[%s0 + $0x1c] sm:$0xf]
  %v41 = vld [vmem:[%s0 + $0x20] sm:$0xf]
  %v42 = vld [vmem:[%s0 + $0x24] sm:$0xf]
  %v43 = vld [vmem:[%s0 + $0x28] sm:$0xf]
  %v44 = vld [vmem:[%s0 + $0x2c] sm:$0xf]
  %v45 = vld [vmem:[%s0 + $0x30] sm:$0xf]
  %v46 = vld [vmem:[%s0 + $0x34] sm:$0xf]
  %v47 = vld [vmem:[%s0 + $0x38] sm:$0xf]
  %v48 = vld [vmem:[%s0 + $0x3c] sm:$0xf]
  %v49 = vld [vmem:[%s0 + $0x40] sm:$0xf]
  %v50 = vld [vmem:[%s0 + $0x44] sm:$0xf]
  %v51 = vld [vmem:[%s0 + $0x48] sm:$0xf]
  %v52 = vld [vmem:[%s0 + $0x4c] sm:$0xf]
  %v53 = vld [vmem:[%s0 + $0x50] sm:$0xf]
  %v54 = vld [vmem:[%s0 + $0x54] sm:$0xf]
  %v55 = vld [vmem:[%s0 + $0x58] sm:$0xf]
  %v56 = vld [vmem:[%s0 + $0x5c] sm:$0xf]
  %v57 = vld [vmem:[%s0 + $0x60] sm:$0xf]
  %v58 = vld [vmem:[%s0 + $0x64] sm:$0xf]
  %v59 = vld [vmem:[%s0 + $0x68] sm:$0xf]
  %v60 = vld [vmem:[%s0 + $0x6c] sm:$0xf]
  %v61 = vld [vmem:[%s0 + $0x70] sm:$0xf]
  %v62 = vld [vmem:[%s0 + $0x74] sm:$0xf]
  %v63 = vld [vmem:[%s0 + $0x78] sm:$0xf]
  %v64 = vld [vmem:[%s0 + $0x7c] sm:$0xf]
  %v65 = vld [vmem:[%s1] sm:$0xff]
  %v66 = vld [vmem:[%s1 + $0x8] sm:$0xff]
  %v67 = vld [vmem:[%s1 + $0x10] sm:$0xff]
  %v68 = vld [vmem:[%s1 + $0x18] sm:$0xff]
  %v69 = vld [vmem:[%s1 + $0x20] sm:$0xff]
  %v70 = vld [vmem:[%s1 + $0x28] sm:$0xff]
  %v71 = vld [vmem:[%s1 + $0x30] sm:$0xff]
  %v72 = vld [vmem:[%s1 + $0x38] sm:$0xff]
  %v73 = vld [vmem:[%s1 + $0x40] sm:$0xff]
  %v74 = vld [vmem:[%s1 + $0x48] sm:$0xff]
  %v75 = vld [vmem:[%s1 + $0x50] sm:$0xff]
  %v76 = vld [vmem:[%s1 + $0x58] sm:$0xff]
  %v77 = vld [vmem:[%s1 + $0x60] sm:$0xff]
  %v78 = vld [vmem:[%s1 + $0x68] sm:$0xff]
  %v79 = vld [vmem:[%s1 + $0x70] sm:$0xff]
  %v80 = vld [vmem:[%s1 + $0x78] sm:$0xff]
  %s81 = scalar_lea.vmem %s0, 8
  %v82 = vld [vmem:[%s81] sm:$0xf]
  %v83 = vld [vmem:[%s81 + $0x4] sm:$0xf]
  %v84 = vld [vmem:[%s81 + $0x8] sm:$0xf]
  %v85 = vld [vmem:[%s81 + $0xc] sm:$0xf]
  %v86 = vld [vmem:[%s81 + $0x10] sm:$0xf]
  %v87 = vld [vmem:[%s81 + $0x14] sm:$0xf]
  %v88 = vld [vmem:[%s81 + $0x18] sm:$0xf]
  %v89 = vld [vmem:[%s81 + $0x1c] sm:$0xf]
  %v90 = vld [vmem:[%s81 + $0x20] sm:$0xf]
  %v91 = vld [vmem:[%s81 + $0x24] sm:$0xf]
  %v92 = vld [vmem:[%s81 + $0x28] sm:$0xf]
  %v93 = vld [vmem:[%s81 + $0x2c] sm:$0xf]
  %v94 = vld [vmem:[%s81 + $0x30] sm:$0xf]
  %v95 = vld [vmem:[%s81 + $0x34] sm:$0xf]
  %v96 = vld [vmem:[%s81 + $0x38] sm:$0xf]
  %v97 = vld [vmem:[%s81 + $0x3c] sm:$0xf]
  %v98 = vld [vmem:[%s81 + $0x40] sm:$0xf]
  %v99 = vld [vmem:[%s81 + $0x44] sm:$0xf]
  %v100 = vld [vmem:[%s81 + $0x48] sm:$0xf]
  %v101 = vld [vmem:[%s81 + $0x4c] sm:$0xf]
  %v102 = vld [vmem:[%s81 + $0x50] sm:$0xf]
  %v103 = vld [vmem:[%s81 + $0x54] sm:$0xf]
  %v104 = vld [vmem:[%s81 + $0x58] sm:$0xf]
  %v105 = vld [vmem:[%s81 + $0x5c] sm:$0xf]
  %v106 = vld [vmem:[%s81 + $0x60] sm:$0xf]
  %v107 = vld [vmem:[%s81 + $0x64] sm:$0xf]
  %v108 = vld [vmem:[%s81 + $0x68] sm:$0xf]
  %v109 = vld [vmem:[%s81 + $0x6c] sm:$0xf]
  %v110 = vld [vmem:[%s81 + $0x70] sm:$0xf]
  %v111 = vld [vmem:[%s81 + $0x74] sm:$0xf]
  %v112 = vld [vmem:[%s81 + $0x78] sm:$0xf]
  %v113 = vld [vmem:[%s81 + $0x7c] sm:$0xf]
  %s114 = scalar_lea.vmem %s1, 128
  %v115 = vld [vmem:[%s114] sm:$0xff]
  %v116 = vld [vmem:[%s114 + $0x8] sm:$0xff]
  %v117 = vld [vmem:[%s114 + $0x10] sm:$0xff]
  %v118 = vld [vmem:[%s114 + $0x18] sm:$0xff]
  %v119 = vld [vmem:[%s114 + $0x20] sm:$0xff]
  %v120 = vld [vmem:[%s114 + $0x28] sm:$0xff]
  %v121 = vld [vmem:[%s114 + $0x30] sm:$0xff]
  %v122 = vld [vmem:[%s114 + $0x38] sm:$0xff]
  %v123 = vld [vmem:[%s114 + $0x40] sm:$0xff]
  %v124 = vld [vmem:[%s114 + $0x48] sm:$0xff]
  %v125 = vld [vmem:[%s114 + $0x50] sm:$0xff]
  %v126 = vld [vmem:[%s114 + $0x58] sm:$0xff]
  %v127 = vld [vmem:[%s114 + $0x60] sm:$0xff]
  %v128 = vld [vmem:[%s114 + $0x68] sm:$0xff]
  %v129 = vld [vmem:[%s114 + $0x70] sm:$0xff]
  %v130 = vld [vmem:[%s114 + $0x78] sm:$0xff]
  %v163 = vunpack.c.l.b16 %v82
  %v164 = vunpack.c.l.b16 %v83
  %v165 = vunpack.c.l.b16 %v84
  %v166 = vunpack.c.l.b16 %v85
  %v167 = vunpack.c.l.b16 %v86
  %v168 = vunpack.c.l.b16 %v87
  %v169 = vunpack.c.l.b16 %v88
  %v170 = vunpack.c.l.b16 %v89
  %v171 = vunpack.c.l.b16 %v90
  %v172 = vunpack.c.l.b16 %v91
  %v173 = vunpack.c.l.b16 %v92
  %v174 = vunpack.c.l.b16 %v93
  %v175 = vunpack.c.l.b16 %v94
  %v176 = vunpack.c.l.b16 %v95
  %v177 = vunpack.c.l.b16 %v96
  %v178 = vunpack.c.l.b16 %v97
  %v179 = vunpack.c.l.b16 %v98
  %v180 = vunpack.c.l.b16 %v99
  %v181 = vunpack.c.l.b16 %v100
  %v182 = vunpack.c.l.b16 %v101
  %v183 = vunpack.c.l.b16 %v102
  %v184 = vunpack.c.l.b16 %v103
  %v185 = vunpack.c.l.b16 %v104
  %v186 = vunpack.c.l.b16 %v105
  %v187 = vunpack.c.l.b16 %v106
  %v188 = vunpack.c.l.b16 %v107
  %v189 = vunpack.c.l.b16 %v108
  %v190 = vunpack.c.l.b16 %v109
  %v191 = vunpack.c.l.b16 %v110
  %v192 = vunpack.c.l.b16 %v111
  %v193 = vunpack.c.l.b16 %v112
  %v194 = vunpack.c.l.b16 %v113
  %v195 = vpack.c.b16 %v164, %v163
  %v196 = vpack.c.b16 %v166, %v165
  %v197 = vpack.c.b16 %v168, %v167
  %v198 = vpack.c.b16 %v170, %v169
  %v199 = vpack.c.b16 %v172, %v171
  %v200 = vpack.c.b16 %v174, %v173
  %v201 = vpack.c.b16 %v176, %v175
  %v202 = vpack.c.b16 %v178, %v177
  %v203 = vpack.c.b16 %v180, %v179
  %v204 = vpack.c.b16 %v182, %v181
  %v205 = vpack.c.b16 %v184, %v183
  %v206 = vpack.c.b16 %v186, %v185
  %v207 = vpack.c.b16 %v188, %v187
  %v208 = vpack.c.b16 %v190, %v189
  %v209 = vpack.c.b16 %v192, %v191
  %v210 = vpack.c.b16 %v194, %v193
  %v243 = vunpack.c.l.b16 %v115
  %v244 = vunpack.c.h.b16 %v115
  %v245 = vunpack.c.l.b16 %v116
  %v246 = vunpack.c.h.b16 %v116
  %v247 = vunpack.c.l.b16 %v117
  %v248 = vunpack.c.h.b16 %v117
  %v249 = vunpack.c.l.b16 %v118
  %v250 = vunpack.c.h.b16 %v118
  %v251 = vunpack.c.l.b16 %v119
  %v252 = vunpack.c.h.b16 %v119
  %v253 = vunpack.c.l.b16 %v120
  %v254 = vunpack.c.h.b16 %v120
  %v255 = vunpack.c.l.b16 %v121
  %v256 = vunpack.c.h.b16 %v121
  %v257 = vunpack.c.l.b16 %v122
  %v258 = vunpack.c.h.b16 %v122
  %v259 = vunpack.c.l.b16 %v123
  %v260 = vunpack.c.h.b16 %v123
  %v261 = vunpack.c.l.b16 %v124
  %v262 = vunpack.c.h.b16 %v124
  %v263 = vunpack.c.l.b16 %v125
  %v264 = vunpack.c.h.b16 %v125
  %v265 = vunpack.c.l.b16 %v126
  %v266 = vunpack.c.h.b16 %v126
  %v267 = vunpack.c.l.b16 %v127
  %v268 = vunpack.c.h.b16 %v127
  %v269 = vunpack.c.l.b16 %v128
  %v270 = vunpack.c.h.b16 %v128
  %v271 = vunpack.c.l.b16 %v129
  %v272 = vunpack.c.h.b16 %v129
  %v273 = vunpack.c.l.b16 %v130
  %v274 = vunpack.c.h.b16 %v130
  %v275 = vpack.c.b16 %v245, %v243
  %v276 = vpack.c.b16 %v246, %v244
  %v277 = vpack.c.b16 %v249, %v247
  %v278 = vpack.c.b16 %v250, %v248
  %v279 = vpack.c.b16 %v253, %v251
  %v280 = vpack.c.b16 %v254, %v252
  %v281 = vpack.c.b16 %v257, %v255
  %v282 = vpack.c.b16 %v258, %v256
  %v283 = vpack.c.b16 %v261, %v259
  %v284 = vpack.c.b16 %v262, %v260
  %v285 = vpack.c.b16 %v265, %v263
  %v286 = vpack.c.b16 %v266, %v264
  %v287 = vpack.c.b16 %v269, %v267
  %v288 = vpack.c.b16 %v270, %v268
  %v289 = vpack.c.b16 %v273, %v271
  %v290 = vpack.c.b16 %v274, %v272
  %307 = vmatpush.bf16.msra.mxu0 %v289
  %308 = vmatpush.bf16.msra.mxu0 %v287
  %309 = vmatpush.bf16.msra.mxu0 %v285
  %310 = vmatpush.bf16.msra.mxu0 %v283
  %311 = vmatpush.bf16.msra.mxu0 %v281
  %312 = vmatpush.bf16.msra.mxu0 %v279
  %313 = vmatpush.bf16.msra.mxu0 %v277
  %314 = vmatpush.bf16.msra.mxu0 %v275
  %315 = vmatmul.bf16.gmra.mxu0 %v195
  %v316 = vpop.f32.mrf.mxu0
  %v317 = vadd.f32 0.0, %v316
  %v318 = vpop.f32.mrf.mxu0
  %v319 = vadd.f32 0.0, %v318
  %320 = vmatmul.bf16.gmra.mxu0 %v196
  %v321 = vpop.f32.mrf.mxu0
  %v322 = vadd.f32 0.0, %v321
  %v323 = vpop.f32.mrf.mxu0
  %v324 = vadd.f32 0.0, %v323
  %325 = vmatmul.bf16.gmra.mxu0 %v197
  %v326 = vpop.f32.mrf.mxu0
  %v327 = vadd.f32 0.0, %v326
  %v328 = vpop.f32.mrf.mxu0
  %v329 = vadd.f32 0.0, %v328
  %330 = vmatmul.bf16.gmra.mxu0 %v198
  %v331 = vpop.f32.mrf.mxu0
  %v332 = vadd.f32 0.0, %v331
  %v333 = vpop.f32.mrf.mxu0
  %v334 = vadd.f32 0.0, %v333
  %335 = vmatmul.bf16.gmra.mxu0 %v199
  %v336 = vpop.f32.mrf.mxu0
  %v337 = vadd.f32 0.0, %v336
  %v338 = vpop.f32.mrf.mxu0
  %v339 = vadd.f32 0.0, %v338
  %340 = vmatmul.bf16.gmra.mxu0 %v200
  %v341 = vpop.f32.mrf.mxu0
  %v342 = vadd.f32 0.0, %v341
  %v343 = vpop.f32.mrf.mxu0
  %v344 = vadd.f32 0.0, %v343
  %345 = vmatmul.bf16.gmra.mxu0 %v201
  %v346 = vpop.f32.mrf.mxu0
  %v347 = vadd.f32 0.0, %v346
  %v348 = vpop.f32.mrf.mxu0
  %v349 = vadd.f32 0.0, %v348
  %350 = vmatmul.bf16.gmra.mxu0 %v202
  %v351 = vpop.f32.mrf.mxu0
  %v352 = vadd.f32 0.0, %v351
  %v353 = vpop.f32.mrf.mxu0
  %v354 = vadd.f32 0.0, %v353
  %355 = vmatmul.bf16.gmra.mxu0 %v203
  %v356 = vpop.f32.mrf.mxu0
  %v357 = vadd.f32 0.0, %v356
  %v358 = vpop.f32.mrf.mxu0
  %v359 = vadd.f32 0.0, %v358
  %360 = vmatmul.bf16.gmra.mxu0 %v204
  %v361 = vpop.f32.mrf.mxu0
  %v362 = vadd.f32 0.0, %v361
  %v363 = vpop.f32.mrf.mxu0
  %v364 = vadd.f32 0.0, %v363
  %365 = vmatmul.bf16.gmra.mxu0 %v205
  %v366 = vpop.f32.mrf.mxu0
  %v367 = vadd.f32 0.0, %v366
  %v368 = vpop.f32.mrf.mxu0
  %v369 = vadd.f32 0.0, %v368
  %370 = vmatmul.bf16.gmra.mxu0 %v206
  %v371 = vpop.f32.mrf.mxu0
  %v372 = vadd.f32 0.0, %v371
  %v373 = vpop.f32.mrf.mxu0
  %v374 = vadd.f32 0.0, %v373
  %375 = vmatmul.bf16.gmra.mxu0 %v207
  %v376 = vpop.f32.mrf.mxu0
  %v377 = vadd.f32 0.0, %v376
  %v378 = vpop.f32.mrf.mxu0
  %v379 = vadd.f32 0.0, %v378
  %380 = vmatmul.bf16.gmra.mxu0 %v208
  %v381 = vpop.f32.mrf.mxu0
  %v382 = vadd.f32 0.0, %v381
  %v383 = vpop.f32.mrf.mxu0
  %v384 = vadd.f32 0.0, %v383
  %385 = vmatmul.bf16.gmra.mxu0 %v209
  %v386 = vpop.f32.mrf.mxu0
  %v387 = vadd.f32 0.0, %v386
  %v388 = vpop.f32.mrf.mxu0
  %v389 = vadd.f32 0.0, %v388
  %390 = vmatmul.bf16.gmra.mxu0 %v210
  %v391 = vpop.f32.mrf.mxu0
  %v392 = vadd.f32 0.0, %v391
  %v393 = vpop.f32.mrf.mxu0
  %v394 = vadd.f32 0.0, %v393
  %395 = vdwg.mxu0
  %396 = vmatpush.bf16.msra.mxu0 %v290
  %397 = vmatpush.bf16.msra.mxu0 %v288
  %398 = vmatpush.bf16.msra.mxu0 %v286
  %399 = vmatpush.bf16.msra.mxu0 %v284
  %400 = vmatpush.bf16.msra.mxu0 %v282
  %401 = vmatpush.bf16.msra.mxu0 %v280
  %402 = vmatpush.bf16.msra.mxu0 %v278
  %403 = vmatpush.bf16.msra.mxu0 %v276
  %404 = vmatmul.bf16.gmra.mxu0 %v195
  %v405 = vpop.f32.mrf.mxu0
  %v406 = vadd.f32 0.0, %v405
  %v407 = vpop.f32.mrf.mxu0
  %v408 = vadd.f32 0.0, %v407
  %409 = vmatmul.bf16.gmra.mxu0 %v196
  %v410 = vpop.f32.mrf.mxu0
  %v411 = vadd.f32 0.0, %v410
  %v412 = vpop.f32.mrf.mxu0
  %v413 = vadd.f32 0.0, %v412
  %414 = vmatmul.bf16.gmra.mxu0 %v197
  %v415 = vpop.f32.mrf.mxu0
  %v416 = vadd.f32 0.0, %v415
  %v417 = vpop.f32.mrf.mxu0
  %v418 = vadd.f32 0.0, %v417
  %419 = vmatmul.bf16.gmra.mxu0 %v198
  %v420 = vpop.f32.mrf.mxu0
  %v421 = vadd.f32 0.0, %v420
  %v422 = vpop.f32.mrf.mxu0
  %v423 = vadd.f32 0.0, %v422
  %424 = vmatmul.bf16.gmra.mxu0 %v199
  %v425 = vpop.f32.mrf.mxu0
  %v426 = vadd.f32 0.0, %v425
  %v427 = vpop.f32.mrf.mxu0
  %v428 = vadd.f32 0.0, %v427
  %429 = vmatmul.bf16.gmra.mxu0 %v200
  %v430 = vpop.f32.mrf.mxu0
  %v431 = vadd.f32 0.0, %v430
  %v432 = vpop.f32.mrf.mxu0
  %v433 = vadd.f32 0.0, %v432
  %434 = vmatmul.bf16.gmra.mxu0 %v201
  %v435 = vpop.f32.mrf.mxu0
  %v436 = vadd.f32 0.0, %v435
  %v437 = vpop.f32.mrf.mxu0
  %v438 = vadd.f32 0.0, %v437
  %439 = vmatmul.bf16.gmra.mxu0 %v202
  %v440 = vpop.f32.mrf.mxu0
  %v441 = vadd.f32 0.0, %v440
  %v442 = vpop.f32.mrf.mxu0
  %v443 = vadd.f32 0.0, %v442
  %444 = vmatmul.bf16.gmra.mxu0 %v203
  %v445 = vpop.f32.mrf.mxu0
  %v446 = vadd.f32 0.0, %v445
  %v447 = vpop.f32.mrf.mxu0
  %v448 = vadd.f32 0.0, %v447
  %449 = vmatmul.bf16.gmra.mxu0 %v204
  %v450 = vpop.f32.mrf.mxu0
  %v451 = vadd.f32 0.0, %v450
  %v452 = vpop.f32.mrf.mxu0
  %v453 = vadd.f32 0.0, %v452
  %454 = vmatmul.bf16.gmra.mxu0 %v205
  %v455 = vpop.f32.mrf.mxu0
  %v456 = vadd.f32 0.0, %v455
  %v457 = vpop.f32.mrf.mxu0
  %v458 = vadd.f32 0.0, %v457
  %459 = vmatmul.bf16.gmra.mxu0 %v206
  %v460 = vpop.f32.mrf.mxu0
  %v461 = vadd.f32 0.0, %v460
  %v462 = vpop.f32.mrf.mxu0
  %v463 = vadd.f32 0.0, %v462
  %464 = vmatmul.bf16.gmra.mxu0 %v207
  %v465 = vpop.f32.mrf.mxu0
  %v466 = vadd.f32 0.0, %v465
  %v467 = vpop.f32.mrf.mxu0
  %v468 = vadd.f32 0.0, %v467
  %469 = vmatmul.bf16.gmra.mxu0 %v208
  %v470 = vpop.f32.mrf.mxu0
  %v471 = vadd.f32 0.0, %v470
  %v472 = vpop.f32.mrf.mxu0
  %v473 = vadd.f32 0.0, %v472
  %474 = vmatmul.bf16.gmra.mxu0 %v209
  %v475 = vpop.f32.mrf.mxu0
  %v476 = vadd.f32 0.0, %v475
  %v477 = vpop.f32.mrf.mxu0
  %v478 = vadd.f32 0.0, %v477
  %479 = vmatmul.bf16.gmra.mxu0 %v210
  %v480 = vpop.f32.mrf.mxu0
  %v481 = vadd.f32 0.0, %v480
  %v482 = vpop.f32.mrf.mxu0
  %v483 = vadd.f32 0.0, %v482
  %484 = vdwg.mxu0
  %v517 = vunpack.c.l.b16 %v33
  %v518 = vunpack.c.l.b16 %v34
  %v519 = vunpack.c.l.b16 %v35
  %v520 = vunpack.c.l.b16 %v36
  %v521 = vunpack.c.l.b16 %v37
  %v522 = vunpack.c.l.b16 %v38
  %v523 = vunpack.c.l.b16 %v39
  %v524 = vunpack.c.l.b16 %v40
  %v525 = vunpack.c.l.b16 %v41
  %v526 = vunpack.c.l.b16 %v42
  %v527 = vunpack.c.l.b16 %v43
  %v528 = vunpack.c.l.b16 %v44
  %v529 = vunpack.c.l.b16 %v45
  %v530 = vunpack.c.l.b16 %v46
  %v531 = vunpack.c.l.b16 %v47
  %v532 = vunpack.c.l.b16 %v48
  %v533 = vunpack.c.l.b16 %v49
  %v534 = vunpack.c.l.b16 %v50
  %v535 = vunpack.c.l.b16 %v51
  %v536 = vunpack.c.l.b16 %v52
  %v537 = vunpack.c.l.b16 %v53
  %v538 = vunpack.c.l.b16 %v54
  %v539 = vunpack.c.l.b16 %v55
  %v540 = vunpack.c.l.b16 %v56
  %v541 = vunpack.c.l.b16 %v57
  %v542 = vunpack.c.l.b16 %v58
  %v543 = vunpack.c.l.b16 %v59
  %v544 = vunpack.c.l.b16 %v60
  %v545 = vunpack.c.l.b16 %v61
  %v546 = vunpack.c.l.b16 %v62
  %v547 = vunpack.c.l.b16 %v63
  %v548 = vunpack.c.l.b16 %v64
  %v549 = vpack.c.b16 %v518, %v517
  %v550 = vpack.c.b16 %v520, %v519
  %v551 = vpack.c.b16 %v522, %v521
  %v552 = vpack.c.b16 %v524, %v523
  %v553 = vpack.c.b16 %v526, %v525
  %v554 = vpack.c.b16 %v528, %v527
  %v555 = vpack.c.b16 %v530, %v529
  %v556 = vpack.c.b16 %v532, %v531
  %v557 = vpack.c.b16 %v534, %v533
  %v558 = vpack.c.b16 %v536, %v535
  %v559 = vpack.c.b16 %v538, %v537
  %v560 = vpack.c.b16 %v540, %v539
  %v561 = vpack.c.b16 %v542, %v541
  %v562 = vpack.c.b16 %v544, %v543
  %v563 = vpack.c.b16 %v546, %v545
  %v564 = vpack.c.b16 %v548, %v547
  %v597 = vunpack.c.l.b16 %v65
  %v598 = vunpack.c.h.b16 %v65
  %v599 = vunpack.c.l.b16 %v66
  %v600 = vunpack.c.h.b16 %v66
  %v601 = vunpack.c.l.b16 %v67
  %v602 = vunpack.c.h.b16 %v67
  %v603 = vunpack.c.l.b16 %v68
  %v604 = vunpack.c.h.b16 %v68
  %v605 = vunpack.c.l.b16 %v69
  %v606 = vunpack.c.h.b16 %v69
  %v607 = vunpack.c.l.b16 %v70
  %v608 = vunpack.c.h.b16 %v70
  %v609 = vunpack.c.l.b16 %v71
  %v610 = vunpack.c.h.b16 %v71
  %v611 = vunpack.c.l.b16 %v72
  %v612 = vunpack.c.h.b16 %v72
  %v613 = vunpack.c.l.b16 %v73
  %v614 = vunpack.c.h.b16 %v73
  %v615 = vunpack.c.l.b16 %v74
  %v616 = vunpack.c.h.b16 %v74
  %v617 = vunpack.c.l.b16 %v75
  %v618 = vunpack.c.h.b16 %v75
  %v619 = vunpack.c.l.b16 %v76
  %v620 = vunpack.c.h.b16 %v76
  %v621 = vunpack.c.l.b16 %v77
  %v622 = vunpack.c.h.b16 %v77
  %v623 = vunpack.c.l.b16 %v78
  %v624 = vunpack.c.h.b16 %v78
  %v625 = vunpack.c.l.b16 %v79
  %v626 = vunpack.c.h.b16 %v79
  %v627 = vunpack.c.l.b16 %v80
  %v628 = vunpack.c.h.b16 %v80
  %v629 = vpack.c.b16 %v599, %v597
  %v630 = vpack.c.b16 %v600, %v598
  %v631 = vpack.c.b16 %v603, %v601
  %v632 = vpack.c.b16 %v604, %v602
  %v633 = vpack.c.b16 %v607, %v605
  %v634 = vpack.c.b16 %v608, %v606
  %v635 = vpack.c.b16 %v611, %v609
  %v636 = vpack.c.b16 %v612, %v610
  %v637 = vpack.c.b16 %v615, %v613
  %v638 = vpack.c.b16 %v616, %v614
  %v639 = vpack.c.b16 %v619, %v617
  %v640 = vpack.c.b16 %v620, %v618
  %v641 = vpack.c.b16 %v623, %v621
  %v642 = vpack.c.b16 %v624, %v622
  %v643 = vpack.c.b16 %v627, %v625
  %v644 = vpack.c.b16 %v628, %v626
  %661 = vmatpush.bf16.msra.mxu0 %v643
  %662 = vmatpush.bf16.msra.mxu0 %v641
  %663 = vmatpush.bf16.msra.mxu0 %v639
  %664 = vmatpush.bf16.msra.mxu0 %v637
  %665 = vmatpush.bf16.msra.mxu0 %v635
  %666 = vmatpush.bf16.msra.mxu0 %v633
  %667 = vmatpush.bf16.msra.mxu0 %v631
  %668 = vmatpush.bf16.msra.mxu0 %v629
  %669 = vmatmul.bf16.gmra.mxu0 %v549
  %v670 = vpop.f32.mrf.mxu0
  %v671 = vadd.f32 %v317, %v670
  %v672 = vpop.f32.mrf.mxu0
  %v673 = vadd.f32 %v319, %v672
  %674 = vmatmul.bf16.gmra.mxu0 %v550
  %v675 = vpop.f32.mrf.mxu0
  %v676 = vadd.f32 %v322, %v675
  %v677 = vpop.f32.mrf.mxu0
  %v678 = vadd.f32 %v324, %v677
  %679 = vmatmul.bf16.gmra.mxu0 %v551
  %v680 = vpop.f32.mrf.mxu0
  %v681 = vadd.f32 %v327, %v680
  %v682 = vpop.f32.mrf.mxu0
  %v683 = vadd.f32 %v329, %v682
  %684 = vmatmul.bf16.gmra.mxu0 %v552
  %v685 = vpop.f32.mrf.mxu0
  %v686 = vadd.f32 %v332, %v685
  %v687 = vpop.f32.mrf.mxu0
  %v688 = vadd.f32 %v334, %v687
  %689 = vmatmul.bf16.gmra.mxu0 %v553
  %v690 = vpop.f32.mrf.mxu0
  %v691 = vadd.f32 %v337, %v690
  %v692 = vpop.f32.mrf.mxu0
  %v693 = vadd.f32 %v339, %v692
  %694 = vmatmul.bf16.gmra.mxu0 %v554
  %v695 = vpop.f32.mrf.mxu0
  %v696 = vadd.f32 %v342, %v695
  %v697 = vpop.f32.mrf.mxu0
  %v698 = vadd.f32 %v344, %v697
  %699 = vmatmul.bf16.gmra.mxu0 %v555
  %v700 = vpop.f32.mrf.mxu0
  %v701 = vadd.f32 %v347, %v700
  %v702 = vpop.f32.mrf.mxu0
  %v703 = vadd.f32 %v349, %v702
  %704 = vmatmul.bf16.gmra.mxu0 %v556
  %v705 = vpop.f32.mrf.mxu0
  %v706 = vadd.f32 %v352, %v705
  %v707 = vpop.f32.mrf.mxu0
  %v708 = vadd.f32 %v354, %v707
  %709 = vmatmul.bf16.gmra.mxu0 %v557
  %v710 = vpop.f32.mrf.mxu0
  %v711 = vadd.f32 %v357, %v710
  %v712 = vpop.f32.mrf.mxu0
  %v713 = vadd.f32 %v359, %v712
  %714 = vmatmul.bf16.gmra.mxu0 %v558
  %v715 = vpop.f32.mrf.mxu0
  %v716 = vadd.f32 %v362, %v715
  %v717 = vpop.f32.mrf.mxu0
  %v718 = vadd.f32 %v364, %v717
  %719 = vmatmul.bf16.gmra.mxu0 %v559
  %v720 = vpop.f32.mrf.mxu0
  %v721 = vadd.f32 %v367, %v720
  %v722 = vpop.f32.mrf.mxu0
  %v723 = vadd.f32 %v369, %v722
  %724 = vmatmul.bf16.gmra.mxu0 %v560
  %v725 = vpop.f32.mrf.mxu0
  %v726 = vadd.f32 %v372, %v725
  %v727 = vpop.f32.mrf.mxu0
  %v728 = vadd.f32 %v374, %v727
  %729 = vmatmul.bf16.gmra.mxu0 %v561
  %v730 = vpop.f32.mrf.mxu0
  %v731 = vadd.f32 %v377, %v730
  %v732 = vpop.f32.mrf.mxu0
  %v733 = vadd.f32 %v379, %v732
  %734 = vmatmul.bf16.gmra.mxu0 %v562
  %v735 = vpop.f32.mrf.mxu0
  %v736 = vadd.f32 %v382, %v735
  %v737 = vpop.f32.mrf.mxu0
  %v738 = vadd.f32 %v384, %v737
  %739 = vmatmul.bf16.gmra.mxu0 %v563
  %v740 = vpop.f32.mrf.mxu0
  %v741 = vadd.f32 %v387, %v740
  %v742 = vpop.f32.mrf.mxu0
  %v743 = vadd.f32 %v389, %v742
  %744 = vmatmul.bf16.gmra.mxu0 %v564
  %v745 = vpop.f32.mrf.mxu0
  %v746 = vadd.f32 %v392, %v745
  %v747 = vpop.f32.mrf.mxu0
  %v748 = vadd.f32 %v394, %v747
  %749 = vdwg.mxu0
  %750 = vmatpush.bf16.msra.mxu0 %v644
  %751 = vmatpush.bf16.msra.mxu0 %v642
  %752 = vmatpush.bf16.msra.mxu0 %v640
  %753 = vmatpush.bf16.msra.mxu0 %v638
  %754 = vmatpush.bf16.msra.mxu0 %v636
  %755 = vmatpush.bf16.msra.mxu0 %v634
  %756 = vmatpush.bf16.msra.mxu0 %v632
  %757 = vmatpush.bf16.msra.mxu0 %v630
  %758 = vmatmul.bf16.gmra.mxu0 %v549
  %v759 = vpop.f32.mrf.mxu0
  %v760 = vadd.f32 %v406, %v759
  %v761 = vpop.f32.mrf.mxu0
  %v762 = vadd.f32 %v408, %v761
  %763 = vmatmul.bf16.gmra.mxu0 %v550
  %v764 = vpop.f32.mrf.mxu0
  %v765 = vadd.f32 %v411, %v764
  %v766 = vpop.f32.mrf.mxu0
  %v767 = vadd.f32 %v413, %v766
  %768 = vmatmul.bf16.gmra.mxu0 %v551
  %v769 = vpop.f32.mrf.mxu0
  %v770 = vadd.f32 %v416, %v769
  %v771 = vpop.f32.mrf.mxu0
  %v772 = vadd.f32 %v418, %v771
  %773 = vmatmul.bf16.gmra.mxu0 %v552
  %v774 = vpop.f32.mrf.mxu0
  %v775 = vadd.f32 %v421, %v774
  %v776 = vpop.f32.mrf.mxu0
  %v777 = vadd.f32 %v423, %v776
  %778 = vmatmul.bf16.gmra.mxu0 %v553
  %v779 = vpop.f32.mrf.mxu0
  %v780 = vadd.f32 %v426, %v779
  %v781 = vpop.f32.mrf.mxu0
  %v782 = vadd.f32 %v428, %v781
  %783 = vmatmul.bf16.gmra.mxu0 %v554
  %v784 = vpop.f32.mrf.mxu0
  %v785 = vadd.f32 %v431, %v784
  %v786 = vpop.f32.mrf.mxu0
  %v787 = vadd.f32 %v433, %v786
  %788 = vmatmul.bf16.gmra.mxu0 %v555
  %v789 = vpop.f32.mrf.mxu0
  %v790 = vadd.f32 %v436, %v789
  %v791 = vpop.f32.mrf.mxu0
  %v792 = vadd.f32 %v438, %v791
  %793 = vmatmul.bf16.gmra.mxu0 %v556
  %v794 = vpop.f32.mrf.mxu0
  %v795 = vadd.f32 %v441, %v794
  %v796 = vpop.f32.mrf.mxu0
  %v797 = vadd.f32 %v443, %v796
  %798 = vmatmul.bf16.gmra.mxu0 %v557
  %v799 = vpop.f32.mrf.mxu0
  %v800 = vadd.f32 %v446, %v799
  %v801 = vpop.f32.mrf.mxu0
  %v802 = vadd.f32 %v448, %v801
  %803 = vmatmul.bf16.gmra.mxu0 %v558
  %v804 = vpop.f32.mrf.mxu0
  %v805 = vadd.f32 %v451, %v804
  %v806 = vpop.f32.mrf.mxu0
  %v807 = vadd.f32 %v453, %v806
  %808 = vmatmul.bf16.gmra.mxu0 %v559
  %v809 = vpop.f32.mrf.mxu0
  %v810 = vadd.f32 %v456, %v809
  %v811 = vpop.f32.mrf.mxu0
  %v812 = vadd.f32 %v458, %v811
  %813 = vmatmul.bf16.gmra.mxu0 %v560
  %v814 = vpop.f32.mrf.mxu0
  %v815 = vadd.f32 %v461, %v814
  %v816 = vpop.f32.mrf.mxu0
  %v817 = vadd.f32 %v463, %v816
  %818 = vmatmul.bf16.gmra.mxu0 %v561
  %v819 = vpop.f32.mrf.mxu0
  %v820 = vadd.f32 %v466, %v819
  %v821 = vpop.f32.mrf.mxu0
  %v822 = vadd.f32 %v468, %v821
  %823 = vmatmul.bf16.gmra.mxu0 %v562
  %v824 = vpop.f32.mrf.mxu0
  %v825 = vadd.f32 %v471, %v824
  %v826 = vpop.f32.mrf.mxu0
  %v827 = vadd.f32 %v473, %v826
  %828 = vmatmul.bf16.gmra.mxu0 %v563
  %v829 = vpop.f32.mrf.mxu0
  %v830 = vadd.f32 %v476, %v829
  %v831 = vpop.f32.mrf.mxu0
  %v832 = vadd.f32 %v478, %v831
  %833 = vmatmul.bf16.gmra.mxu0 %v564
  %v834 = vpop.f32.mrf.mxu0
  %v835 = vadd.f32 %v481, %v834
  %v836 = vpop.f32.mrf.mxu0
  %v837 = vadd.f32 %v483, %v836
  %838 = vdwg.mxu0
  %s839 = scalar_lea.vmem %s0, 16
  %v840 = vld [vmem:[%s839] sm:$0xf]
  %v841 = vld [vmem:[%s839 + $0x4] sm:$0xf]
  %v842 = vld [vmem:[%s839 + $0x8] sm:$0xf]
  %v843 = vld [vmem:[%s839 + $0xc] sm:$0xf]
  %v844 = vld [vmem:[%s839 + $0x10] sm:$0xf]
  %v845 = vld [vmem:[%s839 + $0x14] sm:$0xf]
  %v846 = vld [vmem:[%s839 + $0x18] sm:$0xf]
  %v847 = vld [vmem:[%s839 + $0x1c] sm:$0xf]
  %v848 = vld [vmem:[%s839 + $0x20] sm:$0xf]
  %v849 = vld [vmem:[%s839 + $0x24] sm:$0xf]
  %v850 = vld [vmem:[%s839 + $0x28] sm:$0xf]
  %v851 = vld [vmem:[%s839 + $0x2c] sm:$0xf]
  %v852 = vld [vmem:[%s839 + $0x30] sm:$0xf]
  %v853 = vld [vmem:[%s839 + $0x34] sm:$0xf]
  %v854 = vld [vmem:[%s839 + $0x38] sm:$0xf]
  %v855 = vld [vmem:[%s839 + $0x3c] sm:$0xf]
  %v856 = vld [vmem:[%s839 + $0x40] sm:$0xf]
  %v857 = vld [vmem:[%s839 + $0x44] sm:$0xf]
  %v858 = vld [vmem:[%s839 + $0x48] sm:$0xf]
  %v859 = vld [vmem:[%s839 + $0x4c] sm:$0xf]
  %v860 = vld [vmem:[%s839 + $0x50] sm:$0xf]
  %v861 = vld [vmem:[%s839 + $0x54] sm:$0xf]
  %v862 = vld [vmem:[%s839 + $0x58] sm:$0xf]
  %v863 = vld [vmem:[%s839 + $0x5c] sm:$0xf]
  %v864 = vld [vmem:[%s839 + $0x60] sm:$0xf]
  %v865 = vld [vmem:[%s839 + $0x64] sm:$0xf]
  %v866 = vld [vmem:[%s839 + $0x68] sm:$0xf]
  %v867 = vld [vmem:[%s839 + $0x6c] sm:$0xf]
  %v868 = vld [vmem:[%s839 + $0x70] sm:$0xf]
  %v869 = vld [vmem:[%s839 + $0x74] sm:$0xf]
  %v870 = vld [vmem:[%s839 + $0x78] sm:$0xf]
  %v871 = vld [vmem:[%s839 + $0x7c] sm:$0xf]
  %s872 = scalar_lea.vmem %s1, 256
  %v873 = vld [vmem:[%s872] sm:$0xff]
  %v874 = vld [vmem:[%s872 + $0x8] sm:$0xff]
  %v875 = vld [vmem:[%s872 + $0x10] sm:$0xff]
  %v876 = vld [vmem:[%s872 + $0x18] sm:$0xff]
  %v877 = vld [vmem:[%s872 + $0x20] sm:$0xff]
  %v878 = vld [vmem:[%s872 + $0x28] sm:$0xff]
  %v879 = vld [vmem:[%s872 + $0x30] sm:$0xff]
  %v880 = vld [vmem:[%s872 + $0x38] sm:$0xff]
  %v881 = vld [vmem:[%s872 + $0x40] sm:$0xff]
  %v882 = vld [vmem:[%s872 + $0x48] sm:$0xff]
  %v883 = vld [vmem:[%s872 + $0x50] sm:$0xff]
  %v884 = vld [vmem:[%s872 + $0x58] sm:$0xff]
  %v885 = vld [vmem:[%s872 + $0x60] sm:$0xff]
  %v886 = vld [vmem:[%s872 + $0x68] sm:$0xff]
  %v887 = vld [vmem:[%s872 + $0x70] sm:$0xff]
  %v888 = vld [vmem:[%s872 + $0x78] sm:$0xff]
  %v921 = vunpack.c.l.b16 %v840
  %v922 = vunpack.c.l.b16 %v841
  %v923 = vunpack.c.l.b16 %v842
  %v924 = vunpack.c.l.b16 %v843
  %v925 = vunpack.c.l.b16 %v844
  %v926 = vunpack.c.l.b16 %v845
  %v927 = vunpack.c.l.b16 %v846
  %v928 = vunpack.c.l.b16 %v847
  %v929 = vunpack.c.l.b16 %v848
  %v930 = vunpack.c.l.b16 %v849
  %v931 = vunpack.c.l.b16 %v850
  %v932 = vunpack.c.l.b16 %v851
  %v933 = vunpack.c.l.b16 %v852
  %v934 = vunpack.c.l.b16 %v853
  %v935 = vunpack.c.l.b16 %v854
  %v936 = vunpack.c.l.b16 %v855
  %v937 = vunpack.c.l.b16 %v856
  %v938 = vunpack.c.l.b16 %v857
  %v939 = vunpack.c.l.b16 %v858
  %v940 = vunpack.c.l.b16 %v859
  %v941 = vunpack.c.l.b16 %v860
  %v942 = vunpack.c.l.b16 %v861
  %v943 = vunpack.c.l.b16 %v862
  %v944 = vunpack.c.l.b16 %v863
  %v945 = vunpack.c.l.b16 %v864
  %v946 = vunpack.c.l.b16 %v865
  %v947 = vunpack.c.l.b16 %v866
  %v948 = vunpack.c.l.b16 %v867
  %v949 = vunpack.c.l.b16 %v868
  %v950 = vunpack.c.l.b16 %v869
  %v951 = vunpack.c.l.b16 %v870
  %v952 = vunpack.c.l.b16 %v871
  %v953 = vpack.c.b16 %v922, %v921
  %v954 = vpack.c.b16 %v924, %v923
  %v955 = vpack.c.b16 %v926, %v925
  %v956 = vpack.c.b16 %v928, %v927
  %v957 = vpack.c.b16 %v930, %v929
  %v958 = vpack.c.b16 %v932, %v931
  %v959 = vpack.c.b16 %v934, %v933
  %v960 = vpack.c.b16 %v936, %v935
  %v961 = vpack.c.b16 %v938, %v937
  %v962 = vpack.c.b16 %v940, %v939
  %v963 = vpack.c.b16 %v942, %v941
  %v964 = vpack.c.b16 %v944, %v943
  %v965 = vpack.c.b16 %v946, %v945
  %v966 = vpack.c.b16 %v948, %v947
  %v967 = vpack.c.b16 %v950, %v949
  %v968 = vpack.c.b16 %v952, %v951
  %v1001 = vunpack.c.l.b16 %v873
  %v1002 = vunpack.c.h.b16 %v873
  %v1003 = vunpack.c.l.b16 %v874
  %v1004 = vunpack.c.h.b16 %v874
  %v1005 = vunpack.c.l.b16 %v875
  %v1006 = vunpack.c.h.b16 %v875
  %v1007 = vunpack.c.l.b16 %v876
  %v1008 = vunpack.c.h.b16 %v876
  %v1009 = vunpack.c.l.b16 %v877
  %v1010 = vunpack.c.h.b16 %v877
  %v1011 = vunpack.c.l.b16 %v878
  %v1012 = vunpack.c.h.b16 %v878
  %v1013 = vunpack.c.l.b16 %v879
  %v1014 = vunpack.c.h.b16 %v879
  %v1015 = vunpack.c.l.b16 %v880
  %v1016 = vunpack.c.h.b16 %v880
  %v1017 = vunpack.c.l.b16 %v881
  %v1018 = vunpack.c.h.b16 %v881
  %v1019 = vunpack.c.l.b16 %v882
  %v1020 = vunpack.c.h.b16 %v882
  %v1021 = vunpack.c.l.b16 %v883
  %v1022 = vunpack.c.h.b16 %v883
  %v1023 = vunpack.c.l.b16 %v884
  %v1024 = vunpack.c.h.b16 %v884
  %v1025 = vunpack.c.l.b16 %v885
  %v1026 = vunpack.c.h.b16 %v885
  %v1027 = vunpack.c.l.b16 %v886
  %v1028 = vunpack.c.h.b16 %v886
  %v1029 = vunpack.c.l.b16 %v887
  %v1030 = vunpack.c.h.b16 %v887
  %v1031 = vunpack.c.l.b16 %v888
  %v1032 = vunpack.c.h.b16 %v888
  %v1033 = vpack.c.b16 %v1003, %v1001
  %v1034 = vpack.c.b16 %v1004, %v1002
  %v1035 = vpack.c.b16 %v1007, %v1005
  %v1036 = vpack.c.b16 %v1008, %v1006
  %v1037 = vpack.c.b16 %v1011, %v1009
  %v1038 = vpack.c.b16 %v1012, %v1010
  %v1039 = vpack.c.b16 %v1015, %v1013
  %v1040 = vpack.c.b16 %v1016, %v1014
  %v1041 = vpack.c.b16 %v1019, %v1017
  %v1042 = vpack.c.b16 %v1020, %v1018
  %v1043 = vpack.c.b16 %v1023, %v1021
  %v1044 = vpack.c.b16 %v1024, %v1022
  %v1045 = vpack.c.b16 %v1027, %v1025
  %v1046 = vpack.c.b16 %v1028, %v1026
  %v1047 = vpack.c.b16 %v1031, %v1029
  %v1048 = vpack.c.b16 %v1032, %v1030
  %1065 = vmatpush.bf16.msra.mxu0 %v1047
  %1066 = vmatpush.bf16.msra.mxu0 %v1045
  %1067 = vmatpush.bf16.msra.mxu0 %v1043
  %1068 = vmatpush.bf16.msra.mxu0 %v1041
  %1069 = vmatpush.bf16.msra.mxu0 %v1039
  %1070 = vmatpush.bf16.msra.mxu0 %v1037
  %1071 = vmatpush.bf16.msra.mxu0 %v1035
  %1072 = vmatpush.bf16.msra.mxu0 %v1033
  %1073 = vmatmul.bf16.gmra.mxu0 %v953
  %v1074 = vpop.f32.mrf.mxu0
  %v1075 = vadd.f32 0.0, %v1074
  %v1076 = vpop.f32.mrf.mxu0
  %v1077 = vadd.f32 0.0, %v1076
  %1078 = vmatmul.bf16.gmra.mxu0 %v954
  %v1079 = vpop.f32.mrf.mxu0
  %v1080 = vadd.f32 0.0, %v1079
  %v1081 = vpop.f32.mrf.mxu0
  %v1082 = vadd.f32 0.0, %v1081
  %1083 = vmatmul.bf16.gmra.mxu0 %v955
  %v1084 = vpop.f32.mrf.mxu0
  %v1085 = vadd.f32 0.0, %v1084
  %v1086 = vpop.f32.mrf.mxu0
  %v1087 = vadd.f32 0.0, %v1086
  %1088 = vmatmul.bf16.gmra.mxu0 %v956
  %v1089 = vpop.f32.mrf.mxu0
  %v1090 = vadd.f32 0.0, %v1089
  %v1091 = vpop.f32.mrf.mxu0
  %v1092 = vadd.f32 0.0, %v1091
  %1093 = vmatmul.bf16.gmra.mxu0 %v957
  %v1094 = vpop.f32.mrf.mxu0
  %v1095 = vadd.f32 0.0, %v1094
  %v1096 = vpop.f32.mrf.mxu0
  %v1097 = vadd.f32 0.0, %v1096
  %1098 = vmatmul.bf16.gmra.mxu0 %v958
  %v1099 = vpop.f32.mrf.mxu0
  %v1100 = vadd.f32 0.0, %v1099
  %v1101 = vpop.f32.mrf.mxu0
  %v1102 = vadd.f32 0.0, %v1101
  %1103 = vmatmul.bf16.gmra.mxu0 %v959
  %v1104 = vpop.f32.mrf.mxu0
  %v1105 = vadd.f32 0.0, %v1104
  %v1106 = vpop.f32.mrf.mxu0
  %v1107 = vadd.f32 0.0, %v1106
  %1108 = vmatmul.bf16.gmra.mxu0 %v960
  %v1109 = vpop.f32.mrf.mxu0
  %v1110 = vadd.f32 0.0, %v1109
  %v1111 = vpop.f32.mrf.mxu0
  %v1112 = vadd.f32 0.0, %v1111
  %1113 = vmatmul.bf16.gmra.mxu0 %v961
  %v1114 = vpop.f32.mrf.mxu0
  %v1115 = vadd.f32 0.0, %v1114
  %v1116 = vpop.f32.mrf.mxu0
  %v1117 = vadd.f32 0.0, %v1116
  %1118 = vmatmul.bf16.gmra.mxu0 %v962
  %v1119 = vpop.f32.mrf.mxu0
  %v1120 = vadd.f32 0.0, %v1119
  %v1121 = vpop.f32.mrf.mxu0
  %v1122 = vadd.f32 0.0, %v1121
  %1123 = vmatmul.bf16.gmra.mxu0 %v963
  %v1124 = vpop.f32.mrf.mxu0
  %v1125 = vadd.f32 0.0, %v1124
  %v1126 = vpop.f32.mrf.mxu0
  %v1127 = vadd.f32 0.0, %v1126
  %1128 = vmatmul.bf16.gmra.mxu0 %v964
  %v1129 = vpop.f32.mrf.mxu0
  %v1130 = vadd.f32 0.0, %v1129
  %v1131 = vpop.f32.mrf.mxu0
  %v1132 = vadd.f32 0.0, %v1131
  %1133 = vmatmul.bf16.gmra.mxu0 %v965
  %v1134 = vpop.f32.mrf.mxu0
  %v1135 = vadd.f32 0.0, %v1134
  %v1136 = vpop.f32.mrf.mxu0
  %v1137 = vadd.f32 0.0, %v1136
  %1138 = vmatmul.bf16.gmra.mxu0 %v966
  %v1139 = vpop.f32.mrf.mxu0
  %v1140 = vadd.f32 0.0, %v1139
  %v1141 = vpop.f32.mrf.mxu0
  %v1142 = vadd.f32 0.0, %v1141
  %1143 = vmatmul.bf16.gmra.mxu0 %v967
  %v1144 = vpop.f32.mrf.mxu0
  %v1145 = vadd.f32 0.0, %v1144
  %v1146 = vpop.f32.mrf.mxu0
  %v1147 = vadd.f32 0.0, %v1146
  %1148 = vmatmul.bf16.gmra.mxu0 %v968
  %v1149 = vpop.f32.mrf.mxu0
  %v1150 = vadd.f32 0.0, %v1149
  %v1151 = vpop.f32.mrf.mxu0
  %v1152 = vadd.f32 0.0, %v1151
  %1153 = vdwg.mxu0
  %1154 = vmatpush.bf16.msra.mxu0 %v1048
  %1155 = vmatpush.bf16.msra.mxu0 %v1046
  %1156 = vmatpush.bf16.msra.mxu0 %v1044
  %1157 = vmatpush.bf16.msra.mxu0 %v1042
  %1158 = vmatpush.bf16.msra.mxu0 %v1040
  %1159 = vmatpush.bf16.msra.mxu0 %v1038
  %1160 = vmatpush.bf16.msra.mxu0 %v1036
  %1161 = vmatpush.bf16.msra.mxu0 %v1034
  %1162 = vmatmul.bf16.gmra.mxu0 %v953
  %v1163 = vpop.f32.mrf.mxu0
  %v1164 = vadd.f32 0.0, %v1163
  %v1165 = vpop.f32.mrf.mxu0
  %v1166 = vadd.f32 0.0, %v1165
  %1167 = vmatmul.bf16.gmra.mxu0 %v954
  %v1168 = vpop.f32.mrf.mxu0
  %v1169 = vadd.f32 0.0, %v1168
  %v1170 = vpop.f32.mrf.mxu0
  %v1171 = vadd.f32 0.0, %v1170
  %1172 = vmatmul.bf16.gmra.mxu0 %v955
  %v1173 = vpop.f32.mrf.mxu0
  %v1174 = vadd.f32 0.0, %v1173
  %v1175 = vpop.f32.mrf.mxu0
  %v1176 = vadd.f32 0.0, %v1175
  %1177 = vmatmul.bf16.gmra.mxu0 %v956
  %v1178 = vpop.f32.mrf.mxu0
  %v1179 = vadd.f32 0.0, %v1178
  %v1180 = vpop.f32.mrf.mxu0
  %v1181 = vadd.f32 0.0, %v1180
  %1182 = vmatmul.bf16.gmra.mxu0 %v957
  %v1183 = vpop.f32.mrf.mxu0
  %v1184 = vadd.f32 0.0, %v1183
  %v1185 = vpop.f32.mrf.mxu0
  %v1186 = vadd.f32 0.0, %v1185
  %1187 = vmatmul.bf16.gmra.mxu0 %v958
  %v1188 = vpop.f32.mrf.mxu0
  %v1189 = vadd.f32 0.0, %v1188
  %v1190 = vpop.f32.mrf.mxu0
  %v1191 = vadd.f32 0.0, %v1190
  %1192 = vmatmul.bf16.gmra.mxu0 %v959
  %v1193 = vpop.f32.mrf.mxu0
  %v1194 = vadd.f32 0.0, %v1193
  %v1195 = vpop.f32.mrf.mxu0
  %v1196 = vadd.f32 0.0, %v1195
  %1197 = vmatmul.bf16.gmra.mxu0 %v960
  %v1198 = vpop.f32.mrf.mxu0
  %v1199 = vadd.f32 0.0, %v1198
  %v1200 = vpop.f32.mrf.mxu0
  %v1201 = vadd.f32 0.0, %v1200
  %1202 = vmatmul.bf16.gmra.mxu0 %v961
  %v1203 = vpop.f32.mrf.mxu0
  %v1204 = vadd.f32 0.0, %v1203
  %v1205 = vpop.f32.mrf.mxu0
  %v1206 = vadd.f32 0.0, %v1205
  %1207 = vmatmul.bf16.gmra.mxu0 %v962
  %v1208 = vpop.f32.mrf.mxu0
  %v1209 = vadd.f32 0.0, %v1208
  %v1210 = vpop.f32.mrf.mxu0
  %v1211 = vadd.f32 0.0, %v1210
  %1212 = vmatmul.bf16.gmra.mxu0 %v963
  %v1213 = vpop.f32.mrf.mxu0
  %v1214 = vadd.f32 0.0, %v1213
  %v1215 = vpop.f32.mrf.mxu0
  %v1216 = vadd.f32 0.0, %v1215
  %1217 = vmatmul.bf16.gmra.mxu0 %v964
  %v1218 = vpop.f32.mrf.mxu0
  %v1219 = vadd.f32 0.0, %v1218
  %v1220 = vpop.f32.mrf.mxu0
  %v1221 = vadd.f32 0.0, %v1220
  %1222 = vmatmul.bf16.gmra.mxu0 %v965
  %v1223 = vpop.f32.mrf.mxu0
  %v1224 = vadd.f32 0.0, %v1223
  %v1225 = vpop.f32.mrf.mxu0
  %v1226 = vadd.f32 0.0, %v1225
  %1227 = vmatmul.bf16.gmra.mxu0 %v966
  %v1228 = vpop.f32.mrf.mxu0
  %v1229 = vadd.f32 0.0, %v1228
  %v1230 = vpop.f32.mrf.mxu0
  %v1231 = vadd.f32 0.0, %v1230
  %1232 = vmatmul.bf16.gmra.mxu0 %v967
  %v1233 = vpop.f32.mrf.mxu0
  %v1234 = vadd.f32 0.0, %v1233
  %v1235 = vpop.f32.mrf.mxu0
  %v1236 = vadd.f32 0.0, %v1235
  %1237 = vmatmul.bf16.gmra.mxu0 %v968
  %v1238 = vpop.f32.mrf.mxu0
  %v1239 = vadd.f32 0.0, %v1238
  %v1240 = vpop.f32.mrf.mxu0
  %v1241 = vadd.f32 0.0, %v1240
  %1242 = vdwg.mxu0
  %v1243 = vadd.f32 %v671, %v1075
  %v1244 = vadd.f32 %v760, %v1164
  %v1245 = vadd.f32 %v673, %v1077
  %v1246 = vadd.f32 %v762, %v1166
  %v1247 = vadd.f32 %v676, %v1080
  %v1248 = vadd.f32 %v765, %v1169
  %v1249 = vadd.f32 %v678, %v1082
  %v1250 = vadd.f32 %v767, %v1171
  %v1251 = vadd.f32 %v681, %v1085
  %v1252 = vadd.f32 %v770, %v1174
  %v1253 = vadd.f32 %v683, %v1087
  %v1254 = vadd.f32 %v772, %v1176
  %v1255 = vadd.f32 %v686, %v1090
  %v1256 = vadd.f32 %v775, %v1179
  %v1257 = vadd.f32 %v688, %v1092
  %v1258 = vadd.f32 %v777, %v1181
  %v1259 = vadd.f32 %v691, %v1095
  %v1260 = vadd.f32 %v780, %v1184
  %v1261 = vadd.f32 %v693, %v1097
  %v1262 = vadd.f32 %v782, %v1186
  %v1263 = vadd.f32 %v696, %v1100
  %v1264 = vadd.f32 %v785, %v1189
  %v1265 = vadd.f32 %v698, %v1102
  %v1266 = vadd.f32 %v787, %v1191
  %v1267 = vadd.f32 %v701, %v1105
  %v1268 = vadd.f32 %v790, %v1194
  %v1269 = vadd.f32 %v703, %v1107
  %v1270 = vadd.f32 %v792, %v1196
  %v1271 = vadd.f32 %v706, %v1110
  %v1272 = vadd.f32 %v795, %v1199
  %v1273 = vadd.f32 %v708, %v1112
  %v1274 = vadd.f32 %v797, %v1201
  %v1275 = vadd.f32 %v711, %v1115
  %v1276 = vadd.f32 %v800, %v1204
  %v1277 = vadd.f32 %v713, %v1117
  %v1278 = vadd.f32 %v802, %v1206
  %v1279 = vadd.f32 %v716, %v1120
  %v1280 = vadd.f32 %v805, %v1209
  %v1281 = vadd.f32 %v718, %v1122
  %v1282 = vadd.f32 %v807, %v1211
  %v1283 = vadd.f32 %v721, %v1125
  %v1284 = vadd.f32 %v810, %v1214
  %v1285 = vadd.f32 %v723, %v1127
  %v1286 = vadd.f32 %v812, %v1216
  %v1287 = vadd.f32 %v726, %v1130
  %v1288 = vadd.f32 %v815, %v1219
  %v1289 = vadd.f32 %v728, %v1132
  %v1290 = vadd.f32 %v817, %v1221
  %v1291 = vadd.f32 %v731, %v1135
  %v1292 = vadd.f32 %v820, %v1224
  %v1293 = vadd.f32 %v733, %v1137
  %v1294 = vadd.f32 %v822, %v1226
  %v1295 = vadd.f32 %v736, %v1140
  %v1296 = vadd.f32 %v825, %v1229
  %v1297 = vadd.f32 %v738, %v1142
  %v1298 = vadd.f32 %v827, %v1231
  %v1299 = vadd.f32 %v741, %v1145
  %v1300 = vadd.f32 %v830, %v1234
  %v1301 = vadd.f32 %v743, %v1147
  %v1302 = vadd.f32 %v832, %v1236
  %v1303 = vadd.f32 %v746, %v1150
  %v1304 = vadd.f32 %v835, %v1239
  %v1305 = vadd.f32 %v748, %v1152
  %v1306 = vadd.f32 %v837, %v1241
  %v1307 = vld [vmem:[%s2] sm:$0x3]
  %v1309 = vperm.slane %v1307, 0
  %v1310 = vperm.slane %v1307, 1
  %v1313 = vadd.f32 %v1243, %v1309
  %v1314 = vadd.f32 %v1244, %v1310
  %v1315 = vadd.f32 %v1245, %v1309
  %v1316 = vadd.f32 %v1246, %v1310
  %v1317 = vadd.f32 %v1247, %v1309
  %v1318 = vadd.f32 %v1248, %v1310
  %v1319 = vadd.f32 %v1249, %v1309
  %v1320 = vadd.f32 %v1250, %v1310
  %v1321 = vadd.f32 %v1251, %v1309
  %v1322 = vadd.f32 %v1252, %v1310
  %v1323 = vadd.f32 %v1253, %v1309
  %v1324 = vadd.f32 %v1254, %v1310
  %v1325 = vadd.f32 %v1255, %v1309
  %v1326 = vadd.f32 %v1256, %v1310
  %v1327 = vadd.f32 %v1257, %v1309
  %v1328 = vadd.f32 %v1258, %v1310
  %v1329 = vadd.f32 %v1259, %v1309
  %v1330 = vadd.f32 %v1260, %v1310
  %v1331 = vadd.f32 %v1261, %v1309
  %v1332 = vadd.f32 %v1262, %v1310
  %v1333 = vadd.f32 %v1263, %v1309
  %v1334 = vadd.f32 %v1264, %v1310
  %v1335 = vadd.f32 %v1265, %v1309
  %v1336 = vadd.f32 %v1266, %v1310
  %v1337 = vadd.f32 %v1267, %v1309
  %v1338 = vadd.f32 %v1268, %v1310
  %v1339 = vadd.f32 %v1269, %v1309
  %v1340 = vadd.f32 %v1270, %v1310
  %v1341 = vadd.f32 %v1271, %v1309
  %v1342 = vadd.f32 %v1272, %v1310
  %v1343 = vadd.f32 %v1273, %v1309
  %v1344 = vadd.f32 %v1274, %v1310
  %v1345 = vadd.f32 %v1275, %v1309
  %v1346 = vadd.f32 %v1276, %v1310
  %v1347 = vadd.f32 %v1277, %v1309
  %v1348 = vadd.f32 %v1278, %v1310
  %v1349 = vadd.f32 %v1279, %v1309
  %v1350 = vadd.f32 %v1280, %v1310
  %v1351 = vadd.f32 %v1281, %v1309
  %v1352 = vadd.f32 %v1282, %v1310
  %v1353 = vadd.f32 %v1283, %v1309
  %v1354 = vadd.f32 %v1284, %v1310
  %v1355 = vadd.f32 %v1285, %v1309
  %v1356 = vadd.f32 %v1286, %v1310
  %v1357 = vadd.f32 %v1287, %v1309
  %v1358 = vadd.f32 %v1288, %v1310
  %v1359 = vadd.f32 %v1289, %v1309
  %v1360 = vadd.f32 %v1290, %v1310
  %v1361 = vadd.f32 %v1291, %v1309
  %v1362 = vadd.f32 %v1292, %v1310
  %v1363 = vadd.f32 %v1293, %v1309
  %v1364 = vadd.f32 %v1294, %v1310
  %v1365 = vadd.f32 %v1295, %v1309
  %v1366 = vadd.f32 %v1296, %v1310
  %v1367 = vadd.f32 %v1297, %v1309
  %v1368 = vadd.f32 %v1298, %v1310
  %v1369 = vadd.f32 %v1299, %v1309
  %v1370 = vadd.f32 %v1300, %v1310
  %v1371 = vadd.f32 %v1301, %v1309
  %v1372 = vadd.f32 %v1302, %v1310
  %v1373 = vadd.f32 %v1303, %v1309
  %v1374 = vadd.f32 %v1304, %v1310
  %v1375 = vadd.f32 %v1305, %v1309
  %v1376 = vadd.f32 %v1306, %v1310
  %v1377 = vmax.f32 %v1313, 0.0
  %v1378 = vmax.f32 %v1314, 0.0
  %v1379 = vmax.f32 %v1315, 0.0
  %v1380 = vmax.f32 %v1316, 0.0
  %v1381 = vmax.f32 %v1317, 0.0
  %v1382 = vmax.f32 %v1318, 0.0
  %v1383 = vmax.f32 %v1319, 0.0
  %v1384 = vmax.f32 %v1320, 0.0
  %v1385 = vmax.f32 %v1321, 0.0
  %v1386 = vmax.f32 %v1322, 0.0
  %v1387 = vmax.f32 %v1323, 0.0
  %v1388 = vmax.f32 %v1324, 0.0
  %v1389 = vmax.f32 %v1325, 0.0
  %v1390 = vmax.f32 %v1326, 0.0
  %v1391 = vmax.f32 %v1327, 0.0
  %v1392 = vmax.f32 %v1328, 0.0
  %v1393 = vmax.f32 %v1329, 0.0
  %v1394 = vmax.f32 %v1330, 0.0
  %v1395 = vmax.f32 %v1331, 0.0
  %v1396 = vmax.f32 %v1332, 0.0
  %v1397 = vmax.f32 %v1333, 0.0
  %v1398 = vmax.f32 %v1334, 0.0
  %v1399 = vmax.f32 %v1335, 0.0
  %v1400 = vmax.f32 %v1336, 0.0
  %v1401 = vmax.f32 %v1337, 0.0
  %v1402 = vmax.f32 %v1338, 0.0
  %v1403 = vmax.f32 %v1339, 0.0
  %v1404 = vmax.f32 %v1340, 0.0
  %v1405 = vmax.f32 %v1341, 0.0
  %v1406 = vmax.f32 %v1342, 0.0
  %v1407 = vmax.f32 %v1343, 0.0
  %v1408 = vmax.f32 %v1344, 0.0
  %v1409 = vmax.f32 %v1345, 0.0
  %v1410 = vmax.f32 %v1346, 0.0
  %v1411 = vmax.f32 %v1347, 0.0
  %v1412 = vmax.f32 %v1348, 0.0
  %v1413 = vmax.f32 %v1349, 0.0
  %v1414 = vmax.f32 %v1350, 0.0
  %v1415 = vmax.f32 %v1351, 0.0
  %v1416 = vmax.f32 %v1352, 0.0
  %v1417 = vmax.f32 %v1353, 0.0
  %v1418 = vmax.f32 %v1354, 0.0
  %v1419 = vmax.f32 %v1355, 0.0
  %v1420 = vmax.f32 %v1356, 0.0
  %v1421 = vmax.f32 %v1357, 0.0
  %v1422 = vmax.f32 %v1358, 0.0
  %v1423 = vmax.f32 %v1359, 0.0
  %v1424 = vmax.f32 %v1360, 0.0
  %v1425 = vmax.f32 %v1361, 0.0
  %v1426 = vmax.f32 %v1362, 0.0
  %v1427 = vmax.f32 %v1363, 0.0
  %v1428 = vmax.f32 %v1364, 0.0
  %v1429 = vmax.f32 %v1365, 0.0
  %v1430 = vmax.f32 %v1366, 0.0
  %v1431 = vmax.f32 %v1367, 0.0
  %v1432 = vmax.f32 %v1368, 0.0
  %v1433 = vmax.f32 %v1369, 0.0
  %v1434 = vmax.f32 %v1370, 0.0
  %v1435 = vmax.f32 %v1371, 0.0
  %v1436 = vmax.f32 %v1372, 0.0
  %v1437 = vmax.f32 %v1373, 0.0
  %v1438 = vmax.f32 %v1374, 0.0
  %v1439 = vmax.f32 %v1375, 0.0
  %v1440 = vmax.f32 %v1376, 0.0
  %v1441 = vmax.f32 %v1377, %v1378
  %v1442 = vmax.f32 %v1379, %v1380
  %v1443 = vmax.f32 %v1381, %v1382
  %v1444 = vmax.f32 %v1383, %v1384
  %v1445 = vmax.f32 %v1385, %v1386
  %v1446 = vmax.f32 %v1387, %v1388
  %v1447 = vmax.f32 %v1389, %v1390
  %v1448 = vmax.f32 %v1391, %v1392
  %v1449 = vmax.f32 %v1393, %v1394
  %v1450 = vmax.f32 %v1395, %v1396
  %v1451 = vmax.f32 %v1397, %v1398
  %v1452 = vmax.f32 %v1399, %v1400
  %v1453 = vmax.f32 %v1401, %v1402
  %v1454 = vmax.f32 %v1403, %v1404
  %v1455 = vmax.f32 %v1405, %v1406
  %v1456 = vmax.f32 %v1407, %v1408
  %v1457 = vmax.f32 %v1409, %v1410
  %v1458 = vmax.f32 %v1411, %v1412
  %v1459 = vmax.f32 %v1413, %v1414
  %v1460 = vmax.f32 %v1415, %v1416
  %v1461 = vmax.f32 %v1417, %v1418
  %v1462 = vmax.f32 %v1419, %v1420
  %v1463 = vmax.f32 %v1421, %v1422
  %v1464 = vmax.f32 %v1423, %v1424
  %v1465 = vmax.f32 %v1425, %v1426
  %v1466 = vmax.f32 %v1427, %v1428
  %v1467 = vmax.f32 %v1429, %v1430
  %v1468 = vmax.f32 %v1431, %v1432
  %v1469 = vmax.f32 %v1433, %v1434
  %v1470 = vmax.f32 %v1435, %v1436
  %v1471 = vmax.f32 %v1437, %v1438
  %v1472 = vmax.f32 %v1439, %v1440
  %v1473 = vmax.f32 %v1441, %v1443
  %v1474 = vmax.f32 %v1442, %v1444
  %v1475 = vmax.f32 %v1445, %v1447
  %v1476 = vmax.f32 %v1446, %v1448
  %v1477 = vmax.f32 %v1449, %v1451
  %v1478 = vmax.f32 %v1450, %v1452
  %v1479 = vmax.f32 %v1453, %v1455
  %v1480 = vmax.f32 %v1454, %v1456
  %v1481 = vmax.f32 %v1457, %v1459
  %v1482 = vmax.f32 %v1458, %v1460
  %v1483 = vmax.f32 %v1461, %v1463
  %v1484 = vmax.f32 %v1462, %v1464
  %v1485 = vmax.f32 %v1465, %v1467
  %v1486 = vmax.f32 %v1466, %v1468
  %v1487 = vmax.f32 %v1469, %v1471
  %v1488 = vmax.f32 %v1470, %v1472
  %1489 = vst [vmem:[#allocation2] sm:$0xf] 0
  %1490 = vst [vmem:[#allocation2 + $0x4] sm:$0xf] 0
  %s1491 = scalar_lea.vmem [#allocation2], 72
  %1492 = vst [vmem:[%s1491] sm:$0xf] 0
  %1493 = vst [vmem:[%s1491 + $0x4] sm:$0xf] 0
  %v1494 = vpack.c.bf16 %v1473, %v1473
  %v1495 = vpack.c.bf16 %v1474, %v1474
  %v1496 = vpack.c.bf16 %v1475, %v1475
  %v1497 = vpack.c.bf16 %v1476, %v1476
  %v1498 = vpack.c.bf16 %v1477, %v1477
  %v1499 = vpack.c.bf16 %v1478, %v1478
  %v1500 = vpack.c.bf16 %v1479, %v1479
  %v1501 = vpack.c.bf16 %v1480, %v1480
  %v1502 = vpack.c.bf16 %v1481, %v1481
  %v1503 = vpack.c.bf16 %v1482, %v1482
  %v1504 = vpack.c.bf16 %v1483, %v1483
  %v1505 = vpack.c.bf16 %v1484, %v1484
  %v1506 = vpack.c.bf16 %v1485, %v1485
  %v1507 = vpack.c.bf16 %v1486, %v1486
  %v1508 = vpack.c.bf16 %v1487, %v1487
  %v1509 = vpack.c.bf16 %v1488, %v1488
  %s1510 = scalar_lea.vmem [#allocation2], 8
  %1511 = vst [vmem:[%s1510] sm:$0xf] %v1494
  %1512 = vst [vmem:[%s1510 + $0x4] sm:$0xf] %v1495
  %1513 = vst [vmem:[%s1510 + $0x8] sm:$0xf] %v1496
  %1514 = vst [vmem:[%s1510 + $0xc] sm:$0xf] %v1497
  %1515 = vst [vmem:[%s1510 + $0x10] sm:$0xf] %v1498
  %1516 = vst [vmem:[%s1510 + $0x14] sm:$0xf] %v1499
  %1517 = vst [vmem:[%s1510 + $0x18] sm:$0xf] %v1500
  %1518 = vst [vmem:[%s1510 + $0x1c] sm:$0xf] %v1501
  %1519 = vst [vmem:[%s1510 + $0x20] sm:$0xf] %v1502
  %1520 = vst [vmem:[%s1510 + $0x24] sm:$0xf] %v1503
  %1521 = vst [vmem:[%s1510 + $0x28] sm:$0xf] %v1504
  %1522 = vst [vmem:[%s1510 + $0x2c] sm:$0xf] %v1505
  %1523 = vst [vmem:[%s1510 + $0x30] sm:$0xf] %v1506
  %1524 = vst [vmem:[%s1510 + $0x34] sm:$0xf] %v1507
  %1525 = vst [vmem:[%s1510 + $0x38] sm:$0xf] %v1508
  %1526 = vst [vmem:[%s1510 + $0x3c] sm:$0xf] %v1509
  %v1527 = vld [vmem:[#allocation2] sm:$0xf]
  %v1528 = vld [vmem:[#allocation2 + $0x4] sm:$0xf]
  %v1529 = vld [vmem:[#allocation2 + $0x8] sm:$0xf]
  %v1530 = vld [vmem:[#allocation2 + $0xc] sm:$0xf]
  %v1531 = vld [vmem:[#allocation2 + $0x10] sm:$0xf]
  %v1532 = vld [vmem:[#allocation2 + $0x14] sm:$0xf]
  %v1533 = vld [vmem:[#allocation2 + $0x18] sm:$0xf]
  %v1534 = vld [vmem:[#allocation2 + $0x1c] sm:$0xf]
  %v1535 = vld [vmem:[#allocation2 + $0x20] sm:$0xf]
  %v1536 = vld [vmem:[#allocation2 + $0x24] sm:$0xf]
  %v1537 = vld [vmem:[#allocation2 + $0x28] sm:$0xf]
  %v1538 = vld [vmem:[#allocation2 + $0x2c] sm:$0xf]
  %v1539 = vld [vmem:[#allocation2 + $0x30] sm:$0xf]
  %v1540 = vld [vmem:[#allocation2 + $0x34] sm:$0xf]
  %v1541 = vld [vmem:[#allocation2 + $0x38] sm:$0xf]
  %v1542 = vld [vmem:[#allocation2 + $0x3c] sm:$0xf]
  %v1543 = vld [vmem:[%s3] sm:$0xff]
  %v1544 = vld [vmem:[%s3 + $0x8] sm:$0xff]
  %v1545 = vld [vmem:[%s3 + $0x10] sm:$0xff]
  %v1546 = vld [vmem:[%s3 + $0x18] sm:$0xff]
  %v1547 = vld [vmem:[%s3 + $0x20] sm:$0xff]
  %v1548 = vld [vmem:[%s3 + $0x28] sm:$0xff]
  %v1549 = vld [vmem:[%s3 + $0x30] sm:$0xff]
  %v1550 = vld [vmem:[%s3 + $0x38] sm:$0xff]
  %v1551 = vld [vmem:[%s3 + $0x40] sm:$0xff]
  %v1552 = vld [vmem:[%s3 + $0x48] sm:$0xff]
  %v1553 = vld [vmem:[%s3 + $0x50] sm:$0xff]
  %v1554 = vld [vmem:[%s3 + $0x58] sm:$0xff]
  %v1555 = vld [vmem:[%s3 + $0x60] sm:$0xff]
  %v1556 = vld [vmem:[%s3 + $0x68] sm:$0xff]
  %v1557 = vld [vmem:[%s3 + $0x70] sm:$0xff]
  %v1558 = vld [vmem:[%s3 + $0x78] sm:$0xff]
  %v1559 = vld [vmem:[%s1510] sm:$0xf]
  %v1560 = vld [vmem:[%s1510 + $0x4] sm:$0xf]
  %v1561 = vld [vmem:[%s1510 + $0x8] sm:$0xf]
  %v1562 = vld [vmem:[%s1510 + $0xc] sm:$0xf]
  %v1563 = vld [vmem:[%s1510 + $0x10] sm:$0xf]
  %v1564 = vld [vmem:[%s1510 + $0x14] sm:$0xf]
  %v1565 = vld [vmem:[%s1510 + $0x18] sm:$0xf]
  %v1566 = vld [vmem:[%s1510 + $0x1c] sm:$0xf]
  %v1567 = vld [vmem:[%s1510 + $0x20] sm:$0xf]
  %v1568 = vld [vmem:[%s1510 + $0x24] sm:$0xf]
  %v1569 = vld [vmem:[%s1510 + $0x28] sm:$0xf]
  %v1570 = vld [vmem:[%s1510 + $0x2c] sm:$0xf]
  %v1571 = vld [vmem:[%s1510 + $0x30] sm:$0xf]
  %v1572 = vld [vmem:[%s1510 + $0x34] sm:$0xf]
  %v1573 = vld [vmem:[%s1510 + $0x38] sm:$0xf]
  %v1574 = vld [vmem:[%s1510 + $0x3c] sm:$0xf]
  %s1575 = scalar_lea.vmem %s3, 128
  %v1576 = vld [vmem:[%s1575] sm:$0xff]
  %v1577 = vld [vmem:[%s1575 + $0x8] sm:$0xff]
  %v1578 = vld [vmem:[%s1575 + $0x10] sm:$0xff]
  %v1579 = vld [vmem:[%s1575 + $0x18] sm:$0xff]
  %v1580 = vld [vmem:[%s1575 + $0x20] sm:$0xff]
  %v1581 = vld [vmem:[%s1575 + $0x28] sm:$0xff]
  %v1582 = vld [vmem:[%s1575 + $0x30] sm:$0xff]
  %v1583 = vld [vmem:[%s1575 + $0x38] sm:$0xff]
  %v1584 = vld [vmem:[%s1575 + $0x40] sm:$0xff]
  %v1585 = vld [vmem:[%s1575 + $0x48] sm:$0xff]
  %v1586 = vld [vmem:[%s1575 + $0x50] sm:$0xff]
  %v1587 = vld [vmem:[%s1575 + $0x58] sm:$0xff]
  %v1588 = vld [vmem:[%s1575 + $0x60] sm:$0xff]
  %v1589 = vld [vmem:[%s1575 + $0x68] sm:$0xff]
  %v1590 = vld [vmem:[%s1575 + $0x70] sm:$0xff]
  %v1591 = vld [vmem:[%s1575 + $0x78] sm:$0xff]
  %v1608 = vunpack.c.l.b16 %v1559
  %v1609 = vunpack.c.l.b16 %v1560
  %v1610 = vunpack.c.l.b16 %v1561
  %v1611 = vunpack.c.l.b16 %v1562
  %v1612 = vunpack.c.l.b16 %v1563
  %v1613 = vunpack.c.l.b16 %v1564
  %v1614 = vunpack.c.l.b16 %v1565
  %v1615 = vunpack.c.l.b16 %v1566
  %v1616 = vunpack.c.l.b16 %v1567
  %v1617 = vunpack.c.l.b16 %v1568
  %v1618 = vunpack.c.l.b16 %v1569
  %v1619 = vunpack.c.l.b16 %v1570
  %v1620 = vunpack.c.l.b16 %v1571
  %v1621 = vunpack.c.l.b16 %v1572
  %v1622 = vunpack.c.l.b16 %v1573
  %v1623 = vunpack.c.l.b16 %v1574
  %v1624 = vpack.c.b16 %v1609, %v1608
  %v1625 = vpack.c.b16 %v1611, %v1610
  %v1626 = vpack.c.b16 %v1613, %v1612
  %v1627 = vpack.c.b16 %v1615, %v1614
  %v1628 = vpack.c.b16 %v1617, %v1616
  %v1629 = vpack.c.b16 %v1619, %v1618
  %v1630 = vpack.c.b16 %v1621, %v1620
  %v1631 = vpack.c.b16 %v1623, %v1622
  %v1656 = vunpack.c.l.b16 %v1576
  %v1657 = vunpack.c.h.b16 %v1576
  %v1658 = vunpack.c.l.b16 %v1577
  %v1659 = vunpack.c.h.b16 %v1577
  %v1660 = vunpack.c.l.b16 %v1578
  %v1661 = vunpack.c.h.b16 %v1578
  %v1662 = vunpack.c.l.b16 %v1579
  %v1663 = vunpack.c.h.b16 %v1579
  %v1664 = vunpack.c.l.b16 %v1580
  %v1665 = vunpack.c.h.b16 %v1580
  %v1666 = vunpack.c.l.b16 %v1581
  %v1667 = vunpack.c.h.b16 %v1581
  %v1668 = vunpack.c.l.b16 %v1582
  %v1669 = vunpack.c.h.b16 %v1582
  %v1670 = vunpack.c.l.b16 %v1583
  %v1671 = vunpack.c.h.b16 %v1583
  %v1672 = vunpack.c.l.b16 %v1584
  %v1673 = vunpack.c.h.b16 %v1584
  %v1674 = vunpack.c.l.b16 %v1585
  %v1675 = vunpack.c.h.b16 %v1585
  %v1676 = vunpack.c.l.b16 %v1586
  %v1677 = vunpack.c.h.b16 %v1586
  %v1678 = vunpack.c.l.b16 %v1587
  %v1679 = vunpack.c.h.b16 %v1587
  %v1680 = vunpack.c.l.b16 %v1588
  %v1681 = vunpack.c.h.b16 %v1588
  %v1682 = vunpack.c.l.b16 %v1589
  %v1683 = vunpack.c.h.b16 %v1589
  %v1684 = vunpack.c.l.b16 %v1590
  %v1685 = vunpack.c.h.b16 %v1590
  %v1686 = vunpack.c.l.b16 %v1591
  %v1687 = vunpack.c.h.b16 %v1591
  %v1688 = vpack.c.b16 %v1658, %v1656
  %v1689 = vpack.c.b16 %v1659, %v1657
  %v1690 = vpack.c.b16 %v1662, %v1660
  %v1691 = vpack.c.b16 %v1663, %v1661
  %v1692 = vpack.c.b16 %v1666, %v1664
  %v1693 = vpack.c.b16 %v1667, %v1665
  %v1694 = vpack.c.b16 %v1670, %v1668
  %v1695 = vpack.c.b16 %v1671, %v1669
  %v1696 = vpack.c.b16 %v1674, %v1672
  %v1697 = vpack.c.b16 %v1675, %v1673
  %v1698 = vpack.c.b16 %v1678, %v1676
  %v1699 = vpack.c.b16 %v1679, %v1677
  %v1700 = vpack.c.b16 %v1682, %v1680
  %v1701 = vpack.c.b16 %v1683, %v1681
  %v1702 = vpack.c.b16 %v1686, %v1684
  %v1703 = vpack.c.b16 %v1687, %v1685
  %1720 = vmatpush.bf16.msra.mxu0 %v1702
  %1721 = vmatpush.bf16.msra.mxu0 %v1700
  %1722 = vmatpush.bf16.msra.mxu0 %v1698
  %1723 = vmatpush.bf16.msra.mxu0 %v1696
  %1724 = vmatpush.bf16.msra.mxu0 %v1694
  %1725 = vmatpush.bf16.msra.mxu0 %v1692
  %1726 = vmatpush.bf16.msra.mxu0 %v1690
  %1727 = vmatpush.bf16.msra.mxu0 %v1688
  %1728 = vmatmul.bf16.gmra.mxu0 %v1624
  %v1729 = vpop.f32.mrf.mxu0
  %v1730 = vadd.f32 0.0, %v1729
  %v1731 = vpop.f32.mrf.mxu0
  %v1732 = vadd.f32 0.0, %v1731
  %1733 = vmatmul.bf16.gmra.mxu0 %v1625
  %v1734 = vpop.f32.mrf.mxu0
  %v1735 = vadd.f32 0.0, %v1734
  %v1736 = vpop.f32.mrf.mxu0
  %v1737 = vadd.f32 0.0, %v1736
  %1738 = vmatmul.bf16.gmra.mxu0 %v1626
  %v1739 = vpop.f32.mrf.mxu0
  %v1740 = vadd.f32 0.0, %v1739
  %v1741 = vpop.f32.mrf.mxu0
  %v1742 = vadd.f32 0.0, %v1741
  %1743 = vmatmul.bf16.gmra.mxu0 %v1627
  %v1744 = vpop.f32.mrf.mxu0
  %v1745 = vadd.f32 0.0, %v1744
  %v1746 = vpop.f32.mrf.mxu0
  %v1747 = vadd.f32 0.0, %v1746
  %1748 = vmatmul.bf16.gmra.mxu0 %v1628
  %v1749 = vpop.f32.mrf.mxu0
  %v1750 = vadd.f32 0.0, %v1749
  %v1751 = vpop.f32.mrf.mxu0
  %v1752 = vadd.f32 0.0, %v1751
  %1753 = vmatmul.bf16.gmra.mxu0 %v1629
  %v1754 = vpop.f32.mrf.mxu0
  %v1755 = vadd.f32 0.0, %v1754
  %v1756 = vpop.f32.mrf.mxu0
  %v1757 = vadd.f32 0.0, %v1756
  %1758 = vmatmul.bf16.gmra.mxu0 %v1630
  %v1759 = vpop.f32.mrf.mxu0
  %v1760 = vadd.f32 0.0, %v1759
  %v1761 = vpop.f32.mrf.mxu0
  %v1762 = vadd.f32 0.0, %v1761
  %1763 = vmatmul.bf16.gmra.mxu0 %v1631
  %v1764 = vpop.f32.mrf.mxu0
  %v1765 = vadd.f32 0.0, %v1764
  %v1766 = vpop.f32.mrf.mxu0
  %v1767 = vadd.f32 0.0, %v1766
  %1768 = vdwg.mxu0
  %1769 = vmatpush.bf16.msra.mxu0 %v1703
  %1770 = vmatpush.bf16.msra.mxu0 %v1701
  %1771 = vmatpush.bf16.msra.mxu0 %v1699
  %1772 = vmatpush.bf16.msra.mxu0 %v1697
  %1773 = vmatpush.bf16.msra.mxu0 %v1695
  %1774 = vmatpush.bf16.msra.mxu0 %v1693
  %1775 = vmatpush.bf16.msra.mxu0 %v1691
  %1776 = vmatpush.bf16.msra.mxu0 %v1689
  %1777 = vmatmul.bf16.gmra.mxu0 %v1624
  %v1778 = vpop.f32.mrf.mxu0
  %v1779 = vadd.f32 0.0, %v1778
  %v1780 = vpop.f32.mrf.mxu0
  %v1781 = vadd.f32 0.0, %v1780
  %1782 = vmatmul.bf16.gmra.mxu0 %v1625
  %v1783 = vpop.f32.mrf.mxu0
  %v1784 = vadd.f32 0.0, %v1783
  %v1785 = vpop.f32.mrf.mxu0
  %v1786 = vadd.f32 0.0, %v1785
  %1787 = vmatmul.bf16.gmra.mxu0 %v1626
  %v1788 = vpop.f32.mrf.mxu0
  %v1789 = vadd.f32 0.0, %v1788
  %v1790 = vpop.f32.mrf.mxu0
  %v1791 = vadd.f32 0.0, %v1790
  %1792 = vmatmul.bf16.gmra.mxu0 %v1627
  %v1793 = vpop.f32.mrf.mxu0
  %v1794 = vadd.f32 0.0, %v1793
  %v1795 = vpop.f32.mrf.mxu0
  %v1796 = vadd.f32 0.0, %v1795
  %1797 = vmatmul.bf16.gmra.mxu0 %v1628
  %v1798 = vpop.f32.mrf.mxu0
  %v1799 = vadd.f32 0.0, %v1798
  %v1800 = vpop.f32.mrf.mxu0
  %v1801 = vadd.f32 0.0, %v1800
  %1802 = vmatmul.bf16.gmra.mxu0 %v1629
  %v1803 = vpop.f32.mrf.mxu0
  %v1804 = vadd.f32 0.0, %v1803
  %v1805 = vpop.f32.mrf.mxu0
  %v1806 = vadd.f32 0.0, %v1805
  %1807 = vmatmul.bf16.gmra.mxu0 %v1630
  %v1808 = vpop.f32.mrf.mxu0
  %v1809 = vadd.f32 0.0, %v1808
  %v1810 = vpop.f32.mrf.mxu0
  %v1811 = vadd.f32 0.0, %v1810
  %1812 = vmatmul.bf16.gmra.mxu0 %v1631
  %v1813 = vpop.f32.mrf.mxu0
  %v1814 = vadd.f32 0.0, %v1813
  %v1815 = vpop.f32.mrf.mxu0
  %v1816 = vadd.f32 0.0, %v1815
  %1817 = vdwg.mxu0
  %v1834 = vunpack.c.l.b16 %v1527
  %v1835 = vunpack.c.l.b16 %v1528
  %v1836 = vunpack.c.l.b16 %v1529
  %v1837 = vunpack.c.l.b16 %v1530
  %v1838 = vunpack.c.l.b16 %v1531
  %v1839 = vunpack.c.l.b16 %v1532
  %v1840 = vunpack.c.l.b16 %v1533
  %v1841 = vunpack.c.l.b16 %v1534
  %v1842 = vunpack.c.l.b16 %v1535
  %v1843 = vunpack.c.l.b16 %v1536
  %v1844 = vunpack.c.l.b16 %v1537
  %v1845 = vunpack.c.l.b16 %v1538
  %v1846 = vunpack.c.l.b16 %v1539
  %v1847 = vunpack.c.l.b16 %v1540
  %v1848 = vunpack.c.l.b16 %v1541
  %v1849 = vunpack.c.l.b16 %v1542
  %v1850 = vpack.c.b16 %v1835, %v1834
  %v1851 = vpack.c.b16 %v1837, %v1836
  %v1852 = vpack.c.b16 %v1839, %v1838
  %v1853 = vpack.c.b16 %v1841, %v1840
  %v1854 = vpack.c.b16 %v1843, %v1842
  %v1855 = vpack.c.b16 %v1845, %v1844
  %v1856 = vpack.c.b16 %v1847, %v1846
  %v1857 = vpack.c.b16 %v1849, %v1848
  %v1882 = vunpack.c.l.b16 %v1543
  %v1883 = vunpack.c.h.b16 %v1543
  %v1884 = vunpack.c.l.b16 %v1544
  %v1885 = vunpack.c.h.b16 %v1544
  %v1886 = vunpack.c.l.b16 %v1545
  %v1887 = vunpack.c.h.b16 %v1545
  %v1888 = vunpack.c.l.b16 %v1546
  %v1889 = vunpack.c.h.b16 %v1546
  %v1890 = vunpack.c.l.b16 %v1547
  %v1891 = vunpack.c.h.b16 %v1547
  %v1892 = vunpack.c.l.b16 %v1548
  %v1893 = vunpack.c.h.b16 %v1548
  %v1894 = vunpack.c.l.b16 %v1549
  %v1895 = vunpack.c.h.b16 %v1549
  %v1896 = vunpack.c.l.b16 %v1550
  %v1897 = vunpack.c.h.b16 %v1550
  %v1898 = vunpack.c.l.b16 %v1551
  %v1899 = vunpack.c.h.b16 %v1551
  %v1900 = vunpack.c.l.b16 %v1552
  %v1901 = vunpack.c.h.b16 %v1552
  %v1902 = vunpack.c.l.b16 %v1553
  %v1903 = vunpack.c.h.b16 %v1553
  %v1904 = vunpack.c.l.b16 %v1554
  %v1905 = vunpack.c.h.b16 %v1554
  %v1906 = vunpack.c.l.b16 %v1555
  %v1907 = vunpack.c.h.b16 %v1555
  %v1908 = vunpack.c.l.b16 %v1556
  %v1909 = vunpack.c.h.b16 %v1556
  %v1910 = vunpack.c.l.b16 %v1557
  %v1911 = vunpack.c.h.b16 %v1557
  %v1912 = vunpack.c.l.b16 %v1558
  %v1913 = vunpack.c.h.b16 %v1558
  %v1914 = vpack.c.b16 %v1884, %v1882
  %v1915 = vpack.c.b16 %v1885, %v1883
  %v1916 = vpack.c.b16 %v1888, %v1886
  %v1917 = vpack.c.b16 %v1889, %v1887
  %v1918 = vpack.c.b16 %v1892, %v1890
  %v1919 = vpack.c.b16 %v1893, %v1891
  %v1920 = vpack.c.b16 %v1896, %v1894
  %v1921 = vpack.c.b16 %v1897, %v1895
  %v1922 = vpack.c.b16 %v1900, %v1898
  %v1923 = vpack.c.b16 %v1901, %v1899
  %v1924 = vpack.c.b16 %v1904, %v1902
  %v1925 = vpack.c.b16 %v1905, %v1903
  %v1926 = vpack.c.b16 %v1908, %v1906
  %v1927 = vpack.c.b16 %v1909, %v1907
  %v1928 = vpack.c.b16 %v1912, %v1910
  %v1929 = vpack.c.b16 %v1913, %v1911
  %1946 = vmatpush.bf16.msra.mxu0 %v1928
  %1947 = vmatpush.bf16.msra.mxu0 %v1926
  %1948 = vmatpush.bf16.msra.mxu0 %v1924
  %1949 = vmatpush.bf16.msra.mxu0 %v1922
  %1950 = vmatpush.bf16.msra.mxu0 %v1920
  %1951 = vmatpush.bf16.msra.mxu0 %v1918
  %1952 = vmatpush.bf16.msra.mxu0 %v1916
  %1953 = vmatpush.bf16.msra.mxu0 %v1914
  %1954 = vmatmul.bf16.gmra.mxu0 %v1850
  %v1955 = vpop.f32.mrf.mxu0
  %v1956 = vadd.f32 %v1730, %v1955
  %v1957 = vpop.f32.mrf.mxu0
  %v1958 = vadd.f32 %v1732, %v1957
  %1959 = vmatmul.bf16.gmra.mxu0 %v1851
  %v1960 = vpop.f32.mrf.mxu0
  %v1961 = vadd.f32 %v1735, %v1960
  %v1962 = vpop.f32.mrf.mxu0
  %v1963 = vadd.f32 %v1737, %v1962
  %1964 = vmatmul.bf16.gmra.mxu0 %v1852
  %v1965 = vpop.f32.mrf.mxu0
  %v1966 = vadd.f32 %v1740, %v1965
  %v1967 = vpop.f32.mrf.mxu0
  %v1968 = vadd.f32 %v1742, %v1967
  %1969 = vmatmul.bf16.gmra.mxu0 %v1853
  %v1970 = vpop.f32.mrf.mxu0
  %v1971 = vadd.f32 %v1745, %v1970
  %v1972 = vpop.f32.mrf.mxu0
  %v1973 = vadd.f32 %v1747, %v1972
  %1974 = vmatmul.bf16.gmra.mxu0 %v1854
  %v1975 = vpop.f32.mrf.mxu0
  %v1976 = vadd.f32 %v1750, %v1975
  %v1977 = vpop.f32.mrf.mxu0
  %v1978 = vadd.f32 %v1752, %v1977
  %1979 = vmatmul.bf16.gmra.mxu0 %v1855
  %v1980 = vpop.f32.mrf.mxu0
  %v1981 = vadd.f32 %v1755, %v1980
  %v1982 = vpop.f32.mrf.mxu0
  %v1983 = vadd.f32 %v1757, %v1982
  %1984 = vmatmul.bf16.gmra.mxu0 %v1856
  %v1985 = vpop.f32.mrf.mxu0
  %v1986 = vadd.f32 %v1760, %v1985
  %v1987 = vpop.f32.mrf.mxu0
  %v1988 = vadd.f32 %v1762, %v1987
  %1989 = vmatmul.bf16.gmra.mxu0 %v1857
  %v1990 = vpop.f32.mrf.mxu0
  %v1991 = vadd.f32 %v1765, %v1990
  %v1992 = vpop.f32.mrf.mxu0
  %v1993 = vadd.f32 %v1767, %v1992
  %1994 = vdwg.mxu0
  %1995 = vmatpush.bf16.msra.mxu0 %v1929
  %1996 = vmatpush.bf16.msra.mxu0 %v1927
  %1997 = vmatpush.bf16.msra.mxu0 %v1925
  %1998 = vmatpush.bf16.msra.mxu0 %v1923
  %1999 = vmatpush.bf16.msra.mxu0 %v1921
  %2000 = vmatpush.bf16.msra.mxu0 %v1919
  %2001 = vmatpush.bf16.msra.mxu0 %v1917
  %2002 = vmatpush.bf16.msra.mxu0 %v1915
  %2003 = vmatmul.bf16.gmra.mxu0 %v1850
  %v2004 = vpop.f32.mrf.mxu0
  %v2005 = vadd.f32 %v1779, %v2004
  %v2006 = vpop.f32.mrf.mxu0
  %v2007 = vadd.f32 %v1781, %v2006
  %2008 = vmatmul.bf16.gmra.mxu0 %v1851
  %v2009 = vpop.f32.mrf.mxu0
  %v2010 = vadd.f32 %v1784, %v2009
  %v2011 = vpop.f32.mrf.mxu0
  %v2012 = vadd.f32 %v1786, %v2011
  %2013 = vmatmul.bf16.gmra.mxu0 %v1852
  %v2014 = vpop.f32.mrf.mxu0
  %v2015 = vadd.f32 %v1789, %v2014
  %v2016 = vpop.f32.mrf.mxu0
  %v2017 = vadd.f32 %v1791, %v2016
  %2018 = vmatmul.bf16.gmra.mxu0 %v1853
  %v2019 = vpop.f32.mrf.mxu0
  %v2020 = vadd.f32 %v1794, %v2019
  %v2021 = vpop.f32.mrf.mxu0
  %v2022 = vadd.f32 %v1796, %v2021
  %2023 = vmatmul.bf16.gmra.mxu0 %v1854
  %v2024 = vpop.f32.mrf.mxu0
  %v2025 = vadd.f32 %v1799, %v2024
  %v2026 = vpop.f32.mrf.mxu0
  %v2027 = vadd.f32 %v1801, %v2026
  %2028 = vmatmul.bf16.gmra.mxu0 %v1855
  %v2029 = vpop.f32.mrf.mxu0
  %v2030 = vadd.f32 %v1804, %v2029
  %v2031 = vpop.f32.mrf.mxu0
  %v2032 = vadd.f32 %v1806, %v2031
  %2033 = vmatmul.bf16.gmra.mxu0 %v1856
  %v2034 = vpop.f32.mrf.mxu0
  %v2035 = vadd.f32 %v1809, %v2034
  %v2036 = vpop.f32.mrf.mxu0
  %v2037 = vadd.f32 %v1811, %v2036
  %2038 = vmatmul.bf16.gmra.mxu0 %v1857
  %v2039 = vpop.f32.mrf.mxu0
  %v2040 = vadd.f32 %v1814, %v2039
  %v2041 = vpop.f32.mrf.mxu0
  %v2042 = vadd.f32 %v1816, %v2041
  %2043 = vdwg.mxu0
  %s2044 = scalar_lea.vmem [#allocation2], 16
  %v2045 = vld [vmem:[%s2044] sm:$0xf]
  %v2046 = vld [vmem:[%s2044 + $0x4] sm:$0xf]
  %v2047 = vld [vmem:[%s2044 + $0x8] sm:$0xf]
  %v2048 = vld [vmem:[%s2044 + $0xc] sm:$0xf]
  %v2049 = vld [vmem:[%s2044 + $0x10] sm:$0xf]
  %v2050 = vld [vmem:[%s2044 + $0x14] sm:$0xf]
  %v2051 = vld [vmem:[%s2044 + $0x18] sm:$0xf]
  %v2052 = vld [vmem:[%s2044 + $0x1c] sm:$0xf]
  %v2053 = vld [vmem:[%s2044 + $0x20] sm:$0xf]
  %v2054 = vld [vmem:[%s2044 + $0x24] sm:$0xf]
  %v2055 = vld [vmem:[%s2044 + $0x28] sm:$0xf]
  %v2056 = vld [vmem:[%s2044 + $0x2c] sm:$0xf]
  %v2057 = vld [vmem:[%s2044 + $0x30] sm:$0xf]
  %v2058 = vld [vmem:[%s2044 + $0x34] sm:$0xf]
  %v2059 = vld [vmem:[%s2044 + $0x38] sm:$0xf]
  %v2060 = vld [vmem:[%s2044 + $0x3c] sm:$0xf]
  %s2061 = scalar_lea.vmem %s3, 256
  %v2062 = vld [vmem:[%s2061] sm:$0xff]
  %v2063 = vld [vmem:[%s2061 + $0x8] sm:$0xff]
  %v2064 = vld [vmem:[%s2061 + $0x10] sm:$0xff]
  %v2065 = vld [vmem:[%s2061 + $0x18] sm:$0xff]
  %v2066 = vld [vmem:[%s2061 + $0x20] sm:$0xff]
  %v2067 = vld [vmem:[%s2061 + $0x28] sm:$0xff]
  %v2068 = vld [vmem:[%s2061 + $0x30] sm:$0xff]
  %v2069 = vld [vmem:[%s2061 + $0x38] sm:$0xff]
  %v2070 = vld [vmem:[%s2061 + $0x40] sm:$0xff]
  %v2071 = vld [vmem:[%s2061 + $0x48] sm:$0xff]
  %v2072 = vld [vmem:[%s2061 + $0x50] sm:$0xff]
  %v2073 = vld [vmem:[%s2061 + $0x58] sm:$0xff]
  %v2074 = vld [vmem:[%s2061 + $0x60] sm:$0xff]
  %v2075 = vld [vmem:[%s2061 + $0x68] sm:$0xff]
  %v2076 = vld [vmem:[%s2061 + $0x70] sm:$0xff]
  %v2077 = vld [vmem:[%s2061 + $0x78] sm:$0xff]
  %v2094 = vunpack.c.l.b16 %v2045
  %v2095 = vunpack.c.l.b16 %v2046
  %v2096 = vunpack.c.l.b16 %v2047
  %v2097 = vunpack.c.l.b16 %v2048
  %v2098 = vunpack.c.l.b16 %v2049
  %v2099 = vunpack.c.l.b16 %v2050
  %v2100 = vunpack.c.l.b16 %v2051
  %v2101 = vunpack.c.l.b16 %v2052
  %v2102 = vunpack.c.l.b16 %v2053
  %v2103 = vunpack.c.l.b16 %v2054
  %v2104 = vunpack.c.l.b16 %v2055
  %v2105 = vunpack.c.l.b16 %v2056
  %v2106 = vunpack.c.l.b16 %v2057
  %v2107 = vunpack.c.l.b16 %v2058
  %v2108 = vunpack.c.l.b16 %v2059
  %v2109 = vunpack.c.l.b16 %v2060
  %v2110 = vpack.c.b16 %v2095, %v2094
  %v2111 = vpack.c.b16 %v2097, %v2096
  %v2112 = vpack.c.b16 %v2099, %v2098
  %v2113 = vpack.c.b16 %v2101, %v2100
  %v2114 = vpack.c.b16 %v2103, %v2102
  %v2115 = vpack.c.b16 %v2105, %v2104
  %v2116 = vpack.c.b16 %v2107, %v2106
  %v2117 = vpack.c.b16 %v2109, %v2108
  %v2142 = vunpack.c.l.b16 %v2062
  %v2143 = vunpack.c.h.b16 %v2062
  %v2144 = vunpack.c.l.b16 %v2063
  %v2145 = vunpack.c.h.b16 %v2063
  %v2146 = vunpack.c.l.b16 %v2064
  %v2147 = vunpack.c.h.b16 %v2064
  %v2148 = vunpack.c.l.b16 %v2065
  %v2149 = vunpack.c.h.b16 %v2065
  %v2150 = vunpack.c.l.b16 %v2066
  %v2151 = vunpack.c.h.b16 %v2066
  %v2152 = vunpack.c.l.b16 %v2067
  %v2153 = vunpack.c.h.b16 %v2067
  %v2154 = vunpack.c.l.b16 %v2068
  %v2155 = vunpack.c.h.b16 %v2068
  %v2156 = vunpack.c.l.b16 %v2069
  %v2157 = vunpack.c.h.b16 %v2069
  %v2158 = vunpack.c.l.b16 %v2070
  %v2159 = vunpack.c.h.b16 %v2070
  %v2160 = vunpack.c.l.b16 %v2071
  %v2161 = vunpack.c.h.b16 %v2071
  %v2162 = vunpack.c.l.b16 %v2072
  %v2163 = vunpack.c.h.b16 %v2072
  %v2164 = vunpack.c.l.b16 %v2073
  %v2165 = vunpack.c.h.b16 %v2073
  %v2166 = vunpack.c.l.b16 %v2074
  %v2167 = vunpack.c.h.b16 %v2074
  %v2168 = vunpack.c.l.b16 %v2075
  %v2169 = vunpack.c.h.b16 %v2075
  %v2170 = vunpack.c.l.b16 %v2076
  %v2171 = vunpack.c.h.b16 %v2076
  %v2172 = vunpack.c.l.b16 %v2077
  %v2173 = vunpack.c.h.b16 %v2077
  %v2174 = vpack.c.b16 %v2144, %v2142
  %v2175 = vpack.c.b16 %v2145, %v2143
  %v2176 = vpack.c.b16 %v2148, %v2146
  %v2177 = vpack.c.b16 %v2149, %v2147
  %v2178 = vpack.c.b16 %v2152, %v2150
  %v2179 = vpack.c.b16 %v2153, %v2151
  %v2180 = vpack.c.b16 %v2156, %v2154
  %v2181 = vpack.c.b16 %v2157, %v2155
  %v2182 = vpack.c.b16 %v2160, %v2158
  %v2183 = vpack.c.b16 %v2161, %v2159
  %v2184 = vpack.c.b16 %v2164, %v2162
  %v2185 = vpack.c.b16 %v2165, %v2163
  %v2186 = vpack.c.b16 %v2168, %v2166
  %v2187 = vpack.c.b16 %v2169, %v2167
  %v2188 = vpack.c.b16 %v2172, %v2170
  %v2189 = vpack.c.b16 %v2173, %v2171
  %2206 = vmatpush.bf16.msra.mxu0 %v2188
  %2207 = vmatpush.bf16.msra.mxu0 %v2186
  %2208 = vmatpush.bf16.msra.mxu0 %v2184
  %2209 = vmatpush.bf16.msra.mxu0 %v2182
  %2210 = vmatpush.bf16.msra.mxu0 %v2180
  %2211 = vmatpush.bf16.msra.mxu0 %v2178
  %2212 = vmatpush.bf16.msra.mxu0 %v2176
  %2213 = vmatpush.bf16.msra.mxu0 %v2174
  %2214 = vmatmul.bf16.gmra.mxu0 %v2110
  %v2215 = vpop.f32.mrf.mxu0
  %v2216 = vadd.f32 0.0, %v2215
  %v2217 = vpop.f32.mrf.mxu0
  %v2218 = vadd.f32 0.0, %v2217
  %2219 = vmatmul.bf16.gmra.mxu0 %v2111
  %v2220 = vpop.f32.mrf.mxu0
  %v2221 = vadd.f32 0.0, %v2220
  %v2222 = vpop.f32.mrf.mxu0
  %v2223 = vadd.f32 0.0, %v2222
  %2224 = vmatmul.bf16.gmra.mxu0 %v2112
  %v2225 = vpop.f32.mrf.mxu0
  %v2226 = vadd.f32 0.0, %v2225
  %v2227 = vpop.f32.mrf.mxu0
  %v2228 = vadd.f32 0.0, %v2227
  %2229 = vmatmul.bf16.gmra.mxu0 %v2113
  %v2230 = vpop.f32.mrf.mxu0
  %v2231 = vadd.f32 0.0, %v2230
  %v2232 = vpop.f32.mrf.mxu0
  %v2233 = vadd.f32 0.0, %v2232
  %2234 = vmatmul.bf16.gmra.mxu0 %v2114
  %v2235 = vpop.f32.mrf.mxu0
  %v2236 = vadd.f32 0.0, %v2235
  %v2237 = vpop.f32.mrf.mxu0
  %v2238 = vadd.f32 0.0, %v2237
  %2239 = vmatmul.bf16.gmra.mxu0 %v2115
  %v2240 = vpop.f32.mrf.mxu0
  %v2241 = vadd.f32 0.0, %v2240
  %v2242 = vpop.f32.mrf.mxu0
  %v2243 = vadd.f32 0.0, %v2242
  %2244 = vmatmul.bf16.gmra.mxu0 %v2116
  %v2245 = vpop.f32.mrf.mxu0
  %v2246 = vadd.f32 0.0, %v2245
  %v2247 = vpop.f32.mrf.mxu0
  %v2248 = vadd.f32 0.0, %v2247
  %2249 = vmatmul.bf16.gmra.mxu0 %v2117
  %v2250 = vpop.f32.mrf.mxu0
  %v2251 = vadd.f32 0.0, %v2250
  %v2252 = vpop.f32.mrf.mxu0
  %v2253 = vadd.f32 0.0, %v2252
  %2254 = vdwg.mxu0
  %2255 = vmatpush.bf16.msra.mxu0 %v2189
  %2256 = vmatpush.bf16.msra.mxu0 %v2187
  %2257 = vmatpush.bf16.msra.mxu0 %v2185
  %2258 = vmatpush.bf16.msra.mxu0 %v2183
  %2259 = vmatpush.bf16.msra.mxu0 %v2181
  %2260 = vmatpush.bf16.msra.mxu0 %v2179
  %2261 = vmatpush.bf16.msra.mxu0 %v2177
  %2262 = vmatpush.bf16.msra.mxu0 %v2175
  %2263 = vmatmul.bf16.gmra.mxu0 %v2110
  %v2264 = vpop.f32.mrf.mxu0
  %v2265 = vadd.f32 0.0, %v2264
  %v2266 = vpop.f32.mrf.mxu0
  %v2267 = vadd.f32 0.0, %v2266
  %2268 = vmatmul.bf16.gmra.mxu0 %v2111
  %v2269 = vpop.f32.mrf.mxu0
  %v2270 = vadd.f32 0.0, %v2269
  %v2271 = vpop.f32.mrf.mxu0
  %v2272 = vadd.f32 0.0, %v2271
  %2273 = vmatmul.bf16.gmra.mxu0 %v2112
  %v2274 = vpop.f32.mrf.mxu0
  %v2275 = vadd.f32 0.0, %v2274
  %v2276 = vpop.f32.mrf.mxu0
  %v2277 = vadd.f32 0.0, %v2276
  %2278 = vmatmul.bf16.gmra.mxu0 %v2113
  %v2279 = vpop.f32.mrf.mxu0
  %v2280 = vadd.f32 0.0, %v2279
  %v2281 = vpop.f32.mrf.mxu0
  %v2282 = vadd.f32 0.0, %v2281
  %2283 = vmatmul.bf16.gmra.mxu0 %v2114
  %v2284 = vpop.f32.mrf.mxu0
  %v2285 = vadd.f32 0.0, %v2284
  %v2286 = vpop.f32.mrf.mxu0
  %v2287 = vadd.f32 0.0, %v2286
  %2288 = vmatmul.bf16.gmra.mxu0 %v2115
  %v2289 = vpop.f32.mrf.mxu0
  %v2290 = vadd.f32 0.0, %v2289
  %v2291 = vpop.f32.mrf.mxu0
  %v2292 = vadd.f32 0.0, %v2291
  %2293 = vmatmul.bf16.gmra.mxu0 %v2116
  %v2294 = vpop.f32.mrf.mxu0
  %v2295 = vadd.f32 0.0, %v2294
  %v2296 = vpop.f32.mrf.mxu0
  %v2297 = vadd.f32 0.0, %v2296
  %2298 = vmatmul.bf16.gmra.mxu0 %v2117
  %v2299 = vpop.f32.mrf.mxu0
  %v2300 = vadd.f32 0.0, %v2299
  %v2301 = vpop.f32.mrf.mxu0
  %v2302 = vadd.f32 0.0, %v2301
  %2303 = vdwg.mxu0
  %v2304 = vadd.f32 %v1956, %v2216
  %v2305 = vadd.f32 %v2005, %v2265
  %v2306 = vadd.f32 %v1958, %v2218
  %v2307 = vadd.f32 %v2007, %v2267
  %v2308 = vadd.f32 %v1961, %v2221
  %v2309 = vadd.f32 %v2010, %v2270
  %v2310 = vadd.f32 %v1963, %v2223
  %v2311 = vadd.f32 %v2012, %v2272
  %v2312 = vadd.f32 %v1966, %v2226
  %v2313 = vadd.f32 %v2015, %v2275
  %v2314 = vadd.f32 %v1968, %v2228
  %v2315 = vadd.f32 %v2017, %v2277
  %v2316 = vadd.f32 %v1971, %v2231
  %v2317 = vadd.f32 %v2020, %v2280
  %v2318 = vadd.f32 %v1973, %v2233
  %v2319 = vadd.f32 %v2022, %v2282
  %v2320 = vadd.f32 %v1976, %v2236
  %v2321 = vadd.f32 %v2025, %v2285
  %v2322 = vadd.f32 %v1978, %v2238
  %v2323 = vadd.f32 %v2027, %v2287
  %v2324 = vadd.f32 %v1981, %v2241
  %v2325 = vadd.f32 %v2030, %v2290
  %v2326 = vadd.f32 %v1983, %v2243
  %v2327 = vadd.f32 %v2032, %v2292
  %v2328 = vadd.f32 %v1986, %v2246
  %v2329 = vadd.f32 %v2035, %v2295
  %v2330 = vadd.f32 %v1988, %v2248
  %v2331 = vadd.f32 %v2037, %v2297
  %v2332 = vadd.f32 %v1991, %v2251
  %v2333 = vadd.f32 %v2040, %v2300
  %v2334 = vadd.f32 %v1993, %v2253
  %v2335 = vadd.f32 %v2042, %v2302
  %v2336 = vld [vmem:[%s4] sm:$0x3]
  %v2338 = vperm.slane %v2336, 0
  %v2339 = vperm.slane %v2336, 1
  %v2342 = vadd.f32 %v2304, %v2338
  %v2343 = vadd.f32 %v2305, %v2339
  %v2344 = vadd.f32 %v2306, %v2338
  %v2345 = vadd.f32 %v2307, %v2339
  %v2346 = vadd.f32 %v2308, %v2338
  %v2347 = vadd.f32 %v2309, %v2339
  %v2348 = vadd.f32 %v2310, %v2338
  %v2349 = vadd.f32 %v2311, %v2339
  %v2350 = vadd.f32 %v2312, %v2338
  %v2351 = vadd.f32 %v2313, %v2339
  %v2352 = vadd.f32 %v2314, %v2338
  %v2353 = vadd.f32 %v2315, %v2339
  %v2354 = vadd.f32 %v2316, %v2338
  %v2355 = vadd.f32 %v2317, %v2339
  %v2356 = vadd.f32 %v2318, %v2338
  %v2357 = vadd.f32 %v2319, %v2339
  %v2358 = vadd.f32 %v2320, %v2338
  %v2359 = vadd.f32 %v2321, %v2339
  %v2360 = vadd.f32 %v2322, %v2338
  %v2361 = vadd.f32 %v2323, %v2339
  %v2362 = vadd.f32 %v2324, %v2338
  %v2363 = vadd.f32 %v2325, %v2339
  %v2364 = vadd.f32 %v2326, %v2338
  %v2365 = vadd.f32 %v2327, %v2339
  %v2366 = vadd.f32 %v2328, %v2338
  %v2367 = vadd.f32 %v2329, %v2339
  %v2368 = vadd.f32 %v2330, %v2338
  %v2369 = vadd.f32 %v2331, %v2339
  %v2370 = vadd.f32 %v2332, %v2338
  %v2371 = vadd.f32 %v2333, %v2339
  %v2372 = vadd.f32 %v2334, %v2338
  %v2373 = vadd.f32 %v2335, %v2339
  %v2374 = vmax.f32 %v2342, 0.0
  %v2375 = vmax.f32 %v2343, 0.0
  %v2376 = vmax.f32 %v2344, 0.0
  %v2377 = vmax.f32 %v2345, 0.0
  %v2378 = vmax.f32 %v2346, 0.0
  %v2379 = vmax.f32 %v2347, 0.0
  %v2380 = vmax.f32 %v2348, 0.0
  %v2381 = vmax.f32 %v2349, 0.0
  %v2382 = vmax.f32 %v2350, 0.0
  %v2383 = vmax.f32 %v2351, 0.0
  %v2384 = vmax.f32 %v2352, 0.0
  %v2385 = vmax.f32 %v2353, 0.0
  %v2386 = vmax.f32 %v2354, 0.0
  %v2387 = vmax.f32 %v2355, 0.0
  %v2388 = vmax.f32 %v2356, 0.0
  %v2389 = vmax.f32 %v2357, 0.0
  %v2390 = vmax.f32 %v2358, 0.0
  %v2391 = vmax.f32 %v2359, 0.0
  %v2392 = vmax.f32 %v2360, 0.0
  %v2393 = vmax.f32 %v2361, 0.0
  %v2394 = vmax.f32 %v2362, 0.0
  %v2395 = vmax.f32 %v2363, 0.0
  %v2396 = vmax.f32 %v2364, 0.0
  %v2397 = vmax.f32 %v2365, 0.0
  %v2398 = vmax.f32 %v2366, 0.0
  %v2399 = vmax.f32 %v2367, 0.0
  %v2400 = vmax.f32 %v2368, 0.0
  %v2401 = vmax.f32 %v2369, 0.0
  %v2402 = vmax.f32 %v2370, 0.0
  %v2403 = vmax.f32 %v2371, 0.0
  %v2404 = vmax.f32 %v2372, 0.0
  %v2405 = vmax.f32 %v2373, 0.0
  %v2406 = vmax.f32 %v2374, %v2375
  %v2407 = vmax.f32 %v2376, %v2377
  %v2408 = vmax.f32 %v2378, %v2379
  %v2409 = vmax.f32 %v2380, %v2381
  %v2410 = vmax.f32 %v2382, %v2383
  %v2411 = vmax.f32 %v2384, %v2385
  %v2412 = vmax.f32 %v2386, %v2387
  %v2413 = vmax.f32 %v2388, %v2389
  %v2414 = vmax.f32 %v2390, %v2391
  %v2415 = vmax.f32 %v2392, %v2393
  %v2416 = vmax.f32 %v2394, %v2395
  %v2417 = vmax.f32 %v2396, %v2397
  %v2418 = vmax.f32 %v2398, %v2399
  %v2419 = vmax.f32 %v2400, %v2401
  %v2420 = vmax.f32 %v2402, %v2403
  %v2421 = vmax.f32 %v2404, %v2405
  %v2422 = vmax.f32 %v2406, %v2408
  %v2423 = vmax.f32 %v2407, %v2409
  %v2424 = vmax.f32 %v2410, %v2412
  %v2425 = vmax.f32 %v2411, %v2413
  %v2426 = vmax.f32 %v2414, %v2416
  %v2427 = vmax.f32 %v2415, %v2417
  %v2428 = vmax.f32 %v2418, %v2420
  %v2429 = vmax.f32 %v2419, %v2421
  %v2430 = vpack.c.bf16 %v2423, %v2422
  %v2431 = vpack.c.bf16 %v2425, %v2424
  %v2432 = vpack.c.bf16 %v2427, %v2426
  %v2433 = vpack.c.bf16 %v2429, %v2428
  %v2434 = vld [vmem:[%s5] sm:$0xff]
  %v2435 = vld [vmem:[%s5 + $0x8] sm:$0xff]
  %v2436 = vld [vmem:[%s5 + $0x10] sm:$0xff]
  %v2437 = vld [vmem:[%s5 + $0x18] sm:$0xff]
  %v2438 = vld [vmem:[%s5 + $0x20] sm:$0xff]
  %v2439 = vld [vmem:[%s5 + $0x28] sm:$0xff]
  %v2440 = vld [vmem:[%s5 + $0x30] sm:$0xff]
  %v2441 = vld [vmem:[%s5 + $0x38] sm:$0xff]
  %v2442 = vld [vmem:[%s5 + $0x40] sm:$0xff]
  %v2443 = vld [vmem:[%s5 + $0x48] sm:$0xff]
  %v2444 = vld [vmem:[%s5 + $0x50] sm:$0xff]
  %v2445 = vld [vmem:[%s5 + $0x58] sm:$0xff]
  %v2446 = vld [vmem:[%s5 + $0x60] sm:$0xff]
  %v2447 = vld [vmem:[%s5 + $0x68] sm:$0xff]
  %v2448 = vld [vmem:[%s5 + $0x70] sm:$0xff]
  %v2449 = vld [vmem:[%s5 + $0x78] sm:$0xff]
  %v2450 = vld [vmem:[%s5 + $0x80] sm:$0xff]
  %v2451 = vld [vmem:[%s5 + $0x88] sm:$0xff]
  %v2452 = vld [vmem:[%s5 + $0x90] sm:$0xff]
  %v2453 = vld [vmem:[%s5 + $0x98] sm:$0xff]
  %v2454 = vld [vmem:[%s5 + $0xa0] sm:$0xff]
  %v2455 = vld [vmem:[%s5 + $0xa8] sm:$0xff]
  %v2456 = vld [vmem:[%s5 + $0xb0] sm:$0xff]
  %v2457 = vld [vmem:[%s5 + $0xb8] sm:$0xff]
  %v2458 = vld [vmem:[%s5 + $0xc0] sm:$0xff]
  %v2459 = vld [vmem:[%s5 + $0xc8] sm:$0xff]
  %v2460 = vld [vmem:[%s5 + $0xd0] sm:$0xff]
  %v2461 = vld [vmem:[%s5 + $0xd8] sm:$0xff]
  %v2462 = vld [vmem:[%s5 + $0xe0] sm:$0xff]
  %v2463 = vld [vmem:[%s5 + $0xe8] sm:$0xff]
  %v2464 = vld [vmem:[%s5 + $0xf0] sm:$0xff]
  %v2465 = vld [vmem:[%s5 + $0xf8] sm:$0xff]
  %v2466 = vld [vmem:[%s5 + $0x100] sm:$0xff]
  %v2467 = vld [vmem:[%s5 + $0x108] sm:$0xff]
  %v2468 = vld [vmem:[%s5 + $0x110] sm:$0xff]
  %v2469 = vld [vmem:[%s5 + $0x118] sm:$0xff]
  %v2470 = vld [vmem:[%s5 + $0x120] sm:$0xff]
  %v2471 = vld [vmem:[%s5 + $0x128] sm:$0xff]
  %v2472 = vld [vmem:[%s5 + $0x130] sm:$0xff]
  %v2473 = vld [vmem:[%s5 + $0x138] sm:$0xff]
  %v2474 = vld [vmem:[%s5 + $0x140] sm:$0xff]
  %v2475 = vld [vmem:[%s5 + $0x148] sm:$0xff]
  %v2476 = vld [vmem:[%s5 + $0x150] sm:$0xff]
  %v2477 = vld [vmem:[%s5 + $0x158] sm:$0xff]
  %v2478 = vld [vmem:[%s5 + $0x160] sm:$0xff]
  %v2479 = vld [vmem:[%s5 + $0x168] sm:$0xff]
  %v2480 = vld [vmem:[%s5 + $0x170] sm:$0xff]
  %v2481 = vld [vmem:[%s5 + $0x178] sm:$0xff]
  %v2482 = vld [vmem:[%s5 + $0x180] sm:$0xff]
  %v2483 = vld [vmem:[%s5 + $0x188] sm:$0xff]
  %v2484 = vld [vmem:[%s5 + $0x190] sm:$0xff]
  %v2485 = vld [vmem:[%s5 + $0x198] sm:$0xff]
  %v2486 = vld [vmem:[%s5 + $0x1a0] sm:$0xff]
  %v2487 = vld [vmem:[%s5 + $0x1a8] sm:$0xff]
  %v2488 = vld [vmem:[%s5 + $0x1b0] sm:$0xff]
  %v2489 = vld [vmem:[%s5 + $0x1b8] sm:$0xff]
  %v2490 = vld [vmem:[%s5 + $0x1c0] sm:$0xff]
  %v2491 = vld [vmem:[%s5 + $0x1c8] sm:$0xff]
  %v2492 = vld [vmem:[%s5 + $0x1d0] sm:$0xff]
  %v2493 = vld [vmem:[%s5 + $0x1d8] sm:$0xff]
  %v2494 = vld [vmem:[%s5 + $0x1e0] sm:$0xff]
  %v2495 = vld [vmem:[%s5 + $0x1e8] sm:$0xff]
  %v2496 = vld [vmem:[%s5 + $0x1f0] sm:$0xff]
  %v2497 = vld [vmem:[%s5 + $0x1f8] sm:$0xff]
  %v2498 = vld [vmem:[%s6] sm:$0x3]
  %v2500 = vperm.slane %v2498, 0
  %v2501 = vperm.slane %v2498, 1
  %v2568 = vunpack.c.l.b16 %v2434
  %v2569 = vunpack.c.h.b16 %v2434
  %v2570 = vunpack.c.l.b16 %v2435
  %v2571 = vunpack.c.h.b16 %v2435
  %v2572 = vunpack.c.l.b16 %v2436
  %v2573 = vunpack.c.h.b16 %v2436
  %v2574 = vunpack.c.l.b16 %v2437
  %v2575 = vunpack.c.h.b16 %v2437
  %v2576 = vunpack.c.l.b16 %v2438
  %v2577 = vunpack.c.h.b16 %v2438
  %v2578 = vunpack.c.l.b16 %v2439
  %v2579 = vunpack.c.h.b16 %v2439
  %v2580 = vunpack.c.l.b16 %v2440
  %v2581 = vunpack.c.h.b16 %v2440
  %v2582 = vunpack.c.l.b16 %v2441
  %v2583 = vunpack.c.h.b16 %v2441
  %v2584 = vunpack.c.l.b16 %v2442
  %v2585 = vunpack.c.h.b16 %v2442
  %v2586 = vunpack.c.l.b16 %v2443
  %v2587 = vunpack.c.h.b16 %v2443
  %v2588 = vunpack.c.l.b16 %v2444
  %v2589 = vunpack.c.h.b16 %v2444
  %v2590 = vunpack.c.l.b16 %v2445
  %v2591 = vunpack.c.h.b16 %v2445
  %v2592 = vunpack.c.l.b16 %v2446
  %v2593 = vunpack.c.h.b16 %v2446
  %v2594 = vunpack.c.l.b16 %v2447
  %v2595 = vunpack.c.h.b16 %v2447
  %v2596 = vunpack.c.l.b16 %v2448
  %v2597 = vunpack.c.h.b16 %v2448
  %v2598 = vunpack.c.l.b16 %v2449
  %v2599 = vunpack.c.h.b16 %v2449
  %v2600 = vunpack.c.l.b16 %v2450
  %v2601 = vunpack.c.h.b16 %v2450
  %v2602 = vunpack.c.l.b16 %v2451
  %v2603 = vunpack.c.h.b16 %v2451
  %v2604 = vunpack.c.l.b16 %v2452
  %v2605 = vunpack.c.h.b16 %v2452
  %v2606 = vunpack.c.l.b16 %v2453
  %v2607 = vunpack.c.h.b16 %v2453
  %v2608 = vunpack.c.l.b16 %v2454
  %v2609 = vunpack.c.h.b16 %v2454
  %v2610 = vunpack.c.l.b16 %v2455
  %v2611 = vunpack.c.h.b16 %v2455
  %v2612 = vunpack.c.l.b16 %v2456
  %v2613 = vunpack.c.h.b16 %v2456
  %v2614 = vunpack.c.l.b16 %v2457
  %v2615 = vunpack.c.h.b16 %v2457
  %v2616 = vunpack.c.l.b16 %v2458
  %v2617 = vunpack.c.h.b16 %v2458
  %v2618 = vunpack.c.l.b16 %v2459
  %v2619 = vunpack.c.h.b16 %v2459
  %v2620 = vunpack.c.l.b16 %v2460
  %v2621 = vunpack.c.h.b16 %v2460
  %v2622 = vunpack.c.l.b16 %v2461
  %v2623 = vunpack.c.h.b16 %v2461
  %v2624 = vunpack.c.l.b16 %v2462
  %v2625 = vunpack.c.h.b16 %v2462
  %v2626 = vunpack.c.l.b16 %v2463
  %v2627 = vunpack.c.h.b16 %v2463
  %v2628 = vunpack.c.l.b16 %v2464
  %v2629 = vunpack.c.h.b16 %v2464
  %v2630 = vunpack.c.l.b16 %v2465
  %v2631 = vunpack.c.h.b16 %v2465
  %v2632 = vunpack.c.l.b16 %v2466
  %v2633 = vunpack.c.h.b16 %v2466
  %v2634 = vunpack.c.l.b16 %v2467
  %v2635 = vunpack.c.h.b16 %v2467
  %v2636 = vunpack.c.l.b16 %v2468
  %v2637 = vunpack.c.h.b16 %v2468
  %v2638 = vunpack.c.l.b16 %v2469
  %v2639 = vunpack.c.h.b16 %v2469
  %v2640 = vunpack.c.l.b16 %v2470
  %v2641 = vunpack.c.h.b16 %v2470
  %v2642 = vunpack.c.l.b16 %v2471
  %v2643 = vunpack.c.h.b16 %v2471
  %v2644 = vunpack.c.l.b16 %v2472
  %v2645 = vunpack.c.h.b16 %v2472
  %v2646 = vunpack.c.l.b16 %v2473
  %v2647 = vunpack.c.h.b16 %v2473
  %v2648 = vunpack.c.l.b16 %v2474
  %v2649 = vunpack.c.h.b16 %v2474
  %v2650 = vunpack.c.l.b16 %v2475
  %v2651 = vunpack.c.h.b16 %v2475
  %v2652 = vunpack.c.l.b16 %v2476
  %v2653 = vunpack.c.h.b16 %v2476
  %v2654 = vunpack.c.l.b16 %v2477
  %v2655 = vunpack.c.h.b16 %v2477
  %v2656 = vunpack.c.l.b16 %v2478
  %v2657 = vunpack.c.h.b16 %v2478
  %v2658 = vunpack.c.l.b16 %v2479
  %v2659 = vunpack.c.h.b16 %v2479
  %v2660 = vunpack.c.l.b16 %v2480
  %v2661 = vunpack.c.h.b16 %v2480
  %v2662 = vunpack.c.l.b16 %v2481
  %v2663 = vunpack.c.h.b16 %v2481
  %v2664 = vunpack.c.l.b16 %v2482
  %v2665 = vunpack.c.h.b16 %v2482
  %v2666 = vunpack.c.l.b16 %v2483
  %v2667 = vunpack.c.h.b16 %v2483
  %v2668 = vunpack.c.l.b16 %v2484
  %v2669 = vunpack.c.h.b16 %v2484
  %v2670 = vunpack.c.l.b16 %v2485
  %v2671 = vunpack.c.h.b16 %v2485
  %v2672 = vunpack.c.l.b16 %v2486
  %v2673 = vunpack.c.h.b16 %v2486
  %v2674 = vunpack.c.l.b16 %v2487
  %v2675 = vunpack.c.h.b16 %v2487
  %v2676 = vunpack.c.l.b16 %v2488
  %v2677 = vunpack.c.h.b16 %v2488
  %v2678 = vunpack.c.l.b16 %v2489
  %v2679 = vunpack.c.h.b16 %v2489
  %v2680 = vunpack.c.l.b16 %v2490
  %v2681 = vunpack.c.h.b16 %v2490
  %v2682 = vunpack.c.l.b16 %v2491
  %v2683 = vunpack.c.h.b16 %v2491
  %v2684 = vunpack.c.l.b16 %v2492
  %v2685 = vunpack.c.h.b16 %v2492
  %v2686 = vunpack.c.l.b16 %v2493
  %v2687 = vunpack.c.h.b16 %v2493
  %v2688 = vunpack.c.l.b16 %v2494
  %v2689 = vunpack.c.h.b16 %v2494
  %v2690 = vunpack.c.l.b16 %v2495
  %v2691 = vunpack.c.h.b16 %v2495
  %v2692 = vunpack.c.l.b16 %v2496
  %v2693 = vunpack.c.h.b16 %v2496
  %v2694 = vunpack.c.l.b16 %v2497
  %v2695 = vunpack.c.h.b16 %v2497
  %v2696 = vpack.c.b16 %v2570, %v2568
  %v2697 = vpack.c.b16 %v2571, %v2569
  %v2698 = vpack.c.b16 %v2574, %v2572
  %v2699 = vpack.c.b16 %v2575, %v2573
  %v2700 = vpack.c.b16 %v2578, %v2576
  %v2701 = vpack.c.b16 %v2579, %v2577
  %v2702 = vpack.c.b16 %v2582, %v2580
  %v2703 = vpack.c.b16 %v2583, %v2581
  %v2704 = vpack.c.b16 %v2586, %v2584
  %v2705 = vpack.c.b16 %v2587, %v2585
  %v2706 = vpack.c.b16 %v2590, %v2588
  %v2707 = vpack.c.b16 %v2591, %v2589
  %v2708 = vpack.c.b16 %v2594, %v2592
  %v2709 = vpack.c.b16 %v2595, %v2593
  %v2710 = vpack.c.b16 %v2598, %v2596
  %v2711 = vpack.c.b16 %v2599, %v2597
  %v2712 = vpack.c.b16 %v2602, %v2600
  %v2713 = vpack.c.b16 %v2603, %v2601
  %v2714 = vpack.c.b16 %v2606, %v2604
  %v2715 = vpack.c.b16 %v2607, %v2605
  %v2716 = vpack.c.b16 %v2610, %v2608
  %v2717 = vpack.c.b16 %v2611, %v2609
  %v2718 = vpack.c.b16 %v2614, %v2612
  %v2719 = vpack.c.b16 %v2615, %v2613
  %v2720 = vpack.c.b16 %v2618, %v2616
  %v2721 = vpack.c.b16 %v2619, %v2617
  %v2722 = vpack.c.b16 %v2622, %v2620
  %v2723 = vpack.c.b16 %v2623, %v2621
  %v2724 = vpack.c.b16 %v2626, %v2624
  %v2725 = vpack.c.b16 %v2627, %v2625
  %v2726 = vpack.c.b16 %v2630, %v2628
  %v2727 = vpack.c.b16 %v2631, %v2629
  %v2728 = vpack.c.b16 %v2634, %v2632
  %v2729 = vpack.c.b16 %v2635, %v2633
  %v2730 = vpack.c.b16 %v2638, %v2636
  %v2731 = vpack.c.b16 %v2639, %v2637
  %v2732 = vpack.c.b16 %v2642, %v2640
  %v2733 = vpack.c.b16 %v2643, %v2641
  %v2734 = vpack.c.b16 %v2646, %v2644
  %v2735 = vpack.c.b16 %v2647, %v2645
  %v2736 = vpack.c.b16 %v2650, %v2648
  %v2737 = vpack.c.b16 %v2651, %v2649
  %v2738 = vpack.c.b16 %v2654, %v2652
  %v2739 = vpack.c.b16 %v2655, %v2653
  %v2740 = vpack.c.b16 %v2658, %v2656
  %v2741 = vpack.c.b16 %v2659, %v2657
  %v2742 = vpack.c.b16 %v2662, %v2660
  %v2743 = vpack.c.b16 %v2663, %v2661
  %v2744 = vpack.c.b16 %v2666, %v2664
  %v2745 = vpack.c.b16 %v2667, %v2665
  %v2746 = vpack.c.b16 %v2670, %v2668
  %v2747 = vpack.c.b16 %v2671, %v2669
  %v2748 = vpack.c.b16 %v2674, %v2672
  %v2749 = vpack.c.b16 %v2675, %v2673
  %v2750 = vpack.c.b16 %v2678, %v2676
  %v2751 = vpack.c.b16 %v2679, %v2677
  %v2752 = vpack.c.b16 %v2682, %v2680
  %v2753 = vpack.c.b16 %v2683, %v2681
  %v2754 = vpack.c.b16 %v2686, %v2684
  %v2755 = vpack.c.b16 %v2687, %v2685
  %v2756 = vpack.c.b16 %v2690, %v2688
  %v2757 = vpack.c.b16 %v2691, %v2689
  %v2758 = vpack.c.b16 %v2694, %v2692
  %v2759 = vpack.c.b16 %v2695, %v2693
  %2824 = vmatpush.bf16.msra.mxu0 %v2710
  %2825 = vmatpush.bf16.msra.mxu0 %v2708
  %2826 = vmatpush.bf16.msra.mxu0 %v2706
  %2827 = vmatpush.bf16.msra.mxu0 %v2704
  %2828 = vmatpush.bf16.msra.mxu0 %v2702
  %2829 = vmatpush.bf16.msra.mxu0 %v2700
  %2830 = vmatpush.bf16.msra.mxu0 %v2698
  %2831 = vmatpush.bf16.msra.mxu0 %v2696
  %2832 = vmatmul.bf16.gmra.mxu0 %v2430
  %v2833 = vpop.f32.mrf.mxu0
  %v2834 = vadd.f32 %v2500, %v2833
  %v2835 = vpop.f32.mrf.mxu0
  %v2836 = vadd.f32 %v2500, %v2835
  %2837 = vdwg.mxu0
  %2838 = vmatpush.bf16.msra.mxu0 %v2726
  %2839 = vmatpush.bf16.msra.mxu0 %v2724
  %2840 = vmatpush.bf16.msra.mxu0 %v2722
  %2841 = vmatpush.bf16.msra.mxu0 %v2720
  %2842 = vmatpush.bf16.msra.mxu0 %v2718
  %2843 = vmatpush.bf16.msra.mxu0 %v2716
  %2844 = vmatpush.bf16.msra.mxu0 %v2714
  %2845 = vmatpush.bf16.msra.mxu0 %v2712
  %2846 = vmatmul.bf16.gmra.mxu0 %v2431
  %v2847 = vpop.f32.mrf.mxu0
  %v2848 = vadd.f32 %v2834, %v2847
  %v2849 = vpop.f32.mrf.mxu0
  %v2850 = vadd.f32 %v2836, %v2849
  %2851 = vdwg.mxu0
  %2852 = vmatpush.bf16.msra.mxu0 %v2742
  %2853 = vmatpush.bf16.msra.mxu0 %v2740
  %2854 = vmatpush.bf16.msra.mxu0 %v2738
  %2855 = vmatpush.bf16.msra.mxu0 %v2736
  %2856 = vmatpush.bf16.msra.mxu0 %v2734
  %2857 = vmatpush.bf16.msra.mxu0 %v2732
  %2858 = vmatpush.bf16.msra.mxu0 %v2730
  %2859 = vmatpush.bf16.msra.mxu0 %v2728
  %2860 = vmatmul.bf16.gmra.mxu0 %v2432
  %v2861 = vpop.f32.mrf.mxu0
  %v2862 = vadd.f32 %v2848, %v2861
  %v2863 = vpop.f32.mrf.mxu0
  %v2864 = vadd.f32 %v2850, %v2863
  %2865 = vdwg.mxu0
  %2866 = vmatpush.bf16.msra.mxu0 %v2758
  %2867 = vmatpush.bf16.msra.mxu0 %v2756
  %2868 = vmatpush.bf16.msra.mxu0 %v2754
  %2869 = vmatpush.bf16.msra.mxu0 %v2752
  %2870 = vmatpush.bf16.msra.mxu0 %v2750
  %2871 = vmatpush.bf16.msra.mxu0 %v2748
  %2872 = vmatpush.bf16.msra.mxu0 %v2746
  %2873 = vmatpush.bf16.msra.mxu0 %v2744
  %2874 = vmatmul.bf16.gmra.mxu0 %v2433
  %v2875 = vpop.f32.mrf.mxu0
  %v2876 = vadd.f32 %v2862, %v2875
  %v2877 = vpop.f32.mrf.mxu0
  %v2878 = vadd.f32 %v2864, %v2877
  %2879 = vdwg.mxu0
  %2880 = vmatpush.bf16.msra.mxu0 %v2711
  %2881 = vmatpush.bf16.msra.mxu0 %v2709
  %2882 = vmatpush.bf16.msra.mxu0 %v2707
  %2883 = vmatpush.bf16.msra.mxu0 %v2705
  %2884 = vmatpush.bf16.msra.mxu0 %v2703
  %2885 = vmatpush.bf16.msra.mxu0 %v2701
  %2886 = vmatpush.bf16.msra.mxu0 %v2699
  %2887 = vmatpush.bf16.msra.mxu0 %v2697
  %2888 = vmatmul.bf16.gmra.mxu0 %v2430
  %v2889 = vpop.f32.mrf.mxu0
  %v2890 = vadd.f32 %v2501, %v2889
  %v2891 = vpop.f32.mrf.mxu0
  %v2892 = vadd.f32 %v2501, %v2891
  %2893 = vdwg.mxu0
  %2894 = vmatpush.bf16.msra.mxu0 %v2727
  %2895 = vmatpush.bf16.msra.mxu0 %v2725
  %2896 = vmatpush.bf16.msra.mxu0 %v2723
  %2897 = vmatpush.bf16.msra.mxu0 %v2721
  %2898 = vmatpush.bf16.msra.mxu0 %v2719
  %2899 = vmatpush.bf16.msra.mxu0 %v2717
  %2900 = vmatpush.bf16.msra.mxu0 %v2715
  %2901 = vmatpush.bf16.msra.mxu0 %v2713
  %2902 = vmatmul.bf16.gmra.mxu0 %v2431
  %v2903 = vpop.f32.mrf.mxu0
  %v2904 = vadd.f32 %v2890, %v2903
  %v2905 = vpop.f32.mrf.mxu0
  %v2906 = vadd.f32 %v2892, %v2905
  %2907 = vdwg.mxu0
  %2908 = vmatpush.bf16.msra.mxu0 %v2743
  %2909 = vmatpush.bf16.msra.mxu0 %v2741
  %2910 = vmatpush.bf16.msra.mxu0 %v2739
  %2911 = vmatpush.bf16.msra.mxu0 %v2737
  %2912 = vmatpush.bf16.msra.mxu0 %v2735
  %2913 = vmatpush.bf16.msra.mxu0 %v2733
  %2914 = vmatpush.bf16.msra.mxu0 %v2731
  %2915 = vmatpush.bf16.msra.mxu0 %v2729
  %2916 = vmatmul.bf16.gmra.mxu0 %v2432
  %v2917 = vpop.f32.mrf.mxu0
  %v2918 = vadd.f32 %v2904, %v2917
  %v2919 = vpop.f32.mrf.mxu0
  %v2920 = vadd.f32 %v2906, %v2919
  %2921 = vdwg.mxu0
  %2922 = vmatpush.bf16.msra.mxu0 %v2759
  %2923 = vmatpush.bf16.msra.mxu0 %v2757
  %2924 = vmatpush.bf16.msra.mxu0 %v2755
  %2925 = vmatpush.bf16.msra.mxu0 %v2753
  %2926 = vmatpush.bf16.msra.mxu0 %v2751
  %2927 = vmatpush.bf16.msra.mxu0 %v2749
  %2928 = vmatpush.bf16.msra.mxu0 %v2747
  %2929 = vmatpush.bf16.msra.mxu0 %v2745
  %2930 = vmatmul.bf16.gmra.mxu0 %v2433
  %v2931 = vpop.f32.mrf.mxu0
  %v2932 = vadd.f32 %v2918, %v2931
  %v2933 = vpop.f32.mrf.mxu0
  %v2934 = vadd.f32 %v2920, %v2933
  %2935 = vdwg.mxu0
  %v2936 = vmax.f32 %v2876, 0.0
  %v2937 = vmax.f32 %v2932, 0.0
  %v2938 = vmax.f32 %v2878, 0.0
  %v2939 = vmax.f32 %v2934, 0.0
  %v2940 = vpack.c.bf16 %v2938, %v2936
  %v2941 = vpack.c.bf16 %v2939, %v2937
  %v2942 = vld [vmem:[%s7] sm:$0xf]
  %v2943 = vld [vmem:[%s7 + $0x4] sm:$0xf]
  %v2944 = vld [vmem:[%s7 + $0x8] sm:$0xf]
  %v2945 = vld [vmem:[%s7 + $0xc] sm:$0xf]
  %v2946 = vld [vmem:[%s7 + $0x10] sm:$0xf]
  %v2947 = vld [vmem:[%s7 + $0x14] sm:$0xf]
  %v2948 = vld [vmem:[%s7 + $0x18] sm:$0xf]
  %v2949 = vld [vmem:[%s7 + $0x1c] sm:$0xf]
  %v2950 = vld [vmem:[%s7 + $0x20] sm:$0xf]
  %v2951 = vld [vmem:[%s7 + $0x24] sm:$0xf]
  %v2952 = vld [vmem:[%s7 + $0x28] sm:$0xf]
  %v2953 = vld [vmem:[%s7 + $0x2c] sm:$0xf]
  %v2954 = vld [vmem:[%s7 + $0x30] sm:$0xf]
  %v2955 = vld [vmem:[%s7 + $0x34] sm:$0xf]
  %v2956 = vld [vmem:[%s7 + $0x38] sm:$0xf]
  %v2957 = vld [vmem:[%s7 + $0x3c] sm:$0xf]
  %v2958 = vld [vmem:[%s7 + $0x40] sm:$0xf]
  %v2959 = vld [vmem:[%s7 + $0x44] sm:$0xf]
  %v2960 = vld [vmem:[%s7 + $0x48] sm:$0xf]
  %v2961 = vld [vmem:[%s7 + $0x4c] sm:$0xf]
  %v2962 = vld [vmem:[%s7 + $0x50] sm:$0xf]
  %v2963 = vld [vmem:[%s7 + $0x54] sm:$0xf]
  %v2964 = vld [vmem:[%s7 + $0x58] sm:$0xf]
  %v2965 = vld [vmem:[%s7 + $0x5c] sm:$0xf]
  %v2966 = vld [vmem:[%s7 + $0x60] sm:$0xf]
  %v2967 = vld [vmem:[%s7 + $0x64] sm:$0xf]
  %v2968 = vld [vmem:[%s7 + $0x68] sm:$0xf]
  %v2969 = vld [vmem:[%s7 + $0x6c] sm:$0xf]
  %v2970 = vld [vmem:[%s7 + $0x70] sm:$0xf]
  %v2971 = vld [vmem:[%s7 + $0x74] sm:$0xf]
  %v2972 = vld [vmem:[%s7 + $0x78] sm:$0xf]
  %v2973 = vld [vmem:[%s7 + $0x7c] sm:$0xf]
  %v2974 = vld [vmem:[%s8] sm:$0x1]
  %v2976 = vperm.slane %v2974, 0
  %v3010 = vunpack.c.l.b16 %v2942
  %v3011 = vunpack.c.l.b16 %v2943
  %v3012 = vunpack.c.l.b16 %v2944
  %v3013 = vunpack.c.l.b16 %v2945
  %v3014 = vunpack.c.l.b16 %v2946
  %v3015 = vunpack.c.l.b16 %v2947
  %v3016 = vunpack.c.l.b16 %v2948
  %v3017 = vunpack.c.l.b16 %v2949
  %v3018 = vunpack.c.l.b16 %v2950
  %v3019 = vunpack.c.l.b16 %v2951
  %v3020 = vunpack.c.l.b16 %v2952
  %v3021 = vunpack.c.l.b16 %v2953
  %v3022 = vunpack.c.l.b16 %v2954
  %v3023 = vunpack.c.l.b16 %v2955
  %v3024 = vunpack.c.l.b16 %v2956
  %v3025 = vunpack.c.l.b16 %v2957
  %v3026 = vunpack.c.l.b16 %v2958
  %v3027 = vunpack.c.l.b16 %v2959
  %v3028 = vunpack.c.l.b16 %v2960
  %v3029 = vunpack.c.l.b16 %v2961
  %v3030 = vunpack.c.l.b16 %v2962
  %v3031 = vunpack.c.l.b16 %v2963
  %v3032 = vunpack.c.l.b16 %v2964
  %v3033 = vunpack.c.l.b16 %v2965
  %v3034 = vunpack.c.l.b16 %v2966
  %v3035 = vunpack.c.l.b16 %v2967
  %v3036 = vunpack.c.l.b16 %v2968
  %v3037 = vunpack.c.l.b16 %v2969
  %v3038 = vunpack.c.l.b16 %v2970
  %v3039 = vunpack.c.l.b16 %v2971
  %v3040 = vunpack.c.l.b16 %v2972
  %v3041 = vunpack.c.l.b16 %v2973
  %v3042 = vpack.c.b16 %v3011, %v3010
  %v3043 = vpack.c.b16 %v3013, %v3012
  %v3044 = vpack.c.b16 %v3015, %v3014
  %v3045 = vpack.c.b16 %v3017, %v3016
  %v3046 = vpack.c.b16 %v3019, %v3018
  %v3047 = vpack.c.b16 %v3021, %v3020
  %v3048 = vpack.c.b16 %v3023, %v3022
  %v3049 = vpack.c.b16 %v3025, %v3024
  %v3050 = vpack.c.b16 %v3027, %v3026
  %v3051 = vpack.c.b16 %v3029, %v3028
  %v3052 = vpack.c.b16 %v3031, %v3030
  %v3053 = vpack.c.b16 %v3033, %v3032
  %v3054 = vpack.c.b16 %v3035, %v3034
  %v3055 = vpack.c.b16 %v3037, %v3036
  %v3056 = vpack.c.b16 %v3039, %v3038
  %v3057 = vpack.c.b16 %v3041, %v3040
  %3074 = vmatpush.bf16.msra.mxu0 %v3049
  %3075 = vmatpush.bf16.msra.mxu0 %v3048
  %3076 = vmatpush.bf16.msra.mxu0 %v3047
  %3077 = vmatpush.bf16.msra.mxu0 %v3046
  %3078 = vmatpush.bf16.msra.mxu0 %v3045
  %3079 = vmatpush.bf16.msra.mxu0 %v3044
  %3080 = vmatpush.bf16.msra.mxu0 %v3043
  %3081 = vmatpush.bf16.msra.mxu0 %v3042
  %3082 = vmatmul.bf16.gmra.mxu0 %v2940
  %v3083 = vpop.f32.mrf.mxu0
  %v3084 = vadd.f32 %v2976, %v3083
  %v3085 = vpop.f32.mrf.mxu0
  %v3086 = vadd.f32 %v2976, %v3085
  %3087 = vdwg.mxu0
  %3088 = vmatpush.bf16.msra.mxu0 %v3057
  %3089 = vmatpush.bf16.msra.mxu0 %v3056
  %3090 = vmatpush.bf16.msra.mxu0 %v3055
  %3091 = vmatpush.bf16.msra.mxu0 %v3054
  %3092 = vmatpush.bf16.msra.mxu0 %v3053
  %3093 = vmatpush.bf16.msra.mxu0 %v3052
  %3094 = vmatpush.bf16.msra.mxu0 %v3051
  %3095 = vmatpush.bf16.msra.mxu0 %v3050
  %3096 = vmatmul.bf16.gmra.mxu0 %v2941
  %v3097 = vpop.f32.mrf.mxu0
  %v3098 = vadd.f32 %v3084, %v3097
  %v3099 = vpop.f32.mrf.mxu0
  %v3100 = vadd.f32 %v3086, %v3099
  %3101 = vdwg.mxu0
  %3102 = vst [vmem:[%s9] sm:$0xff] %v3098
  %3103 = vst [vmem:[%s9 + $0x8] sm:$0xff] %v3100
  // Predicated region
  $region38: #{forward_pallas.1} parent=0 // pred_check
    _
  $region39: #{forward_pallas.1} parent=0 // pred_check_branch
    %3105 = sbr.rel (0) target = $region41
  $region40: #{forward_pallas.1} parent=0 // pred_region
    _
  $region41: #{forward_pallas.1} parent=0 // pred_fallthru
    _
  // Predicated region
  $region42: #{forward_pallas.1} parent=0 // pred_check
    _
  $region43: #{forward_pallas.1} parent=0 // pred_check_branch
    %3107 = sbr.rel (0) target = $region45
  $region44: #{forward_pallas.1} parent=0 // pred_region
    _
  $region45: #{forward_pallas.1} parent=0 // pred_fallthru
    _

</llo_original>
